<compile_context>
chip_gen: v7x
topology: tpu7x:2x2x1
jax: 0.10.0
libtpu: 0.0.40
codegen_flags: <defaults>
</compile_context>

<pallas_src>
import jax
import jax.numpy as jnp
from jax.experimental import pallas as pl
from jax.experimental.pallas import tpu as pltpu


def _make_bottleneck_kernel(H, W, d, padw):
    """H, W: spatial dims; d: dilation (== padding); padw: aligned left/right pad (>= d, mult of 8)."""

    def kernel(x_ref, w1_ref, b1_ref, w2_ref, b2_ref, w3_ref, b3_ref, out_ref, pad_ref):
        # x_ref:  (1, H, W, C_in)    w1_ref: (C_in, Cm)      b1_ref: (1, Cm)
        # w2_ref: (9, Cm, Cm)        b2_ref: (1, Cm)
        # w3_ref: (Cm, C_out)        b3_ref: (1, C_out)
        # out_ref:(1, H, W, C_out)   pad_ref: VMEM (H+2d, W+2*padw, Cm) f32 scratch
        HW = H * W
        c_in = x_ref.shape[-1]
        cm = w1_ref.shape[-1]
        c_out = w3_ref.shape[-1]

        x = x_ref[...].reshape(HW, c_in)

        # ---- conv1 (1x1) + bn1 + relu --------------------------------------
        y1 = jnp.dot(x, w1_ref[...], preferred_element_type=jnp.float32) + b1_ref[...]
        y1 = jnp.maximum(y1, 0.0)

        # Stage y1 into a zero-padded scratch (interior write is tile-aligned in sublanes).
        pad_ref[...] = jnp.zeros_like(pad_ref)
        pad_ref[d:d + H, padw:padw + W, :] = y1.reshape(H, W, cm)

        # ---- conv2 (3x3, dilation d, padding d) as 9 shifted matmuls + bn2 + relu ----
        acc = jnp.zeros((HW, cm), jnp.float32)
        for ki in range(3):
            for kj in range(3):
                r0 = d * ki
                c0 = padw - d + d * kj
                patch = pad_ref[r0:r0 + H, c0:c0 + W, :].reshape(HW, cm)
                acc = acc + jnp.dot(patch, w2_ref[ki * 3 + kj],
                                    preferred_element_type=jnp.float32)
        y2 = jnp.maximum(acc + b2_ref[...], 0.0)

        # ---- conv3 (1x1) + bn3, identity residual, final relu ---------------
        y3 = jnp.dot(y2, w3_ref[...], preferred_element_type=jnp.float32) + b3_ref[...]
        out = jnp.maximum(y3 + x, 0.0)
        out_ref[...] = out.reshape(1, H, W, c_out).astype(out_ref.dtype)

    return kernel


def bottleneck_forward(x,
                       conv1_w, bn1_g, bn1_b, bn1_m, bn1_v,
                       conv2_w, bn2_g, bn2_b, bn2_m, bn2_v,
                       conv3_w, bn3_g, bn3_b, bn3_m, bn3_v,
                       block_no=5, stride=1, eps=1e-5):
    """x: (N, C_in, H, W) NCHW.  conv1_w: (Cm, C_in, 1, 1), conv2_w: (Cm, Cm, 3, 3),
    conv3_w: (C_out, Cm, 1, 1).  BatchNorm in eval mode (running stats), folded into convs."""
    # TODO(synk): stride>1 / downsample projection branch not implemented (identity residual only).
    assert stride == 1
    dilation = 2 if block_no < 5 else 4

    N, C_in, H, W = x.shape
    C_mid = conv1_w.shape[0]
    C_out = conv3_w.shape[0]
    assert C_out == C_in, "identity residual requires inplanes == planes*4"

    d = dilation
    padw = ((d + 7) // 8) * 8  # aligned left/right pad of the scratch (>= d, multiple of 8)

    def fold(g, b, m, v):
        s = g * jax.lax.rsqrt(v + eps)
        return s, b - m * s

    s1, t1 = fold(bn1_g, bn1_b, bn1_m, bn1_v)
    s2, t2 = fold(bn2_g, bn2_b, bn2_m, bn2_v)
    s3, t3 = fold(bn3_g, bn3_b, bn3_m, bn3_v)

    f32 = jnp.float32
    # BN scale folded into conv weights; BN shift becomes the bias.
    w1t = (conv1_w.reshape(C_mid, C_in).T * s1[None, :]).astype(f32)                  # (C_in, Cm)
    b1 = t1.reshape(1, C_mid).astype(f32)
    w2s = (jnp.transpose(conv2_w, (2, 3, 1, 0)).reshape(9, C_mid, C_mid)
           * s2[None, None, :]).astype(f32)                                           # (9, Cm, Cm)
    b2 = t2.reshape(1, C_mid).astype(f32)
    w3t = (conv3_w.reshape(C_out, C_mid).T * s3[None, :]).astype(f32)                 # (Cm, C_out)
    b3 = t3.reshape(1, C_out).astype(f32)

    x_nhwc = jnp.transpose(x, (0, 2, 3, 1)).astype(f32)                               # (N, H, W, C_in)

    HW = H * W
    flops = 2 * N * HW * (C_in * C_mid + 9 * C_mid * C_mid + C_mid * C_out)
    bytes_accessed = 4 * (N * HW * (C_in + C_out)
                          + C_in * C_mid + 9 * C_mid * C_mid + C_mid * C_out)

    out_nhwc = pl.pallas_call(
        _make_bottleneck_kernel(H, W, d, padw),
        out_shape=jax.ShapeDtypeStruct((N, H, W, C_out), jnp.float32),
        grid_spec=pltpu.PrefetchScalarGridSpec(
            num_scalar_prefetch=0,
            grid=(N,),
            in_specs=[
                pl.BlockSpec((1, H, W, C_in), lambda n: (n, 0, 0, 0)),
                pl.BlockSpec((C_in, C_mid), lambda n: (0, 0)),
                pl.BlockSpec((1, C_mid), lambda n: (0, 0)),
                pl.BlockSpec((9, C_mid, C_mid), lambda n: (0, 0, 0)),
                pl.BlockSpec((1, C_mid), lambda n: (0, 0)),
                pl.BlockSpec((C_mid, C_out), lambda n: (0, 0)),
                pl.BlockSpec((1, C_out), lambda n: (0, 0)),
            ],
            out_specs=pl.BlockSpec((1, H, W, C_out), lambda n: (n, 0, 0, 0)),
            scratch_shapes=[pltpu.VMEM((H + 2 * d, W + 2 * padw, C_mid), jnp.float32)],
        ),
        compiler_params=pltpu.CompilerParams(
            dimension_semantics=("parallel",),
            vmem_limit_bytes=32 * 1024 * 1024,
        ),
        cost_estimate=pl.CostEstimate(flops=flops, transcendentals=0,
                                      bytes_accessed=bytes_accessed),
    )(x_nhwc, w1t, b1, w2s, b2, w3t, b3)

    return jnp.transpose(out_nhwc, (0, 3, 1, 2))


def _reference(x, conv1_w, bn1, conv2_w, bn2, conv3_w, bn3, dilation, padding, eps=1e-5):
    def bn(y, g, b, m, v):
        s = g * jax.lax.rsqrt(v + eps)
        return (y - m[None, :, None, None]) * s[None, :, None, None] + b[None, :, None, None]

    C_mid = conv1_w.shape[0]
    C_out = conv3_w.shape[0]
    y = jnp.einsum('nchw,oc->nohw', x, conv1_w.reshape(C_mid, -1))
    y = jax.nn.relu(bn(y, *bn1))
    y = jax.lax.conv_general_dilated(
        y, conv2_w, window_strides=(1, 1),
        padding=((padding, padding), (padding, padding)),
        rhs_dilation=(dilation, dilation),
        dimension_numbers=('NCHW', 'OIHW', 'NCHW'))
    y = jax.nn.relu(bn(y, *bn2))
    y = jnp.einsum('nchw,oc->nohw', y, conv3_w.reshape(C_out, -1))
    y = bn(y, *bn3)
    return jax.nn.relu(y + x)


if __name__ == "__main__":
    key = jax.random.PRNGKey(0)
    keys = jax.random.split(key, 8)

    # Small shapes consistent with the module: Bottleneck(inplanes=512, planes=128, block_no=5)
    # -> dilation=4, padding=4, stride=1, downsample=None (inplanes == planes*4).
    N, C_in, H, W = 2, 512, 16, 16
    planes = 128
    C_mid, C_out = planes, planes * 4
    block_no = 5
    dilation = 2 if block_no < 5 else 4

    x = jax.random.normal(keys[0], (N, C_in, H, W), jnp.float32)
    conv1_w = jax.random.normal(keys[1], (C_mid, C_in, 1, 1), jnp.float32) / (C_in ** 0.5)
    conv2_w = jax.random.normal(keys[2], (C_mid, C_mid, 3, 3), jnp.float32) / ((9 * C_mid) ** 0.5)
    conv3_w = jax.random.normal(keys[3], (C_out, C_mid, 1, 1), jnp.float32) / (C_mid ** 0.5)

    def bn_params(k, c):
        k1, k2, k3, k4 = jax.random.split(k, 4)
        g = 1.0 + 0.1 * jax.random.normal(k1, (c,), jnp.float32)
        b = 0.1 * jax.random.normal(k2, (c,), jnp.float32)
        m = 0.1 * jax.random.normal(k3, (c,), jnp.float32)
        v = 1.0 + jax.random.uniform(k4, (c,), jnp.float32)
        return g, b, m, v

    bn1 = bn_params(keys[4], C_mid)
    bn2 = bn_params(keys[5], C_mid)
    bn3 = bn_params(keys[6], C_out)

    out = bottleneck_forward(x,
                             conv1_w, *bn1,
                             conv2_w, *bn2,
                             conv3_w, *bn3,
                             block_no=block_no, stride=1)
    out = jax.block_until_ready(out)

    ref = _reference(x, conv1_w, bn1, conv2_w, bn2, conv3_w, bn3,
                     dilation=dilation, padding=dilation)
    assert out.shape == (N, C_out, H, W), out.shape
    rel_err = float(jnp.max(jnp.abs(out - ref)) / (jnp.max(jnp.abs(ref)) + 1e-6))
    assert rel_err < 2e-2, rel_err

    print("KERNEL_OK")
</pallas_src>

<mosaic_0001>
module attributes {stable_mosaic.version = 11 : i64} {
  func.func @kernel(%arg0: i32, %arg1: memref<1x16x16x512xf32, #tpu.memory_space<vmem>>, %arg2: memref<512x128xf32, #tpu.memory_space<vmem>>, %arg3: memref<1x128xf32, #tpu.memory_space<vmem>>, %arg4: memref<9x128x128xf32, #tpu.memory_space<vmem>>, %arg5: memref<1x128xf32, #tpu.memory_space<vmem>>, %arg6: memref<128x512xf32, #tpu.memory_space<vmem>>, %arg7: memref<1x512xf32, #tpu.memory_space<vmem>>, %arg8: memref<1x16x16x512xf32, #tpu.memory_space<vmem>>, %arg9: memref<24x32x128xf32, #tpu.memory_space<vmem>>) attributes {dimension_semantics = [#tpu.dimension_semantics<parallel>], iteration_bounds = array<i64: 2>, scalar_prefetch = 0 : i64, scratch_operands = 1 : i64, tpu.core_type = #tpu.core_type<tc>, window_params = [{transform_indices = @transform_0, window_bounds = array<i64: 1, 16, 16, 512>}, {pipeline_mode = #tpu.pipeline_mode<synchronous>, transform_indices = @transform_1, window_bounds = array<i64: 512, 128>}, {pipeline_mode = #tpu.pipeline_mode<synchronous>, transform_indices = @transform_2, window_bounds = array<i64: 1, 128>}, {pipeline_mode = #tpu.pipeline_mode<synchronous>, transform_indices = @transform_3, window_bounds = array<i64: 9, 128, 128>}, {pipeline_mode = #tpu.pipeline_mode<synchronous>, transform_indices = @transform_4, window_bounds = array<i64: 1, 128>}, {pipeline_mode = #tpu.pipeline_mode<synchronous>, transform_indices = @transform_5, window_bounds = array<i64: 128, 512>}, {pipeline_mode = #tpu.pipeline_mode<synchronous>, transform_indices = @transform_6, window_bounds = array<i64: 1, 512>}, {transform_indices = @transform_7, window_bounds = array<i64: 1, 16, 16, 512>}]} {
    %c0 = arith.constant 0 : index
    %c0_0 = arith.constant 0 : index
    %c0_1 = arith.constant 0 : index
    %c0_2 = arith.constant 0 : index
    %0 = vector.load %arg1[%c0, %c0_0, %c0_1, %c0_2] : memref<1x16x16x512xf32, #tpu.memory_space<vmem>>, vector<1x16x16x512xf32>
    %1 = vector.shape_cast %0 : vector<1x16x16x512xf32> to vector<256x512xf32>
    %c0_3 = arith.constant 0 : index
    %c0_4 = arith.constant 0 : index
    %2 = vector.load %arg2[%c0_3, %c0_4] : memref<512x128xf32, #tpu.memory_space<vmem>>, vector<512x128xf32>
    %cst = arith.constant dense<0.000000e+00> : vector<256x128xf32>
    %3 = tpu.matmul %1, %2, %cst {dimension_numbers = #tpu.dot_dimension_numbers<[1], [0], [0], [1], [0, 0, 1, 1], [], []>} : vector<256x512xf32>, vector<512x128xf32>, vector<256x128xf32> -> vector<256x128xf32>
    %c0_5 = arith.constant 0 : index
    %c0_6 = arith.constant 0 : index
    %4 = vector.load %arg3[%c0_5, %c0_6] : memref<1x128xf32, #tpu.memory_space<vmem>>, vector<1x128xf32>
    %5 = vector.broadcast %4 : vector<1x128xf32> to vector<256x128xf32>
    %6 = arith.addf %3, %5 : vector<256x128xf32>
    %cst_7 = arith.constant 0.000000e+00 : f32
    %7 = vector.broadcast %cst_7 : f32 to vector<256x128xf32>
    %8 = arith.maximumf %6, %7 : vector<256x128xf32>
    %cst_8 = arith.constant 0.000000e+00 : f32
    %9 = vector.broadcast %cst_8 : f32 to vector<24x32x128xf32>
    %c0_9 = arith.constant 0 : index
    %c0_10 = arith.constant 0 : index
    %c0_11 = arith.constant 0 : index
    %10 = vector.load %arg9[%c0_9, %c0_10, %c0_11] : memref<24x32x128xf32, #tpu.memory_space<vmem>>, vector<24x32x128xf32>
    tpu.vector_store %arg9[%c0_9, %c0_10, %c0_11], %9 {strides = array<i32>} : memref<24x32x128xf32, #tpu.memory_space<vmem>>, vector<24x32x128xf32>,
    %11 = vector.shape_cast %8 : vector<256x128xf32> to vector<16x16x128xf32>
    %c4 = arith.constant 4 : index
    %c8 = arith.constant 8 : index
    %c0_12 = arith.constant 0 : index
    %12 = vector.load %arg9[%c4, %c8, %c0_12] : memref<24x32x128xf32, #tpu.memory_space<vmem>>, vector<16x16x128xf32>
    tpu.vector_store %arg9[%c4, %c8, %c0_12], %11 {strides = array<i32>} : memref<24x32x128xf32, #tpu.memory_space<vmem>>, vector<16x16x128xf32>,
    %cst_13 = arith.constant 0.000000e+00 : f32
    %13 = vector.broadcast %cst_13 : f32 to vector<256x128xf32>
    %c0_14 = arith.constant 0 : index
    %c4_15 = arith.constant 4 : index
    %c0_16 = arith.constant 0 : index
    %14 = vector.load %arg9[%c0_14, %c4_15, %c0_16] : memref<24x32x128xf32, #tpu.memory_space<vmem>>, vector<16x16x128xf32>
    %15 = vector.shape_cast %14 : vector<16x16x128xf32> to vector<256x128xf32>
    %c0_17 = arith.constant 0 : index
    %c0_18 = arith.constant 0 : index
    %c0_19 = arith.constant 0 : index
    %16 = vector.load %arg4[%c0_17, %c0_18, %c0_19] : memref<9x128x128xf32, #tpu.memory_space<vmem>>, vector<1x128x128xf32>
    %17 = vector.shape_cast %16 : vector<1x128x128xf32> to vector<128x128xf32>
    %cst_20 = arith.constant dense<0.000000e+00> : vector<256x128xf32>
    %18 = tpu.matmul %15, %17, %cst_20 {dimension_numbers = #tpu.dot_dimension_numbers<[1], [0], [0], [1], [0, 0, 1, 1], [], []>} : vector<256x128xf32>, vector<128x128xf32>, vector<256x128xf32> -> vector<256x128xf32>
    %19 = arith.addf %13, %18 : vector<256x128xf32>
    %c0_21 = arith.constant 0 : index
    %c8_22 = arith.constant 8 : index
    %c0_23 = arith.constant 0 : index
    %20 = vector.load %arg9[%c0_21, %c8_22, %c0_23] : memref<24x32x128xf32, #tpu.memory_space<vmem>>, vector<16x16x128xf32>
    %21 = vector.shape_cast %20 : vector<16x16x128xf32> to vector<256x128xf32>
    %c1 = arith.constant 1 : index
    %c0_24 = arith.constant 0 : index
    %c0_25 = arith.constant 0 : index
    %22 = vector.load %arg4[%c1, %c0_24, %c0_25] : memref<9x128x128xf32, #tpu.memory_space<vmem>>, vector<1x128x128xf32>
    %23 = vector.shape_cast %22 : vector<1x128x128xf32> to vector<128x128xf32>
    %cst_26 = arith.constant dense<0.000000e+00> : vector<256x128xf32>
    %24 = tpu.matmul %21, %23, %cst_26 {dimension_numbers = #tpu.dot_dimension_numbers<[1], [0], [0], [1], [0, 0, 1, 1], [], []>} : vector<256x128xf32>, vector<128x128xf32>, vector<256x128xf32> -> vector<256x128xf32>
    %25 = arith.addf %19, %24 : vector<256x128xf32>
    %c0_27 = arith.constant 0 : index
    %c12 = arith.constant 12 : index
    %c0_28 = arith.constant 0 : index
    %26 = vector.load %arg9[%c0_27, %c12, %c0_28] : memref<24x32x128xf32, #tpu.memory_space<vmem>>, vector<16x16x128xf32>
    %27 = vector.shape_cast %26 : vector<16x16x128xf32> to vector<256x128xf32>
    %c2 = arith.constant 2 : index
    %c0_29 = arith.constant 0 : index
    %c0_30 = arith.constant 0 : index
    %28 = vector.load %arg4[%c2, %c0_29, %c0_30] : memref<9x128x128xf32, #tpu.memory_space<vmem>>, vector<1x128x128xf32>
    %29 = vector.shape_cast %28 : vector<1x128x128xf32> to vector<128x128xf32>
    %cst_31 = arith.constant dense<0.000000e+00> : vector<256x128xf32>
    %30 = tpu.matmul %27, %29, %cst_31 {dimension_numbers = #tpu.dot_dimension_numbers<[1], [0], [0], [1], [0, 0, 1, 1], [], []>} : vector<256x128xf32>, vector<128x128xf32>, vector<256x128xf32> -> vector<256x128xf32>
    %31 = arith.addf %25, %30 : vector<256x128xf32>
    %c4_32 = arith.constant 4 : index
    %c4_33 = arith.constant 4 : index
    %c0_34 = arith.constant 0 : index
    %32 = vector.load %arg9[%c4_32, %c4_33, %c0_34] : memref<24x32x128xf32, #tpu.memory_space<vmem>>, vector<16x16x128xf32>
    %33 = vector.shape_cast %32 : vector<16x16x128xf32> to vector<256x128xf32>
    %c3 = arith.constant 3 : index
    %c0_35 = arith.constant 0 : index
    %c0_36 = arith.constant 0 : index
    %34 = vector.load %arg4[%c3, %c0_35, %c0_36] : memref<9x128x128xf32, #tpu.memory_space<vmem>>, vector<1x128x128xf32>
    %35 = vector.shape_cast %34 : vector<1x128x128xf32> to vector<128x128xf32>
    %cst_37 = arith.constant dense<0.000000e+00> : vector<256x128xf32>
    %36 = tpu.matmul %33, %35, %cst_37 {dimension_numbers = #tpu.dot_dimension_numbers<[1], [0], [0], [1], [0, 0, 1, 1], [], []>} : vector<256x128xf32>, vector<128x128xf32>, vector<256x128xf32> -> vector<256x128xf32>
    %37 = arith.addf %31, %36 : vector<256x128xf32>
    %c4_38 = arith.constant 4 : index
    %c8_39 = arith.constant 8 : index
    %c0_40 = arith.constant 0 : index
    %38 = vector.load %arg9[%c4_38, %c8_39, %c0_40] : memref<24x32x128xf32, #tpu.memory_space<vmem>>, vector<16x16x128xf32>
    %39 = vector.shape_cast %38 : vector<16x16x128xf32> to vector<256x128xf32>
    %c4_41 = arith.constant 4 : index
    %c0_42 = arith.constant 0 : index
    %c0_43 = arith.constant 0 : index
    %40 = vector.load %arg4[%c4_41, %c0_42, %c0_43] : memref<9x128x128xf32, #tpu.memory_space<vmem>>, vector<1x128x128xf32>
    %41 = vector.shape_cast %40 : vector<1x128x128xf32> to vector<128x128xf32>
    %cst_44 = arith.constant dense<0.000000e+00> : vector<256x128xf32>
    %42 = tpu.matmul %39, %41, %cst_44 {dimension_numbers = #tpu.dot_dimension_numbers<[1], [0], [0], [1], [0, 0, 1, 1], [], []>} : vector<256x128xf32>, vector<128x128xf32>, vector<256x128xf32> -> vector<256x128xf32>
    %43 = arith.addf %37, %42 : vector<256x128xf32>
    %c4_45 = arith.constant 4 : index
    %c12_46 = arith.constant 12 : index
    %c0_47 = arith.constant 0 : index
    %44 = vector.load %arg9[%c4_45, %c12_46, %c0_47] : memref<24x32x128xf32, #tpu.memory_space<vmem>>, vector<16x16x128xf32>
    %45 = vector.shape_cast %44 : vector<16x16x128xf32> to vector<256x128xf32>
    %c5 = arith.constant 5 : index
    %c0_48 = arith.constant 0 : index
    %c0_49 = arith.constant 0 : index
    %46 = vector.load %arg4[%c5, %c0_48, %c0_49] : memref<9x128x128xf32, #tpu.memory_space<vmem>>, vector<1x128x128xf32>
    %47 = vector.shape_cast %46 : vector<1x128x128xf32> to vector<128x128xf32>
    %cst_50 = arith.constant dense<0.000000e+00> : vector<256x128xf32>
    %48 = tpu.matmul %45, %47, %cst_50 {dimension_numbers = #tpu.dot_dimension_numbers<[1], [0], [0], [1], [0, 0, 1, 1], [], []>} : vector<256x128xf32>, vector<128x128xf32>, vector<256x128xf32> -> vector<256x128xf32>
    %49 = arith.addf %43, %48 : vector<256x128xf32>
    %c8_51 = arith.constant 8 : index
    %c4_52 = arith.constant 4 : index
    %c0_53 = arith.constant 0 : index
    %50 = vector.load %arg9[%c8_51, %c4_52, %c0_53] : memref<24x32x128xf32, #tpu.memory_space<vmem>>, vector<16x16x128xf32>
    %51 = vector.shape_cast %50 : vector<16x16x128xf32> to vector<256x128xf32>
    %c6 = arith.constant 6 : index
    %c0_54 = arith.constant 0 : index
    %c0_55 = arith.constant 0 : index
    %52 = vector.load %arg4[%c6, %c0_54, %c0_55] : memref<9x128x128xf32, #tpu.memory_space<vmem>>, vector<1x128x128xf32>
    %53 = vector.shape_cast %52 : vector<1x128x128xf32> to vector<128x128xf32>
    %cst_56 = arith.constant dense<0.000000e+00> : vector<256x128xf32>
    %54 = tpu.matmul %51, %53, %cst_56 {dimension_numbers = #tpu.dot_dimension_numbers<[1], [0], [0], [1], [0, 0, 1, 1], [], []>} : vector<256x128xf32>, vector<128x128xf32>, vector<256x128xf32> -> vector<256x128xf32>
    %55 = arith.addf %49, %54 : vector<256x128xf32>
    %c8_57 = arith.constant 8 : index
    %c8_58 = arith.constant 8 : index
    %c0_59 = arith.constant 0 : index
    %56 = vector.load %arg9[%c8_57, %c8_58, %c0_59] : memref<24x32x128xf32, #tpu.memory_space<vmem>>, vector<16x16x128xf32>
    %57 = vector.shape_cast %56 : vector<16x16x128xf32> to vector<256x128xf32>
    %c7 = arith.constant 7 : index
    %c0_60 = arith.constant 0 : index
    %c0_61 = arith.constant 0 : index
    %58 = vector.load %arg4[%c7, %c0_60, %c0_61] : memref<9x128x128xf32, #tpu.memory_space<vmem>>, vector<1x128x128xf32>
    %59 = vector.shape_cast %58 : vector<1x128x128xf32> to vector<128x128xf32>
    %cst_62 = arith.constant dense<0.000000e+00> : vector<256x128xf32>
    %60 = tpu.matmul %57, %59, %cst_62 {dimension_numbers = #tpu.dot_dimension_numbers<[1], [0], [0], [1], [0, 0, 1, 1], [], []>} : vector<256x128xf32>, vector<128x128xf32>, vector<256x128xf32> -> vector<256x128xf32>
    %61 = arith.addf %55, %60 : vector<256x128xf32>
    %c8_63 = arith.constant 8 : index
    %c12_64 = arith.constant 12 : index
    %c0_65 = arith.constant 0 : index
    %62 = vector.load %arg9[%c8_63, %c12_64, %c0_65] : memref<24x32x128xf32, #tpu.memory_space<vmem>>, vector<16x16x128xf32>
    %63 = vector.shape_cast %62 : vector<16x16x128xf32> to vector<256x128xf32>
    %c8_66 = arith.constant 8 : index
    %c0_67 = arith.constant 0 : index
    %c0_68 = arith.constant 0 : index
    %64 = vector.load %arg4[%c8_66, %c0_67, %c0_68] : memref<9x128x128xf32, #tpu.memory_space<vmem>>, vector<1x128x128xf32>
    %65 = vector.shape_cast %64 : vector<1x128x128xf32> to vector<128x128xf32>
    %cst_69 = arith.constant dense<0.000000e+00> : vector<256x128xf32>
    %66 = tpu.matmul %63, %65, %cst_69 {dimension_numbers = #tpu.dot_dimension_numbers<[1], [0], [0], [1], [0, 0, 1, 1], [], []>} : vector<256x128xf32>, vector<128x128xf32>, vector<256x128xf32> -> vector<256x128xf32>
    %67 = arith.addf %61, %66 : vector<256x128xf32>
    %c0_70 = arith.constant 0 : index
    %c0_71 = arith.constant 0 : index
    %68 = vector.load %arg5[%c0_70, %c0_71] : memref<1x128xf32, #tpu.memory_space<vmem>>, vector<1x128xf32>
    %69 = vector.broadcast %68 : vector<1x128xf32> to vector<256x128xf32>
    %70 = arith.addf %67, %69 : vector<256x128xf32>
    %cst_72 = arith.constant 0.000000e+00 : f32
    %71 = vector.broadcast %cst_72 : f32 to vector<256x128xf32>
    %72 = arith.maximumf %70, %71 : vector<256x128xf32>
    %c0_73 = arith.constant 0 : index
    %c0_74 = arith.constant 0 : index
    %73 = vector.load %arg6[%c0_73, %c0_74] : memref<128x512xf32, #tpu.memory_space<vmem>>, vector<128x512xf32>
    %cst_75 = arith.constant dense<0.000000e+00> : vector<256x512xf32>
    %74 = tpu.matmul %72, %73, %cst_75 {dimension_numbers = #tpu.dot_dimension_numbers<[1], [0], [0], [1], [0, 0, 1, 1], [], []>} : vector<256x128xf32>, vector<128x512xf32>, vector<256x512xf32> -> vector<256x512xf32>
    %c0_76 = arith.constant 0 : index
    %c0_77 = arith.constant 0 : index
    %75 = vector.load %arg7[%c0_76, %c0_77] : memref<1x512xf32, #tpu.memory_space<vmem>>, vector<1x512xf32>
    %76 = vector.broadcast %75 : vector<1x512xf32> to vector<256x512xf32>
    %77 = arith.addf %74, %76 : vector<256x512xf32>
    %78 = arith.addf %77, %1 : vector<256x512xf32>
    %cst_78 = arith.constant 0.000000e+00 : f32
    %79 = vector.broadcast %cst_78 : f32 to vector<256x512xf32>
    %80 = arith.maximumf %78, %79 : vector<256x512xf32>
    %81 = vector.shape_cast %80 : vector<256x512xf32> to vector<1x16x16x512xf32>
    %c0_79 = arith.constant 0 : index
    %c0_80 = arith.constant 0 : index
    %c0_81 = arith.constant 0 : index
    %c0_82 = arith.constant 0 : index
    %82 = vector.load %arg8[%c0_79, %c0_80, %c0_81, %c0_82] : memref<1x16x16x512xf32, #tpu.memory_space<vmem>>, vector<1x16x16x512xf32>
    tpu.vector_store %arg8[%c0_79, %c0_80, %c0_81, %c0_82], %81 {strides = array<i32>} : memref<1x16x16x512xf32, #tpu.memory_space<vmem>>, vector<1x16x16x512xf32>,
    return
  }
  func.func @transform_0(%arg0: i32) -> (i32, i32, i32, i32) {
    %c0_i32 = arith.constant 0 : i32
    %c0_i32_0 = arith.constant 0 : i32
    %c0_i32_1 = arith.constant 0 : i32
    %c0_i32_2 = arith.constant 0 : i32
    return %arg0, %c0_i32, %c0_i32_0, %c0_i32_1 : i32, i32, i32, i32
  }
  func.func @transform_1(%arg0: i32) -> (i32, i32) {
    %c0_i32 = arith.constant 0 : i32
    %c0_i32_0 = arith.constant 0 : i32
    %c0_i32_1 = arith.constant 0 : i32
    return %c0_i32, %c0_i32_0 : i32, i32
  }
  func.func @transform_2(%arg0: i32) -> (i32, i32) {
    %c0_i32 = arith.constant 0 : i32
    %c0_i32_0 = arith.constant 0 : i32
    %c0_i32_1 = arith.constant 0 : i32
    return %c0_i32, %c0_i32_0 : i32, i32
  }
  func.func @transform_3(%arg0: i32) -> (i32, i32, i32) {
    %c0_i32 = arith.constant 0 : i32
    %c0_i32_0 = arith.constant 0 : i32
    %c0_i32_1 = arith.constant 0 : i32
    %c0_i32_2 = arith.constant 0 : i32
    return %c0_i32, %c0_i32_0, %c0_i32_1 : i32, i32, i32
  }
  func.func @transform_4(%arg0: i32) -> (i32, i32) {
    %c0_i32 = arith.constant 0 : i32
    %c0_i32_0 = arith.constant 0 : i32
    %c0_i32_1 = arith.constant 0 : i32
    return %c0_i32, %c0_i32_0 : i32, i32
  }
  func.func @transform_5(%arg0: i32) -> (i32, i32) {
    %c0_i32 = arith.constant 0 : i32
    %c0_i32_0 = arith.constant 0 : i32
    %c0_i32_1 = arith.constant 0 : i32
    return %c0_i32, %c0_i32_0 : i32, i32
  }
  func.func @transform_6(%arg0: i32) -> (i32, i32) {
    %c0_i32 = arith.constant 0 : i32
    %c0_i32_0 = arith.constant 0 : i32
    %c0_i32_1 = arith.constant 0 : i32
    return %c0_i32, %c0_i32_0 : i32, i32
  }
  func.func @transform_7(%arg0: i32) -> (i32, i32, i32, i32) {
    %c0_i32 = arith.constant 0 : i32
    %c0_i32_0 = arith.constant 0 : i32
    %c0_i32_1 = arith.constant 0 : i32
    %c0_i32_2 = arith.constant 0 : i32
    return %arg0, %c0_i32, %c0_i32_0, %c0_i32_1 : i32, i32, i32, i32
  }
}

</mosaic_0001>

<llo_original>
// kernel: tpu_custom_call.1
$region0: #{tpu_custom_call.1}
  #allocation0 [shape = 'u32[]', space=smem, size = 0x4, offset = 0x4, fixed_abs, tag = 'smem constant byte address 0x4 - core index']
  #allocation1 [shape = 'u32[144,128]{1,0:T(1,128)}', space=vmem, size = 0x12000, scoped, tag = 'internal scratch']
  #allocation2 [shape = 'f32[24,32,128]{2,1,0:T(8,128)}', space=vmem, size = 0x60000, scoped, tag = 'scratch operand']
  %s0 = inlined_call_operand.hbm [shape: f32[2,16,16,512], index: 0, kind: input, shape index: {}]
  %s1 = inlined_call_operand.hbm [shape: f32[512,128], index: 1, kind: input, shape index: {}]
  %s2 = inlined_call_operand.vmem [shape: f32[1,128], index: 2, kind: input, shape index: {}]
  %s3 = inlined_call_operand.hbm [shape: f32[9,128,128], index: 3, kind: input, shape index: {}]
  %s4 = inlined_call_operand.vmem [shape: f32[1,128], index: 4, kind: input, shape index: {}]
  %s5 = inlined_call_operand.hbm [shape: f32[128,512], index: 5, kind: input, shape index: {}]
  %s6 = inlined_call_operand.vmem [shape: f32[1,512], index: 6, kind: input, shape index: {}]
  %s7 = inlined_call_operand.hbm [shape: f32[2,16,16,512], index: 7, kind: output, shape index: {}]
  %s8 = sld [smem:[#allocation0]]
  $region77: #{tpu_custom_call.1} parent=0
    _
  %s10 = ssub.s32 1, %s8
  %s11 = scalar_select 0, %s10, %s8
  $region1: #{tpu_custom_call.1} parent=0
    #allocation3 [shape = 'u8[1048576]{0}', space=vmem, size = 0x100000, scoped, tag = 'input window, operand 0']
    #allocation4 [shape = 's32[2]{0}', space=sflag, size = 0x8, scoped, tag = 'scoped memory for tpu_custom_call.1']
    #allocation5 [shape = 's32[2]{0}', space=sflag, size = 0x8, scoped, tag = 'scoped memory for tpu_custom_call.1']
    #allocation6 [shape = 'u8[262144]{0}', space=vmem, size = 0x40000, scoped, tag = 'input window, operand 1, single buffered']
    #allocation7 [shape = 's32[1]{0}', space=sflag, size = 0x4, scoped, tag = 'scoped memory for tpu_custom_call.1']
    #allocation8 [shape = 'u8[589824]{0}', space=vmem, size = 0x90000, scoped, tag = 'input window, operand 3, single buffered']
    #allocation9 [shape = 'u8[262144]{0}', space=vmem, size = 0x40000, scoped, tag = 'input window, operand 5, single buffered']
    #allocation10 [shape = 's32[1]{0}', space=sflag, size = 0x4, scoped, tag = 'scoped memory for tpu_custom_call.1']
    #allocation11 [shape = 'u8[1048576]{0}', space=vmem, size = 0x100000, scoped, tag = 'output window, operand 0']
    %12 = vsyncpa [#allocation4], 0
    %s13 = scalar_lea.sflag [#allocation4], 1
    %14 = vsyncpa %s13, 0
    %15 = vsyncpa [#allocation7], 0
    %16 = vsyncpa [#allocation10], 0
    %17 = vsyncpa [#allocation5], 0
    %s18 = scalar_lea.sflag [#allocation5], 1
    %19 = vsyncpa %s18, 0
    loop: start=0, step=1, limit=4
    $region2: #{tpu_custom_call.1} parent=1 // loop_pre_header
      _
    $region3: #{tpu_custom_call.1} parent=1 // loop_header
      %s21 = sphi 0, %s25
      %p22 = scmp.ge.s32.totalorder %s21, 4
      %s31 = sphi 0, %s33
      %s34 = sphi 0, %s31
      %s35 = sphi 0, %s34
      %s51 = sphi 0, %s35
      %s55 = sphi 0, %s55
      %s57 = sphi 0, %s55
      %s58 = sphi 0, %s57
      %s72 = sphi 0, %s58
      %s76 = sphi 0, %s76
      %s78 = sphi 0, %s76
      %s79 = sphi 0, %s78
      %s93 = sphi 0, %s79
      %s97 = sphi 0, %s97
      %s99 = sphi 0, %s97
      %s100 = sphi 0, %s99
      %s114 = sphi 0, %s100
      %s118 = sphi 0, %s118
      %s120 = sphi 0, %s118
      %s121 = sphi 0, %s120
      %s135 = sphi 0, %s121
      %s139 = sphi 0, %s139
      %s141 = sphi 0, %s139
      %s142 = sphi 0, %s141
      %s156 = sphi 0, %s142
      %s160 = sphi 0, %s160
      %s162 = sphi 0, %s160
      %s163 = sphi 0, %s162
      %s177 = sphi 0, %s163
      %s183 = sphi 0, %s185
      %s186 = sphi 0, %s183
      %s187 = sphi 0, %s186
      %s203 = sphi 0, %s187
    $region4: #{tpu_custom_call.1} parent=1 // loop_header_branch
      %24 = sbr.rel (%p22) target = $region8
    $region5: #{tpu_custom_call.1} parent=1 // loop_body
      %s26 = ssub.s32 %s21, 1
      %s27 = ssub.s32 %s21, 2
      %s28 = sadd.s32 %s21, 1
      %s29 = ssub.s32 %s21, %s28
      %p30 = scmp.eq.s32.totalorder %s29, 0
      %s32 = sadd.s32 %s31, 1
      %s33 = scalar_select %p30, %s31, %s32
      %p36 = pneg %p30
      %p37 = scmp.eq.s32.totalorder %s21, 1
      %p38 = por %p36, %p37
      %p39 = scmp.ne.s32.totalorder %s31, %s34
      %p40 = scmp.eq.s32.totalorder %s21, 0
      %p41 = por %p39, %p40
      %p42 = scmp.ne.s32.totalorder %s31, %s34
      %p43 = scmp.eq.s32.totalorder %s26, 1
      %p44 = por %p42, %p43
      %p45 = scmp.ne.s32.totalorder %s34, %s35
      %p46 = scmp.eq.s32.totalorder %s26, 0
      %p47 = por %p45, %p46
      %p48 = scmp.ne.s32.totalorder %s34, %s35
      %p49 = scmp.eq.s32.totalorder %s27, 1
      %p50 = por %p48, %p49
      %p52 = scmp.ne.s32.totalorder %s35, %s51
      %p53 = scmp.eq.s32.totalorder %s27, 0
      %p54 = por %p52, %p53
      %s56 = sadd.s32 %s55, 1
      %p59 = scmp.eq.s32.totalorder %s21, 1
      %p60 = scmp.ne.s32.totalorder %s55, %s57
      %p61 = scmp.eq.s32.totalorder %s21, 0
      %p62 = por %p60, %p61
      %p63 = scmp.ne.s32.totalorder %s55, %s57
      %p64 = scmp.eq.s32.totalorder %s26, 1
      %p65 = por %p63, %p64
      %p66 = scmp.ne.s32.totalorder %s57, %s58
      %p67 = scmp.eq.s32.totalorder %s26, 0
      %p68 = por %p66, %p67
      %p69 = scmp.ne.s32.totalorder %s57, %s58
      %p70 = scmp.eq.s32.totalorder %s27, 1
      %p71 = por %p69, %p70
      %p73 = scmp.ne.s32.totalorder %s58, %s72
      %p74 = scmp.eq.s32.totalorder %s27, 0
      %p75 = por %p73, %p74
      %s77 = sadd.s32 %s76, 1
      %p80 = scmp.eq.s32.totalorder %s21, 1
      %p81 = scmp.ne.s32.totalorder %s76, %s78
      %p82 = scmp.eq.s32.totalorder %s21, 0
      %p83 = por %p81, %p82
      %p84 = scmp.ne.s32.totalorder %s76, %s78
      %p85 = scmp.eq.s32.totalorder %s26, 1
      %p86 = por %p84, %p85
      %p87 = scmp.ne.s32.totalorder %s78, %s79
      %p88 = scmp.eq.s32.totalorder %s26, 0
      %p89 = por %p87, %p88
      %p90 = scmp.ne.s32.totalorder %s78, %s79
      %p91 = scmp.eq.s32.totalorder %s27, 1
      %p92 = por %p90, %p91
      %p94 = scmp.ne.s32.totalorder %s79, %s93
      %p95 = scmp.eq.s32.totalorder %s27, 0
      %p96 = por %p94, %p95
      %s98 = sadd.s32 %s97, 1
      %p101 = scmp.eq.s32.totalorder %s21, 1
      %p102 = scmp.ne.s32.totalorder %s97, %s99
      %p103 = scmp.eq.s32.totalorder %s21, 0
      %p104 = por %p102, %p103
      %p105 = scmp.ne.s32.totalorder %s97, %s99
      %p106 = scmp.eq.s32.totalorder %s26, 1
      %p107 = por %p105, %p106
      %p108 = scmp.ne.s32.totalorder %s99, %s100
      %p109 = scmp.eq.s32.totalorder %s26, 0
      %p110 = por %p108, %p109
      %p111 = scmp.ne.s32.totalorder %s99, %s100
      %p112 = scmp.eq.s32.totalorder %s27, 1
      %p113 = por %p111, %p112
      %p115 = scmp.ne.s32.totalorder %s100, %s114
      %p116 = scmp.eq.s32.totalorder %s27, 0
      %p117 = por %p115, %p116
      %s119 = sadd.s32 %s118, 1
      %p122 = scmp.eq.s32.totalorder %s21, 1
      %p123 = scmp.ne.s32.totalorder %s118, %s120
      %p124 = scmp.eq.s32.totalorder %s21, 0
      %p125 = por %p123, %p124
      %p126 = scmp.ne.s32.totalorder %s118, %s120
      %p127 = scmp.eq.s32.totalorder %s26, 1
      %p128 = por %p126, %p127
      %p129 = scmp.ne.s32.totalorder %s120, %s121
      %p130 = scmp.eq.s32.totalorder %s26, 0
      %p131 = por %p129, %p130
      %p132 = scmp.ne.s32.totalorder %s120, %s121
      %p133 = scmp.eq.s32.totalorder %s27, 1
      %p134 = por %p132, %p133
      %p136 = scmp.ne.s32.totalorder %s121, %s135
      %p137 = scmp.eq.s32.totalorder %s27, 0
      %p138 = por %p136, %p137
      %s140 = sadd.s32 %s139, 1
      %p143 = scmp.eq.s32.totalorder %s21, 1
      %p144 = scmp.ne.s32.totalorder %s139, %s141
      %p145 = scmp.eq.s32.totalorder %s21, 0
      %p146 = por %p144, %p145
      %p147 = scmp.ne.s32.totalorder %s139, %s141
      %p148 = scmp.eq.s32.totalorder %s26, 1
      %p149 = por %p147, %p148
      %p150 = scmp.ne.s32.totalorder %s141, %s142
      %p151 = scmp.eq.s32.totalorder %s26, 0
      %p152 = por %p150, %p151
      %p153 = scmp.ne.s32.totalorder %s141, %s142
      %p154 = scmp.eq.s32.totalorder %s27, 1
      %p155 = por %p153, %p154
      %p157 = scmp.ne.s32.totalorder %s142, %s156
      %p158 = scmp.eq.s32.totalorder %s27, 0
      %p159 = por %p157, %p158
      %s161 = sadd.s32 %s160, 1
      %p164 = scmp.eq.s32.totalorder %s21, 1
      %p165 = scmp.ne.s32.totalorder %s160, %s162
      %p166 = scmp.eq.s32.totalorder %s21, 0
      %p167 = por %p165, %p166
      %p168 = scmp.ne.s32.totalorder %s160, %s162
      %p169 = scmp.eq.s32.totalorder %s26, 1
      %p170 = por %p168, %p169
      %p171 = scmp.ne.s32.totalorder %s162, %s163
      %p172 = scmp.eq.s32.totalorder %s26, 0
      %p173 = por %p171, %p172
      %p174 = scmp.ne.s32.totalorder %s162, %s163
      %p175 = scmp.eq.s32.totalorder %s27, 1
      %p176 = por %p174, %p175
      %p178 = scmp.ne.s32.totalorder %s163, %s177
      %p179 = scmp.eq.s32.totalorder %s27, 0
      %p180 = por %p178, %p179
      %s181 = ssub.s32 %s21, %s28
      %p182 = scmp.eq.s32.totalorder %s181, 0
      %s184 = sadd.s32 %s183, 1
      %s185 = scalar_select %p182, %s183, %s184
      %p188 = pneg %p182
      %p189 = scmp.eq.s32.totalorder %s21, 1
      %p190 = por %p188, %p189
      %p191 = scmp.ne.s32.totalorder %s183, %s186
      %p192 = scmp.eq.s32.totalorder %s21, 0
      %p193 = por %p191, %p192
      %p194 = scmp.ne.s32.totalorder %s183, %s186
      %p195 = scmp.eq.s32.totalorder %s26, 1
      %p196 = por %p194, %p195
      %p197 = scmp.ne.s32.totalorder %s186, %s187
      %p198 = scmp.eq.s32.totalorder %s26, 0
      %p199 = por %p197, %p198
      %p200 = scmp.ne.s32.totalorder %s186, %s187
      %p201 = scmp.eq.s32.totalorder %s27, 1
      %p202 = por %p200, %p201
      %p204 = scmp.ne.s32.totalorder %s187, %s203
      %p205 = scmp.eq.s32.totalorder %s27, 0
      %p206 = por %p204, %p205
      %p207 = scmp.le.s32.totalorder 1, %s21
      %p208 = scmp.lt.s32.totalorder %s21, 3
      %p209 = pnand %p207, %p208
      %p210 = pneg %p209
      // Predicated region
      $region9: #{tpu_custom_call.1} parent=5 // pred_check
        _
      $region10: #{tpu_custom_call.1} parent=5 // pred_check_branch
        %212 = sbr.rel (%p209) target = $region12
      $region11: #{tpu_custom_call.1} parent=5 // pred_region
        %s213 = ssub.s32 %s21, 1
        // Predicated region
        $region13: #{tpu_custom_call.1} parent=11 // pred_check
          %p214 = pneg %p68
        $region14: #{tpu_custom_call.1} parent=11 // pred_check_branch
          %216 = sbr.rel (%p214) target = $region16
        $region15: #{tpu_custom_call.1} parent=11 // pred_region
          %s218 = ssub.s32 8192, 8192
          %219 = vsyncadd [#allocation7], %s218
          %s220 = sshll.u32 [#allocation6], 4
          %s221 = int_to_ptr.vmem [resolvable:$true] %s220
          %226 = dma.hbm_to_vmem [thread:$0]  %s1, 8192, %s221, [#allocation7], 128, 128, 8
        $region16: #{tpu_custom_call.1} parent=11 // pred_fallthru
          _
        // Predicated region
        $region17: #{tpu_custom_call.1} parent=11 // pred_check
          %p227 = pneg %p89
        $region18: #{tpu_custom_call.1} parent=11 // pred_check_branch
          %229 = sbr.rel (%p227) target = $region20
        $region19: #{tpu_custom_call.1} parent=11 // pred_region
          _
        $region20: #{tpu_custom_call.1} parent=11 // pred_fallthru
          _
        // Predicated region
        $region21: #{tpu_custom_call.1} parent=11 // pred_check
          %p230 = pneg %p110
        $region22: #{tpu_custom_call.1} parent=11 // pred_check_branch
          %232 = sbr.rel (%p230) target = $region24
        $region23: #{tpu_custom_call.1} parent=11 // pred_region
          %s234 = ssub.s32 18432, 18432
          %235 = vsyncadd [#allocation7], %s234
          %s236 = sshll.u32 [#allocation8], 4
          %s237 = int_to_ptr.vmem [resolvable:$true] %s236
          %242 = dma.hbm_to_vmem [thread:$0]  %s3, 18432, %s237, [#allocation7], 128, 128, 8
        $region24: #{tpu_custom_call.1} parent=11 // pred_fallthru
          _
        // Predicated region
        $region25: #{tpu_custom_call.1} parent=11 // pred_check
          %p243 = pneg %p131
        $region26: #{tpu_custom_call.1} parent=11 // pred_check_branch
          %245 = sbr.rel (%p243) target = $region28
        $region27: #{tpu_custom_call.1} parent=11 // pred_region
          _
        $region28: #{tpu_custom_call.1} parent=11 // pred_fallthru
          _
        // Predicated region
        $region29: #{tpu_custom_call.1} parent=11 // pred_check
          %p246 = pneg %p152
        $region30: #{tpu_custom_call.1} parent=11 // pred_check_branch
          %248 = sbr.rel (%p246) target = $region32
        $region31: #{tpu_custom_call.1} parent=11 // pred_region
          %s250 = ssub.s32 8192, 8192
          %251 = vsyncadd [#allocation10], %s250
          %s252 = sshll.u32 [#allocation9], 4
          %s253 = int_to_ptr.vmem [resolvable:$true] %s252
          %258 = dma.hbm_to_vmem [thread:$0]  %s5, 8192, %s253, [#allocation10], 512, 512, 32
        $region32: #{tpu_custom_call.1} parent=11 // pred_fallthru
          _
        // Predicated region
        $region33: #{tpu_custom_call.1} parent=11 // pred_check
          %p259 = pneg %p173
        $region34: #{tpu_custom_call.1} parent=11 // pred_check_branch
          %261 = sbr.rel (%p259) target = $region36
        $region35: #{tpu_custom_call.1} parent=11 // pred_region
          _
        $region36: #{tpu_custom_call.1} parent=11 // pred_fallthru
          _
      $region12: #{tpu_custom_call.1} parent=5 // pred_fallthru
        _
      %p262 = scmp.lt.s32.totalorder %s21, 2
      // Predicated region
      $region37: #{tpu_custom_call.1} parent=5 // pred_check
        %p263 = pneg %p262
      $region38: #{tpu_custom_call.1} parent=5 // pred_check_branch
        %265 = sbr.rel (%p263) target = $region40
      $region39: #{tpu_custom_call.1} parent=5 // pred_region
        // Predicated region
        $region41: #{tpu_custom_call.1} parent=39 // pred_check
          %p266 = pneg %p41
        $region42: #{tpu_custom_call.1} parent=39 // pred_check_branch
          %268 = sbr.rel (%p266) target = $region44
        $region43: #{tpu_custom_call.1} parent=39 // pred_region
          %s269 = sand.u32 %s31, 1
          %s270 = scalar_lea.sflag [#allocation4], %s269
          %s271 = sand.u32 %s31, 1
          %s272 = smul.addr %s271, 1024
          %s273 = scalar_lea.vmem [#allocation3], %s272
          %s275 = ssub.s32 16384, 16384
          %276 = vsyncadd %s270, %s275
          %s277 = smul.addr %s21, 128
          %s278 = smul.addr %s277, 128
          %s279 = scalar_lea.hbm %s0, %s278
          %s280 = sshll.u32 %s273, 4
          %s281 = int_to_ptr.vmem [resolvable:$true] %s280
          %286 = dma.hbm_to_vmem [thread:$0]  %s279, 16384, %s281, %s270, 512, 512, 32
        $region44: #{tpu_custom_call.1} parent=39 // pred_fallthru
          _
      $region40: #{tpu_custom_call.1} parent=5 // pred_fallthru
        _
      %p287 = scmp.le.s32.totalorder 1, %s21
      %p288 = scmp.lt.s32.totalorder %s21, 3
      %p289 = pnand %p287, %p288
      %p290 = pneg %p289
      // Predicated region
      $region45: #{tpu_custom_call.1} parent=5 // pred_check
        _
      $region46: #{tpu_custom_call.1} parent=5 // pred_check_branch
        %292 = sbr.rel (%p289) target = $region48
      $region47: #{tpu_custom_call.1} parent=5 // pred_region
        %s293 = ssub.s32 %s21, 1
        %s294 = sand.u32 %s34, 1
        %s295 = scalar_lea.sflag [#allocation4], %s294
        %s296 = sand.u32 %s34, 1
        %s297 = smul.addr %s296, 1024
        %s298 = scalar_lea.vmem [#allocation3], %s297
        // Predicated region
        $region49: #{tpu_custom_call.1} parent=47 // pred_check
          %p299 = pneg %p47
        $region50: #{tpu_custom_call.1} parent=47 // pred_check_branch
          %301 = sbr.rel (%p299) target = $region52
        $region51: #{tpu_custom_call.1} parent=47 // pred_region
          %302 = dma.done %s295, 16384
        $region52: #{tpu_custom_call.1} parent=47 // pred_fallthru
          _
        // Predicated region
        $region53: #{tpu_custom_call.1} parent=47 // pred_check
          %p303 = pneg %p68
        $region54: #{tpu_custom_call.1} parent=47 // pred_check_branch
          %305 = sbr.rel (%p303) target = $region56
        $region55: #{tpu_custom_call.1} parent=47 // pred_region
          %306 = dma.done [#allocation7], 8192
        $region56: #{tpu_custom_call.1} parent=47 // pred_fallthru
          _
        // Predicated region
        $region57: #{tpu_custom_call.1} parent=47 // pred_check
          %p307 = pneg %p110
        $region58: #{tpu_custom_call.1} parent=47 // pred_check_branch
          %309 = sbr.rel (%p307) target = $region60
        $region59: #{tpu_custom_call.1} parent=47 // pred_region
          %310 = dma.done [#allocation7], 18432
        $region60: #{tpu_custom_call.1} parent=47 // pred_fallthru
          _
        // Predicated region
        $region61: #{tpu_custom_call.1} parent=47 // pred_check
          %p311 = pneg %p152
        $region62: #{tpu_custom_call.1} parent=47 // pred_check_branch
          %313 = sbr.rel (%p311) target = $region64
        $region63: #{tpu_custom_call.1} parent=47 // pred_region
          %314 = dma.done [#allocation10], 8192
        $region64: #{tpu_custom_call.1} parent=47 // pred_fallthru
          _
        %s315 = sand.u32 %s34, 1
        %s316 = scalar_lea.sflag [#allocation4], %s315
        %s317 = sand.u32 %s34, 1
        %s318 = smul.addr %s317, 1024
        %s319 = scalar_lea.vmem [#allocation3], %s318
        %p320 = pneg %p47
        %p321 = pneg %p44
        %p322 = pneg %p68
        %p323 = pneg %p65
        %p324 = pneg %p89
        %p325 = pneg %p86
        %p326 = pneg %p110
        %p327 = pneg %p107
        %p328 = pneg %p131
        %p329 = pneg %p128
        %p330 = pneg %p152
        %p331 = pneg %p149
        %p332 = pneg %p173
        %p333 = pneg %p170
        %p334 = pneg %p199
        %p335 = pneg %p196
        %s336 = sand.u32 %s186, 1
        %s337 = scalar_lea.sflag [#allocation5], %s336
        %s338 = sand.u32 %s186, 1
        %s339 = smul.addr %s338, 1024
        %s340 = scalar_lea.vmem [#allocation11], %s339
        %v341 = vld [vmem:[%s298] sm:$0xff]
        %v342 = vld [vmem:[%s298 + $0x8] sm:$0xff]
        %v343 = vld [vmem:[%s298 + $0x10] sm:$0xff]
        %v344 = vld [vmem:[%s298 + $0x18] sm:$0xff]
        %v345 = vld [vmem:[%s298 + $0x20] sm:$0xff]
        %v346 = vld [vmem:[%s298 + $0x28] sm:$0xff]
        %v347 = vld [vmem:[%s298 + $0x30] sm:$0xff]
        %v348 = vld [vmem:[%s298 + $0x38] sm:$0xff]
        %v349 = vld [vmem:[%s298 + $0x40] sm:$0xff]
        %v350 = vld [vmem:[%s298 + $0x48] sm:$0xff]
        %v351 = vld [vmem:[%s298 + $0x50] sm:$0xff]
        %v352 = vld [vmem:[%s298 + $0x58] sm:$0xff]
        %v353 = vld [vmem:[%s298 + $0x60] sm:$0xff]
        %v354 = vld [vmem:[%s298 + $0x68] sm:$0xff]
        %v355 = vld [vmem:[%s298 + $0x70] sm:$0xff]
        %v356 = vld [vmem:[%s298 + $0x78] sm:$0xff]
        %v357 = vld [vmem:[%s298 + $0x80] sm:$0xff]
        %v358 = vld [vmem:[%s298 + $0x88] sm:$0xff]
        %v359 = vld [vmem:[%s298 + $0x90] sm:$0xff]
        %v360 = vld [vmem:[%s298 + $0x98] sm:$0xff]
        %v361 = vld [vmem:[%s298 + $0xa0] sm:$0xff]
        %v362 = vld [vmem:[%s298 + $0xa8] sm:$0xff]
        %v363 = vld [vmem:[%s298 + $0xb0] sm:$0xff]
        %v364 = vld [vmem:[%s298 + $0xb8] sm:$0xff]
        %v365 = vld [vmem:[%s298 + $0xc0] sm:$0xff]
        %v366 = vld [vmem:[%s298 + $0xc8] sm:$0xff]
        %v367 = vld [vmem:[%s298 + $0xd0] sm:$0xff]
        %v368 = vld [vmem:[%s298 + $0xd8] sm:$0xff]
        %v369 = vld [vmem:[%s298 + $0xe0] sm:$0xff]
        %v370 = vld [vmem:[%s298 + $0xe8] sm:$0xff]
        %v371 = vld [vmem:[%s298 + $0xf0] sm:$0xff]
        %v372 = vld [vmem:[%s298 + $0xf8] sm:$0xff]
        %v373 = vld [vmem:[%s298 + $0x100] sm:$0xff]
        %v374 = vld [vmem:[%s298 + $0x108] sm:$0xff]
        %v375 = vld [vmem:[%s298 + $0x110] sm:$0xff]
        %v376 = vld [vmem:[%s298 + $0x118] sm:$0xff]
        %v377 = vld [vmem:[%s298 + $0x120] sm:$0xff]
        %v378 = vld [vmem:[%s298 + $0x128] sm:$0xff]
        %v379 = vld [vmem:[%s298 + $0x130] sm:$0xff]
        %v380 = vld [vmem:[%s298 + $0x138] sm:$0xff]
        %v381 = vld [vmem:[%s298 + $0x140] sm:$0xff]
        %v382 = vld [vmem:[%s298 + $0x148] sm:$0xff]
        %v383 = vld [vmem:[%s298 + $0x150] sm:$0xff]
        %v384 = vld [vmem:[%s298 + $0x158] sm:$0xff]
        %v385 = vld [vmem:[%s298 + $0x160] sm:$0xff]
        %v386 = vld [vmem:[%s298 + $0x168] sm:$0xff]
        %v387 = vld [vmem:[%s298 + $0x170] sm:$0xff]
        %v388 = vld [vmem:[%s298 + $0x178] sm:$0xff]
        %v389 = vld [vmem:[%s298 + $0x180] sm:$0xff]
        %v390 = vld [vmem:[%s298 + $0x188] sm:$0xff]
        %v391 = vld [vmem:[%s298 + $0x190] sm:$0xff]
        %v392 = vld [vmem:[%s298 + $0x198] sm:$0xff]
        %v393 = vld [vmem:[%s298 + $0x1a0] sm:$0xff]
        %v394 = vld [vmem:[%s298 + $0x1a8] sm:$0xff]
        %v395 = vld [vmem:[%s298 + $0x1b0] sm:$0xff]
        %v396 = vld [vmem:[%s298 + $0x1b8] sm:$0xff]
        %v397 = vld [vmem:[%s298 + $0x1c0] sm:$0xff]
        %v398 = vld [vmem:[%s298 + $0x1c8] sm:$0xff]
        %v399 = vld [vmem:[%s298 + $0x1d0] sm:$0xff]
        %v400 = vld [vmem:[%s298 + $0x1d8] sm:$0xff]
        %v401 = vld [vmem:[%s298 + $0x1e0] sm:$0xff]
        %v402 = vld [vmem:[%s298 + $0x1e8] sm:$0xff]
        %v403 = vld [vmem:[%s298 + $0x1f0] sm:$0xff]
        %v404 = vld [vmem:[%s298 + $0x1f8] sm:$0xff]
        %v405 = vld [vmem:[%s298 + $0x200] sm:$0xff]
        %v406 = vld [vmem:[%s298 + $0x208] sm:$0xff]
        %v407 = vld [vmem:[%s298 + $0x210] sm:$0xff]
        %v408 = vld [vmem:[%s298 + $0x218] sm:$0xff]
        %v409 = vld [vmem:[%s298 + $0x220] sm:$0xff]
        %v410 = vld [vmem:[%s298 + $0x228] sm:$0xff]
        %v411 = vld [vmem:[%s298 + $0x230] sm:$0xff]
        %v412 = vld [vmem:[%s298 + $0x238] sm:$0xff]
        %v413 = vld [vmem:[%s298 + $0x240] sm:$0xff]
        %v414 = vld [vmem:[%s298 + $0x248] sm:$0xff]
        %v415 = vld [vmem:[%s298 + $0x250] sm:$0xff]
        %v416 = vld [vmem:[%s298 + $0x258] sm:$0xff]
        %v417 = vld [vmem:[%s298 + $0x260] sm:$0xff]
        %v418 = vld [vmem:[%s298 + $0x268] sm:$0xff]
        %v419 = vld [vmem:[%s298 + $0x270] sm:$0xff]
        %v420 = vld [vmem:[%s298 + $0x278] sm:$0xff]
        %v421 = vld [vmem:[%s298 + $0x280] sm:$0xff]
        %v422 = vld [vmem:[%s298 + $0x288] sm:$0xff]
        %v423 = vld [vmem:[%s298 + $0x290] sm:$0xff]
        %v424 = vld [vmem:[%s298 + $0x298] sm:$0xff]
        %v425 = vld [vmem:[%s298 + $0x2a0] sm:$0xff]
        %v426 = vld [vmem:[%s298 + $0x2a8] sm:$0xff]
        %v427 = vld [vmem:[%s298 + $0x2b0] sm:$0xff]
        %v428 = vld [vmem:[%s298 + $0x2b8] sm:$0xff]
        %v429 = vld [vmem:[%s298 + $0x2c0] sm:$0xff]
        %v430 = vld [vmem:[%s298 + $0x2c8] sm:$0xff]
        %v431 = vld [vmem:[%s298 + $0x2d0] sm:$0xff]
        %v432 = vld [vmem:[%s298 + $0x2d8] sm:$0xff]
        %v433 = vld [vmem:[%s298 + $0x2e0] sm:$0xff]
        %v434 = vld [vmem:[%s298 + $0x2e8] sm:$0xff]
        %v435 = vld [vmem:[%s298 + $0x2f0] sm:$0xff]
        %v436 = vld [vmem:[%s298 + $0x2f8] sm:$0xff]
        %v437 = vld [vmem:[%s298 + $0x300] sm:$0xff]
        %v438 = vld [vmem:[%s298 + $0x308] sm:$0xff]
        %v439 = vld [vmem:[%s298 + $0x310] sm:$0xff]
        %v440 = vld [vmem:[%s298 + $0x318] sm:$0xff]
        %v441 = vld [vmem:[%s298 + $0x320] sm:$0xff]
        %v442 = vld [vmem:[%s298 + $0x328] sm:$0xff]
        %v443 = vld [vmem:[%s298 + $0x330] sm:$0xff]
        %v444 = vld [vmem:[%s298 + $0x338] sm:$0xff]
        %v445 = vld [vmem:[%s298 + $0x340] sm:$0xff]
        %v446 = vld [vmem:[%s298 + $0x348] sm:$0xff]
        %v447 = vld [vmem:[%s298 + $0x350] sm:$0xff]
        %v448 = vld [vmem:[%s298 + $0x358] sm:$0xff]
        %v449 = vld [vmem:[%s298 + $0x360] sm:$0xff]
        %v450 = vld [vmem:[%s298 + $0x368] sm:$0xff]
        %v451 = vld [vmem:[%s298 + $0x370] sm:$0xff]
        %v452 = vld [vmem:[%s298 + $0x378] sm:$0xff]
        %v453 = vld [vmem:[%s298 + $0x380] sm:$0xff]
        %v454 = vld [vmem:[%s298 + $0x388] sm:$0xff]
        %v455 = vld [vmem:[%s298 + $0x390] sm:$0xff]
        %v456 = vld [vmem:[%s298 + $0x398] sm:$0xff]
        %v457 = vld [vmem:[%s298 + $0x3a0] sm:$0xff]
        %v458 = vld [vmem:[%s298 + $0x3a8] sm:$0xff]
        %v459 = vld [vmem:[%s298 + $0x3b0] sm:$0xff]
        %v460 = vld [vmem:[%s298 + $0x3b8] sm:$0xff]
        %v461 = vld [vmem:[%s298 + $0x3c0] sm:$0xff]
        %v462 = vld [vmem:[%s298 + $0x3c8] sm:$0xff]
        %v463 = vld [vmem:[%s298 + $0x3d0] sm:$0xff]
        %v464 = vld [vmem:[%s298 + $0x3d8] sm:$0xff]
        %v465 = vld [vmem:[%s298 + $0x3e0] sm:$0xff]
        %v466 = vld [vmem:[%s298 + $0x3e8] sm:$0xff]
        %v467 = vld [vmem:[%s298 + $0x3f0] sm:$0xff]
        %v468 = vld [vmem:[%s298 + $0x3f8] sm:$0xff]
        %v469 = vld [vmem:[#allocation6] sm:$0xff]
        %v470 = vld [vmem:[#allocation6 + $0x8] sm:$0xff]
        %v471 = vld [vmem:[#allocation6 + $0x10] sm:$0xff]
        %v472 = vld [vmem:[#allocation6 + $0x18] sm:$0xff]
        %v473 = vld [vmem:[#allocation6 + $0x20] sm:$0xff]
        %v474 = vld [vmem:[#allocation6 + $0x28] sm:$0xff]
        %v475 = vld [vmem:[#allocation6 + $0x30] sm:$0xff]
        %v476 = vld [vmem:[#allocation6 + $0x38] sm:$0xff]
        %v477 = vld [vmem:[#allocation6 + $0x40] sm:$0xff]
        %v478 = vld [vmem:[#allocation6 + $0x48] sm:$0xff]
        %v479 = vld [vmem:[#allocation6 + $0x50] sm:$0xff]
        %v480 = vld [vmem:[#allocation6 + $0x58] sm:$0xff]
        %v481 = vld [vmem:[#allocation6 + $0x60] sm:$0xff]
        %v482 = vld [vmem:[#allocation6 + $0x68] sm:$0xff]
        %v483 = vld [vmem:[#allocation6 + $0x70] sm:$0xff]
        %v484 = vld [vmem:[#allocation6 + $0x78] sm:$0xff]
        %v485 = vld [vmem:[#allocation6 + $0x80] sm:$0xff]
        %v486 = vld [vmem:[#allocation6 + $0x88] sm:$0xff]
        %v487 = vld [vmem:[#allocation6 + $0x90] sm:$0xff]
        %v488 = vld [vmem:[#allocation6 + $0x98] sm:$0xff]
        %v489 = vld [vmem:[#allocation6 + $0xa0] sm:$0xff]
        %v490 = vld [vmem:[#allocation6 + $0xa8] sm:$0xff]
        %v491 = vld [vmem:[#allocation6 + $0xb0] sm:$0xff]
        %v492 = vld [vmem:[#allocation6 + $0xb8] sm:$0xff]
        %v493 = vld [vmem:[#allocation6 + $0xc0] sm:$0xff]
        %v494 = vld [vmem:[#allocation6 + $0xc8] sm:$0xff]
        %v495 = vld [vmem:[#allocation6 + $0xd0] sm:$0xff]
        %v496 = vld [vmem:[#allocation6 + $0xd8] sm:$0xff]
        %v497 = vld [vmem:[#allocation6 + $0xe0] sm:$0xff]
        %v498 = vld [vmem:[#allocation6 + $0xe8] sm:$0xff]
        %v499 = vld [vmem:[#allocation6 + $0xf0] sm:$0xff]
        %v500 = vld [vmem:[#allocation6 + $0xf8] sm:$0xff]
        %v501 = vld [vmem:[#allocation6 + $0x100] sm:$0xff]
        %v502 = vld [vmem:[#allocation6 + $0x108] sm:$0xff]
        %v503 = vld [vmem:[#allocation6 + $0x110] sm:$0xff]
        %v504 = vld [vmem:[#allocation6 + $0x118] sm:$0xff]
        %v505 = vld [vmem:[#allocation6 + $0x120] sm:$0xff]
        %v506 = vld [vmem:[#allocation6 + $0x128] sm:$0xff]
        %v507 = vld [vmem:[#allocation6 + $0x130] sm:$0xff]
        %v508 = vld [vmem:[#allocation6 + $0x138] sm:$0xff]
        %v509 = vld [vmem:[#allocation6 + $0x140] sm:$0xff]
        %v510 = vld [vmem:[#allocation6 + $0x148] sm:$0xff]
        %v511 = vld [vmem:[#allocation6 + $0x150] sm:$0xff]
        %v512 = vld [vmem:[#allocation6 + $0x158] sm:$0xff]
        %v513 = vld [vmem:[#allocation6 + $0x160] sm:$0xff]
        %v514 = vld [vmem:[#allocation6 + $0x168] sm:$0xff]
        %v515 = vld [vmem:[#allocation6 + $0x170] sm:$0xff]
        %v516 = vld [vmem:[#allocation6 + $0x178] sm:$0xff]
        %v517 = vld [vmem:[#allocation6 + $0x180] sm:$0xff]
        %v518 = vld [vmem:[#allocation6 + $0x188] sm:$0xff]
        %v519 = vld [vmem:[#allocation6 + $0x190] sm:$0xff]
        %v520 = vld [vmem:[#allocation6 + $0x198] sm:$0xff]
        %v521 = vld [vmem:[#allocation6 + $0x1a0] sm:$0xff]
        %v522 = vld [vmem:[#allocation6 + $0x1a8] sm:$0xff]
        %v523 = vld [vmem:[#allocation6 + $0x1b0] sm:$0xff]
        %v524 = vld [vmem:[#allocation6 + $0x1b8] sm:$0xff]
        %v525 = vld [vmem:[#allocation6 + $0x1c0] sm:$0xff]
        %v526 = vld [vmem:[#allocation6 + $0x1c8] sm:$0xff]
        %v527 = vld [vmem:[#allocation6 + $0x1d0] sm:$0xff]
        %v528 = vld [vmem:[#allocation6 + $0x1d8] sm:$0xff]
        %v529 = vld [vmem:[#allocation6 + $0x1e0] sm:$0xff]
        %v530 = vld [vmem:[#allocation6 + $0x1e8] sm:$0xff]
        %v531 = vld [vmem:[#allocation6 + $0x1f0] sm:$0xff]
        %v532 = vld [vmem:[#allocation6 + $0x1f8] sm:$0xff]
        %v533 = vld [vmem:[%s2] sm:$0x1]
        %v535 = vlaneseq
        %v536 = vshrl.u32 %v535, 7
        %v537 = vsub.s32 0, %v536
        %v538 = vrot.slane %v533, %v537
        %540 = vmatprep.subr.mxu0 0.0
        %541 = vmatpush1.msra.mxu0 %v469
        %542 = vmatprep.subr.mxu0 0.0
        %543 = vmatpush1.msra.mxu0 %v470
        %544 = vmatprep.subr.mxu0 0.0
        %545 = vmatpush1.msra.mxu0 %v471
        %546 = vmatprep.subr.mxu0 0.0
        %547 = vmatpush1.msra.mxu0 %v472
        %548 = vmatprep.subr.mxu0 0.0
        %549 = vmatpush1.msra.mxu0 %v473
        %550 = vmatprep.subr.mxu0 0.0
        %551 = vmatpush1.msra.mxu0 %v474
        %552 = vmatprep.subr.mxu0 0.0
        %553 = vmatpush1.msra.mxu0 %v475
        %554 = vmatprep.subr.mxu0 0.0
        %555 = vmatpush1.msra.mxu0 %v476
        %556 = vmatprep.subr.mxu0 0.0
        %557 = vmatpush1.msra.mxu0 %v477
        %558 = vmatprep.subr.mxu0 0.0
        %559 = vmatpush1.msra.mxu0 %v478
        %560 = vmatprep.subr.mxu0 0.0
        %561 = vmatpush1.msra.mxu0 %v479
        %562 = vmatprep.subr.mxu0 0.0
        %563 = vmatpush1.msra.mxu0 %v480
        %564 = vmatprep.subr.mxu0 0.0
        %565 = vmatpush1.msra.mxu0 %v481
        %566 = vmatprep.subr.mxu0 0.0
        %567 = vmatpush1.msra.mxu0 %v482
        %568 = vmatprep.subr.mxu0 0.0
        %569 = vmatpush1.msra.mxu0 %v483
        %570 = vmatprep.subr.mxu0 0.0
        %571 = vmatpush1.msra.mxu0 %v484
        %572 = vmatprep.subr.mxu0 0.0
        %573 = vmatpush1.msra.mxu0 %v485
        %574 = vmatprep.subr.mxu0 0.0
        %575 = vmatpush1.msra.mxu0 %v486
        %576 = vmatprep.subr.mxu0 0.0
        %577 = vmatpush1.msra.mxu0 %v487
        %578 = vmatprep.subr.mxu0 0.0
        %579 = vmatpush1.msra.mxu0 %v488
        %580 = vmatprep.subr.mxu0 0.0
        %581 = vmatpush1.msra.mxu0 %v489
        %582 = vmatprep.subr.mxu0 0.0
        %583 = vmatpush1.msra.mxu0 %v490
        %584 = vmatprep.subr.mxu0 0.0
        %585 = vmatpush1.msra.mxu0 %v491
        %586 = vmatprep.subr.mxu0 0.0
        %587 = vmatpush1.msra.mxu0 %v492
        %588 = vmatprep.subr.mxu0 0.0
        %589 = vmatpush1.msra.mxu0 %v493
        %590 = vmatprep.subr.mxu0 0.0
        %591 = vmatpush1.msra.mxu0 %v494
        %592 = vmatprep.subr.mxu0 0.0
        %593 = vmatpush1.msra.mxu0 %v495
        %594 = vmatprep.subr.mxu0 0.0
        %595 = vmatpush1.msra.mxu0 %v496
        %596 = vmatprep.subr.mxu0 0.0
        %597 = vmatpush1.msra.mxu0 %v497
        %598 = vmatprep.subr.mxu0 0.0
        %599 = vmatpush1.msra.mxu0 %v498
        %600 = vmatprep.subr.mxu0 0.0
        %601 = vmatpush1.msra.mxu0 %v499
        %602 = vmatprep.subr.mxu0 0.0
        %603 = vmatpush1.msra.mxu0 %v500
        %604 = vmatprep.mubr.f32.mxu0 %v342
        %605 = vmatmul.mubr.f32.gmra.mrb[0].mxu0 %v341
        %v606 = vpop.f32.mrb[0].mxu0
        %v607 = vadd.f32 %v538, %v606
        %v608 = vpop.f32.mrb[0].mxu0
        %609 = vmatprep.mubr.f32.mxu0 %v346
        %610 = vmatmul.mubr.f32.gmra.mrb[0].mxu0 %v345
        %v611 = vpop.f32.mrb[0].mxu0
        %v612 = vadd.f32 %v538, %v611
        %v613 = vpop.f32.mrb[0].mxu0
        %614 = vmatprep.mubr.f32.mxu0 %v350
        %615 = vmatmul.mubr.f32.gmra.mrb[0].mxu0 %v349
        %v616 = vpop.f32.mrb[0].mxu0
        %v617 = vadd.f32 %v538, %v616
        %v618 = vpop.f32.mrb[0].mxu0
        %619 = vmatprep.mubr.f32.mxu0 %v354
        %620 = vmatmul.mubr.f32.gmra.mrb[0].mxu0 %v353
        %v621 = vpop.f32.mrb[0].mxu0
        %v622 = vadd.f32 %v538, %v621
        %v623 = vpop.f32.mrb[0].mxu0
        %624 = vmatprep.mubr.f32.mxu0 %v358
        %625 = vmatmul.mubr.f32.gmra.mrb[0].mxu0 %v357
        %v626 = vpop.f32.mrb[0].mxu0
        %v627 = vadd.f32 %v538, %v626
        %v628 = vpop.f32.mrb[0].mxu0
        %629 = vmatprep.mubr.f32.mxu0 %v362
        %630 = vmatmul.mubr.f32.gmra.mrb[0].mxu0 %v361
        %v631 = vpop.f32.mrb[0].mxu0
        %v632 = vadd.f32 %v538, %v631
        %v633 = vpop.f32.mrb[0].mxu0
        %634 = vmatprep.mubr.f32.mxu0 %v366
        %635 = vmatmul.mubr.f32.gmra.mrb[0].mxu0 %v365
        %v636 = vpop.f32.mrb[0].mxu0
        %v637 = vadd.f32 %v538, %v636
        %v638 = vpop.f32.mrb[0].mxu0
        %639 = vmatprep.mubr.f32.mxu0 %v370
        %640 = vmatmul.mubr.f32.gmra.mrb[0].mxu0 %v369
        %v641 = vpop.f32.mrb[0].mxu0
        %v642 = vadd.f32 %v538, %v641
        %v643 = vpop.f32.mrb[0].mxu0
        %644 = vmatprep.mubr.f32.mxu0 %v374
        %645 = vmatmul.mubr.f32.gmra.mrb[0].mxu0 %v373
        %v646 = vpop.f32.mrb[0].mxu0
        %v647 = vadd.f32 %v538, %v646
        %v648 = vpop.f32.mrb[0].mxu0
        %649 = vmatprep.mubr.f32.mxu0 %v378
        %650 = vmatmul.mubr.f32.gmra.mrb[0].mxu0 %v377
        %v651 = vpop.f32.mrb[0].mxu0
        %v652 = vadd.f32 %v538, %v651
        %v653 = vpop.f32.mrb[0].mxu0
        %654 = vmatprep.mubr.f32.mxu0 %v382
        %655 = vmatmul.mubr.f32.gmra.mrb[0].mxu0 %v381
        %v656 = vpop.f32.mrb[0].mxu0
        %v657 = vadd.f32 %v538, %v656
        %v658 = vpop.f32.mrb[0].mxu0
        %659 = vmatprep.mubr.f32.mxu0 %v386
        %660 = vmatmul.mubr.f32.gmra.mrb[0].mxu0 %v385
        %v661 = vpop.f32.mrb[0].mxu0
        %v662 = vadd.f32 %v538, %v661
        %v663 = vpop.f32.mrb[0].mxu0
        %664 = vmatprep.mubr.f32.mxu0 %v390
        %665 = vmatmul.mubr.f32.gmra.mrb[0].mxu0 %v389
        %v666 = vpop.f32.mrb[0].mxu0
        %v667 = vadd.f32 %v538, %v666
        %v668 = vpop.f32.mrb[0].mxu0
        %669 = vmatprep.mubr.f32.mxu0 %v394
        %670 = vmatmul.mubr.f32.gmra.mrb[0].mxu0 %v393
        %v671 = vpop.f32.mrb[0].mxu0
        %v672 = vadd.f32 %v538, %v671
        %v673 = vpop.f32.mrb[0].mxu0
        %674 = vmatprep.mubr.f32.mxu0 %v398
        %675 = vmatmul.mubr.f32.gmra.mrb[0].mxu0 %v397
        %v676 = vpop.f32.mrb[0].mxu0
        %v677 = vadd.f32 %v538, %v676
        %v678 = vpop.f32.mrb[0].mxu0
        %679 = vmatprep.mubr.f32.mxu0 %v402
        %680 = vmatmul.mubr.f32.gmra.mrb[0].mxu0 %v401
        %v681 = vpop.f32.mrb[0].mxu0
        %v682 = vadd.f32 %v538, %v681
        %v683 = vpop.f32.mrb[0].mxu0
        %684 = vmatprep.mubr.f32.mxu0 %v406
        %685 = vmatmul.mubr.f32.gmra.mrb[0].mxu0 %v405
        %v686 = vpop.f32.mrb[0].mxu0
        %v687 = vadd.f32 %v538, %v686
        %v688 = vpop.f32.mrb[0].mxu0
        %689 = vmatprep.mubr.f32.mxu0 %v410
        %690 = vmatmul.mubr.f32.gmra.mrb[0].mxu0 %v409
        %v691 = vpop.f32.mrb[0].mxu0
        %v692 = vadd.f32 %v538, %v691
        %v693 = vpop.f32.mrb[0].mxu0
        %694 = vmatprep.mubr.f32.mxu0 %v414
        %695 = vmatmul.mubr.f32.gmra.mrb[0].mxu0 %v413
        %v696 = vpop.f32.mrb[0].mxu0
        %v697 = vadd.f32 %v538, %v696
        %v698 = vpop.f32.mrb[0].mxu0
        %699 = vmatprep.mubr.f32.mxu0 %v418
        %700 = vmatmul.mubr.f32.gmra.mrb[0].mxu0 %v417
        %v701 = vpop.f32.mrb[0].mxu0
        %v702 = vadd.f32 %v538, %v701
        %v703 = vpop.f32.mrb[0].mxu0
        %704 = vmatprep.mubr.f32.mxu0 %v422
        %705 = vmatmul.mubr.f32.gmra.mrb[0].mxu0 %v421
        %v706 = vpop.f32.mrb[0].mxu0
        %v707 = vadd.f32 %v538, %v706
        %v708 = vpop.f32.mrb[0].mxu0
        %709 = vmatprep.mubr.f32.mxu0 %v426
        %710 = vmatmul.mubr.f32.gmra.mrb[0].mxu0 %v425
        %v711 = vpop.f32.mrb[0].mxu0
        %v712 = vadd.f32 %v538, %v711
        %v713 = vpop.f32.mrb[0].mxu0
        %714 = vmatprep.mubr.f32.mxu0 %v430
        %715 = vmatmul.mubr.f32.gmra.mrb[0].mxu0 %v429
        %v716 = vpop.f32.mrb[0].mxu0
        %v717 = vadd.f32 %v538, %v716
        %v718 = vpop.f32.mrb[0].mxu0
        %719 = vmatprep.mubr.f32.mxu0 %v434
        %720 = vmatmul.mubr.f32.gmra.mrb[0].mxu0 %v433
        %v721 = vpop.f32.mrb[0].mxu0
        %v722 = vadd.f32 %v538, %v721
        %v723 = vpop.f32.mrb[0].mxu0
        %724 = vmatprep.mubr.f32.mxu0 %v438
        %725 = vmatmul.mubr.f32.gmra.mrb[0].mxu0 %v437
        %v726 = vpop.f32.mrb[0].mxu0
        %v727 = vadd.f32 %v538, %v726
        %v728 = vpop.f32.mrb[0].mxu0
        %729 = vmatprep.mubr.f32.mxu0 %v442
        %730 = vmatmul.mubr.f32.gmra.mrb[0].mxu0 %v441
        %v731 = vpop.f32.mrb[0].mxu0
        %v732 = vadd.f32 %v538, %v731
        %v733 = vpop.f32.mrb[0].mxu0
        %734 = vmatprep.mubr.f32.mxu0 %v446
        %735 = vmatmul.mubr.f32.gmra.mrb[0].mxu0 %v445
        %v736 = vpop.f32.mrb[0].mxu0
        %v737 = vadd.f32 %v538, %v736
        %v738 = vpop.f32.mrb[0].mxu0
        %739 = vmatprep.mubr.f32.mxu0 %v450
        %740 = vmatmul.mubr.f32.gmra.mrb[0].mxu0 %v449
        %v741 = vpop.f32.mrb[0].mxu0
        %v742 = vadd.f32 %v538, %v741
        %v743 = vpop.f32.mrb[0].mxu0
        %744 = vmatprep.mubr.f32.mxu0 %v454
        %745 = vmatmul.mubr.f32.gmra.mrb[0].mxu0 %v453
        %v746 = vpop.f32.mrb[0].mxu0
        %v747 = vadd.f32 %v538, %v746
        %v748 = vpop.f32.mrb[0].mxu0
        %749 = vmatprep.mubr.f32.mxu0 %v458
        %750 = vmatmul.mubr.f32.gmra.mrb[0].mxu0 %v457
        %v751 = vpop.f32.mrb[0].mxu0
        %v752 = vadd.f32 %v538, %v751
        %v753 = vpop.f32.mrb[0].mxu0
        %754 = vmatprep.mubr.f32.mxu0 %v462
        %755 = vmatmul.mubr.f32.gmra.mrb[0].mxu0 %v461
        %v756 = vpop.f32.mrb[0].mxu0
        %v757 = vadd.f32 %v538, %v756
        %v758 = vpop.f32.mrb[0].mxu0
        %759 = vmatprep.mubr.f32.mxu0 %v466
        %760 = vmatmul.mubr.f32.gmra.mrb[0].mxu0 %v465
        %v761 = vpop.f32.mrb[0].mxu0
        %v762 = vadd.f32 %v538, %v761
        %v763 = vpop.f32.mrb[0].mxu0
        %764 = vdwg.mxu0
        %765 = vmatprep.subr.mxu0 0.0
        %766 = vmatpush1.msra.mxu0 %v501
        %767 = vmatprep.subr.mxu0 0.0
        %768 = vmatpush1.msra.mxu0 %v502
        %769 = vmatprep.subr.mxu0 0.0
        %770 = vmatpush1.msra.mxu0 %v503
        %771 = vmatprep.subr.mxu0 0.0
        %772 = vmatpush1.msra.mxu0 %v504
        %773 = vmatprep.subr.mxu0 0.0
        %774 = vmatpush1.msra.mxu0 %v505
        %775 = vmatprep.subr.mxu0 0.0
        %776 = vmatpush1.msra.mxu0 %v506
        %777 = vmatprep.subr.mxu0 0.0
        %778 = vmatpush1.msra.mxu0 %v507
        %779 = vmatprep.subr.mxu0 0.0
        %780 = vmatpush1.msra.mxu0 %v508
        %781 = vmatprep.subr.mxu0 0.0
        %782 = vmatpush1.msra.mxu0 %v509
        %783 = vmatprep.subr.mxu0 0.0
        %784 = vmatpush1.msra.mxu0 %v510
        %785 = vmatprep.subr.mxu0 0.0
        %786 = vmatpush1.msra.mxu0 %v511
        %787 = vmatprep.subr.mxu0 0.0
        %788 = vmatpush1.msra.mxu0 %v512
        %789 = vmatprep.subr.mxu0 0.0
        %790 = vmatpush1.msra.mxu0 %v513
        %791 = vmatprep.subr.mxu0 0.0
        %792 = vmatpush1.msra.mxu0 %v514
        %793 = vmatprep.subr.mxu0 0.0
        %794 = vmatpush1.msra.mxu0 %v515
        %795 = vmatprep.subr.mxu0 0.0
        %796 = vmatpush1.msra.mxu0 %v516
        %797 = vmatprep.subr.mxu0 0.0
        %798 = vmatpush1.msra.mxu0 %v517
        %799 = vmatprep.subr.mxu0 0.0
        %800 = vmatpush1.msra.mxu0 %v518
        %801 = vmatprep.subr.mxu0 0.0
        %802 = vmatpush1.msra.mxu0 %v519
        %803 = vmatprep.subr.mxu0 0.0
        %804 = vmatpush1.msra.mxu0 %v520
        %805 = vmatprep.subr.mxu0 0.0
        %806 = vmatpush1.msra.mxu0 %v521
        %807 = vmatprep.subr.mxu0 0.0
        %808 = vmatpush1.msra.mxu0 %v522
        %809 = vmatprep.subr.mxu0 0.0
        %810 = vmatpush1.msra.mxu0 %v523
        %811 = vmatprep.subr.mxu0 0.0
        %812 = vmatpush1.msra.mxu0 %v524
        %813 = vmatprep.subr.mxu0 0.0
        %814 = vmatpush1.msra.mxu0 %v525
        %815 = vmatprep.subr.mxu0 0.0
        %816 = vmatpush1.msra.mxu0 %v526
        %817 = vmatprep.subr.mxu0 0.0
        %818 = vmatpush1.msra.mxu0 %v527
        %819 = vmatprep.subr.mxu0 0.0
        %820 = vmatpush1.msra.mxu0 %v528
        %821 = vmatprep.subr.mxu0 0.0
        %822 = vmatpush1.msra.mxu0 %v529
        %823 = vmatprep.subr.mxu0 0.0
        %824 = vmatpush1.msra.mxu0 %v530
        %825 = vmatprep.subr.mxu0 0.0
        %826 = vmatpush1.msra.mxu0 %v531
        %827 = vmatprep.subr.mxu0 0.0
        %828 = vmatpush1.msra.mxu0 %v532
        %829 = vmatprep.mubr.f32.mxu0 %v344
        %830 = vmatmul.mubr.f32.gmra.mrb[0].mxu0 %v343
        %v831 = vpop.f32.mrb[0].mxu0
        %v832 = vadd.f32 %v607, %v831
        %v833 = vpop.f32.mrb[0].mxu0
        %834 = vmatprep.mubr.f32.mxu0 %v348
        %835 = vmatmul.mubr.f32.gmra.mrb[0].mxu0 %v347
        %v836 = vpop.f32.mrb[0].mxu0
        %v837 = vadd.f32 %v612, %v836
        %v838 = vpop.f32.mrb[0].mxu0
        %839 = vmatprep.mubr.f32.mxu0 %v352
        %840 = vmatmul.mubr.f32.gmra.mrb[0].mxu0 %v351
        %v841 = vpop.f32.mrb[0].mxu0
        %v842 = vadd.f32 %v617, %v841
        %v843 = vpop.f32.mrb[0].mxu0
        %844 = vmatprep.mubr.f32.mxu0 %v356
        %845 = vmatmul.mubr.f32.gmra.mrb[0].mxu0 %v355
        %v846 = vpop.f32.mrb[0].mxu0
        %v847 = vadd.f32 %v622, %v846
        %v848 = vpop.f32.mrb[0].mxu0
        %849 = vmatprep.mubr.f32.mxu0 %v360
        %850 = vmatmul.mubr.f32.gmra.mrb[0].mxu0 %v359
        %v851 = vpop.f32.mrb[0].mxu0
        %v852 = vadd.f32 %v627, %v851
        %v853 = vpop.f32.mrb[0].mxu0
        %854 = vmatprep.mubr.f32.mxu0 %v364
        %855 = vmatmul.mubr.f32.gmra.mrb[0].mxu0 %v363
        %v856 = vpop.f32.mrb[0].mxu0
        %v857 = vadd.f32 %v632, %v856
        %v858 = vpop.f32.mrb[0].mxu0
        %859 = vmatprep.mubr.f32.mxu0 %v368
        %860 = vmatmul.mubr.f32.gmra.mrb[0].mxu0 %v367
        %v861 = vpop.f32.mrb[0].mxu0
        %v862 = vadd.f32 %v637, %v861
        %v863 = vpop.f32.mrb[0].mxu0
        %864 = vmatprep.mubr.f32.mxu0 %v372
        %865 = vmatmul.mubr.f32.gmra.mrb[0].mxu0 %v371
        %v866 = vpop.f32.mrb[0].mxu0
        %v867 = vadd.f32 %v642, %v866
        %v868 = vpop.f32.mrb[0].mxu0
        %869 = vmatprep.mubr.f32.mxu0 %v376
        %870 = vmatmul.mubr.f32.gmra.mrb[0].mxu0 %v375
        %v871 = vpop.f32.mrb[0].mxu0
        %v872 = vadd.f32 %v647, %v871
        %v873 = vpop.f32.mrb[0].mxu0
        %874 = vmatprep.mubr.f32.mxu0 %v380
        %875 = vmatmul.mubr.f32.gmra.mrb[0].mxu0 %v379
        %v876 = vpop.f32.mrb[0].mxu0
        %v877 = vadd.f32 %v652, %v876
        %v878 = vpop.f32.mrb[0].mxu0
        %879 = vmatprep.mubr.f32.mxu0 %v384
        %880 = vmatmul.mubr.f32.gmra.mrb[0].mxu0 %v383
        %v881 = vpop.f32.mrb[0].mxu0
        %v882 = vadd.f32 %v657, %v881
        %v883 = vpop.f32.mrb[0].mxu0
        %884 = vmatprep.mubr.f32.mxu0 %v388
        %885 = vmatmul.mubr.f32.gmra.mrb[0].mxu0 %v387
        %v886 = vpop.f32.mrb[0].mxu0
        %v887 = vadd.f32 %v662, %v886
        %v888 = vpop.f32.mrb[0].mxu0
        %889 = vmatprep.mubr.f32.mxu0 %v392
        %890 = vmatmul.mubr.f32.gmra.mrb[0].mxu0 %v391
        %v891 = vpop.f32.mrb[0].mxu0
        %v892 = vadd.f32 %v667, %v891
        %v893 = vpop.f32.mrb[0].mxu0
        %894 = vmatprep.mubr.f32.mxu0 %v396
        %895 = vmatmul.mubr.f32.gmra.mrb[0].mxu0 %v395
        %v896 = vpop.f32.mrb[0].mxu0
        %v897 = vadd.f32 %v672, %v896
        %v898 = vpop.f32.mrb[0].mxu0
        %899 = vmatprep.mubr.f32.mxu0 %v400
        %900 = vmatmul.mubr.f32.gmra.mrb[0].mxu0 %v399
        %v901 = vpop.f32.mrb[0].mxu0
        %v902 = vadd.f32 %v677, %v901
        %v903 = vpop.f32.mrb[0].mxu0
        %904 = vmatprep.mubr.f32.mxu0 %v404
        %905 = vmatmul.mubr.f32.gmra.mrb[0].mxu0 %v403
        %v906 = vpop.f32.mrb[0].mxu0
        %v907 = vadd.f32 %v682, %v906
        %v908 = vpop.f32.mrb[0].mxu0
        %909 = vmatprep.mubr.f32.mxu0 %v408
        %910 = vmatmul.mubr.f32.gmra.mrb[0].mxu0 %v407
        %v911 = vpop.f32.mrb[0].mxu0
        %v912 = vadd.f32 %v687, %v911
        %v913 = vpop.f32.mrb[0].mxu0
        %914 = vmatprep.mubr.f32.mxu0 %v412
        %915 = vmatmul.mubr.f32.gmra.mrb[0].mxu0 %v411
        %v916 = vpop.f32.mrb[0].mxu0
        %v917 = vadd.f32 %v692, %v916
        %v918 = vpop.f32.mrb[0].mxu0
        %919 = vmatprep.mubr.f32.mxu0 %v416
        %920 = vmatmul.mubr.f32.gmra.mrb[0].mxu0 %v415
        %v921 = vpop.f32.mrb[0].mxu0
        %v922 = vadd.f32 %v697, %v921
        %v923 = vpop.f32.mrb[0].mxu0
        %924 = vmatprep.mubr.f32.mxu0 %v420
        %925 = vmatmul.mubr.f32.gmra.mrb[0].mxu0 %v419
        %v926 = vpop.f32.mrb[0].mxu0
        %v927 = vadd.f32 %v702, %v926
        %v928 = vpop.f32.mrb[0].mxu0
        %929 = vmatprep.mubr.f32.mxu0 %v424
        %930 = vmatmul.mubr.f32.gmra.mrb[0].mxu0 %v423
        %v931 = vpop.f32.mrb[0].mxu0
        %v932 = vadd.f32 %v707, %v931
        %v933 = vpop.f32.mrb[0].mxu0
        %934 = vmatprep.mubr.f32.mxu0 %v428
        %935 = vmatmul.mubr.f32.gmra.mrb[0].mxu0 %v427
        %v936 = vpop.f32.mrb[0].mxu0
        %v937 = vadd.f32 %v712, %v936
        %v938 = vpop.f32.mrb[0].mxu0
        %939 = vmatprep.mubr.f32.mxu0 %v432
        %940 = vmatmul.mubr.f32.gmra.mrb[0].mxu0 %v431
        %v941 = vpop.f32.mrb[0].mxu0
        %v942 = vadd.f32 %v717, %v941
        %v943 = vpop.f32.mrb[0].mxu0
        %944 = vmatprep.mubr.f32.mxu0 %v436
        %945 = vmatmul.mubr.f32.gmra.mrb[0].mxu0 %v435
        %v946 = vpop.f32.mrb[0].mxu0
        %v947 = vadd.f32 %v722, %v946
        %v948 = vpop.f32.mrb[0].mxu0
        %949 = vmatprep.mubr.f32.mxu0 %v440
        %950 = vmatmul.mubr.f32.gmra.mrb[0].mxu0 %v439
        %v951 = vpop.f32.mrb[0].mxu0
        %v952 = vadd.f32 %v727, %v951
        %v953 = vpop.f32.mrb[0].mxu0
        %954 = vmatprep.mubr.f32.mxu0 %v444
        %955 = vmatmul.mubr.f32.gmra.mrb[0].mxu0 %v443
        %v956 = vpop.f32.mrb[0].mxu0
        %v957 = vadd.f32 %v732, %v956
        %v958 = vpop.f32.mrb[0].mxu0
        %959 = vmatprep.mubr.f32.mxu0 %v448
        %960 = vmatmul.mubr.f32.gmra.mrb[0].mxu0 %v447
        %v961 = vpop.f32.mrb[0].mxu0
        %v962 = vadd.f32 %v737, %v961
        %v963 = vpop.f32.mrb[0].mxu0
        %964 = vmatprep.mubr.f32.mxu0 %v452
        %965 = vmatmul.mubr.f32.gmra.mrb[0].mxu0 %v451
        %v966 = vpop.f32.mrb[0].mxu0
        %v967 = vadd.f32 %v742, %v966
        %v968 = vpop.f32.mrb[0].mxu0
        %969 = vmatprep.mubr.f32.mxu0 %v456
        %970 = vmatmul.mubr.f32.gmra.mrb[0].mxu0 %v455
        %v971 = vpop.f32.mrb[0].mxu0
        %v972 = vadd.f32 %v747, %v971
        %v973 = vpop.f32.mrb[0].mxu0
        %974 = vmatprep.mubr.f32.mxu0 %v460
        %975 = vmatmul.mubr.f32.gmra.mrb[0].mxu0 %v459
        %v976 = vpop.f32.mrb[0].mxu0
        %v977 = vadd.f32 %v752, %v976
        %v978 = vpop.f32.mrb[0].mxu0
        %979 = vmatprep.mubr.f32.mxu0 %v464
        %980 = vmatmul.mubr.f32.gmra.mrb[0].mxu0 %v463
        %v981 = vpop.f32.mrb[0].mxu0
        %v982 = vadd.f32 %v757, %v981
        %v983 = vpop.f32.mrb[0].mxu0
        %984 = vmatprep.mubr.f32.mxu0 %v468
        %985 = vmatmul.mubr.f32.gmra.mrb[0].mxu0 %v467
        %v986 = vpop.f32.mrb[0].mxu0
        %v987 = vadd.f32 %v762, %v986
        %v988 = vpop.f32.mrb[0].mxu0
        %989 = vdwg.mxu0
        %v990 = vmax.f32 %v832, 0.0
        %v991 = vmax.f32 %v837, 0.0
        %v992 = vmax.f32 %v842, 0.0
        %v993 = vmax.f32 %v847, 0.0
        %v994 = vmax.f32 %v852, 0.0
        %v995 = vmax.f32 %v857, 0.0
        %v996 = vmax.f32 %v862, 0.0
        %v997 = vmax.f32 %v867, 0.0
        %v998 = vmax.f32 %v872, 0.0
        %v999 = vmax.f32 %v877, 0.0
        %v1000 = vmax.f32 %v882, 0.0
        %v1001 = vmax.f32 %v887, 0.0
        %v1002 = vmax.f32 %v892, 0.0
        %v1003 = vmax.f32 %v897, 0.0
        %v1004 = vmax.f32 %v902, 0.0
        %v1005 = vmax.f32 %v907, 0.0
        %v1006 = vmax.f32 %v912, 0.0
        %v1007 = vmax.f32 %v917, 0.0
        %v1008 = vmax.f32 %v922, 0.0
        %v1009 = vmax.f32 %v927, 0.0
        %v1010 = vmax.f32 %v932, 0.0
        %v1011 = vmax.f32 %v937, 0.0
        %v1012 = vmax.f32 %v942, 0.0
        %v1013 = vmax.f32 %v947, 0.0
        %v1014 = vmax.f32 %v952, 0.0
        %v1015 = vmax.f32 %v957, 0.0
        %v1016 = vmax.f32 %v962, 0.0
        %v1017 = vmax.f32 %v967, 0.0
        %v1018 = vmax.f32 %v972, 0.0
        %v1019 = vmax.f32 %v977, 0.0
        %v1020 = vmax.f32 %v982, 0.0
        %v1021 = vmax.f32 %v987, 0.0
        %1022 = vst [vmem:[#allocation2] sm:$0xff] 0.0
        %1023 = vst [vmem:[#allocation2 + $0x8] sm:$0xff] 0.0
        %1024 = vst [vmem:[#allocation2 + $0x10] sm:$0xff] 0.0
        %1025 = vst [vmem:[#allocation2 + $0x18] sm:$0xff] 0.0
        %1026 = vst [vmem:[#allocation2 + $0x20] sm:$0xff] 0.0
        %1027 = vst [vmem:[#allocation2 + $0x28] sm:$0xff] 0.0
        %1028 = vst [vmem:[#allocation2 + $0x30] sm:$0xff] 0.0
        %1029 = vst [vmem:[#allocation2 + $0x38] sm:$0xff] 0.0
        %1030 = vst [vmem:[#allocation2 + $0x40] sm:$0xff] 0.0
        %1031 = vst [vmem:[#allocation2 + $0x48] sm:$0xff] 0.0
        %1032 = vst [vmem:[#allocation2 + $0x50] sm:$0xff] 0.0
        %1033 = vst [vmem:[#allocation2 + $0x58] sm:$0xff] 0.0
        %1034 = vst [vmem:[#allocation2 + $0x60] sm:$0xff] 0.0
        %1035 = vst [vmem:[#allocation2 + $0x68] sm:$0xff] 0.0
        %1036 = vst [vmem:[#allocation2 + $0x70] sm:$0xff] 0.0
        %1037 = vst [vmem:[#allocation2 + $0x78] sm:$0xff] 0.0
        %1038 = vst [vmem:[#allocation2 + $0x80] sm:$0xff] 0.0
        %1039 = vst [vmem:[#allocation2 + $0x88] sm:$0xff] 0.0
        %1040 = vst [vmem:[#allocation2 + $0x90] sm:$0xff] 0.0
        %1041 = vst [vmem:[#allocation2 + $0x98] sm:$0xff] 0.0
        %1042 = vst [vmem:[#allocation2 + $0xa0] sm:$0xff] 0.0
        %1043 = vst [vmem:[#allocation2 + $0xa8] sm:$0xff] 0.0
        %1044 = vst [vmem:[#allocation2 + $0xb0] sm:$0xff] 0.0
        %1045 = vst [vmem:[#allocation2 + $0xb8] sm:$0xff] 0.0
        %1046 = vst [vmem:[#allocation2 + $0xc0] sm:$0xff] 0.0
        %1047 = vst [vmem:[#allocation2 + $0xc8] sm:$0xff] 0.0
        %1048 = vst [vmem:[#allocation2 + $0xd0] sm:$0xff] 0.0
        %1049 = vst [vmem:[#allocation2 + $0xd8] sm:$0xff] 0.0
        %1050 = vst [vmem:[#allocation2 + $0xe0] sm:$0xff] 0.0
        %1051 = vst [vmem:[#allocation2 + $0xe8] sm:$0xff] 0.0
        %1052 = vst [vmem:[#allocation2 + $0xf0] sm:$0xff] 0.0
        %1053 = vst [vmem:[#allocation2 + $0xf8] sm:$0xff] 0.0
        %1054 = vst [vmem:[#allocation2 + $0x100] sm:$0xff] 0.0
        %1055 = vst [vmem:[#allocation2 + $0x108] sm:$0xff] 0.0
        %1056 = vst [vmem:[#allocation2 + $0x110] sm:$0xff] 0.0
        %1057 = vst [vmem:[#allocation2 + $0x118] sm:$0xff] 0.0
        %1058 = vst [vmem:[#allocation2 + $0x120] sm:$0xff] 0.0
        %1059 = vst [vmem:[#allocation2 + $0x128] sm:$0xff] 0.0
        %1060 = vst [vmem:[#allocation2 + $0x130] sm:$0xff] 0.0
        %1061 = vst [vmem:[#allocation2 + $0x138] sm:$0xff] 0.0
        %1062 = vst [vmem:[#allocation2 + $0x140] sm:$0xff] 0.0
        %1063 = vst [vmem:[#allocation2 + $0x148] sm:$0xff] 0.0
        %1064 = vst [vmem:[#allocation2 + $0x150] sm:$0xff] 0.0
        %1065 = vst [vmem:[#allocation2 + $0x158] sm:$0xff] 0.0
        %1066 = vst [vmem:[#allocation2 + $0x160] sm:$0xff] 0.0
        %1067 = vst [vmem:[#allocation2 + $0x168] sm:$0xff] 0.0
        %1068 = vst [vmem:[#allocation2 + $0x170] sm:$0xff] 0.0
        %1069 = vst [vmem:[#allocation2 + $0x178] sm:$0xff] 0.0
        %1070 = vst [vmem:[#allocation2 + $0x180] sm:$0xff] 0.0
        %1071 = vst [vmem:[#allocation2 + $0x188] sm:$0xff] 0.0
        %1072 = vst [vmem:[#allocation2 + $0x190] sm:$0xff] 0.0
        %1073 = vst [vmem:[#allocation2 + $0x198] sm:$0xff] 0.0
        %1074 = vst [vmem:[#allocation2 + $0x1a0] sm:$0xff] 0.0
        %1075 = vst [vmem:[#allocation2 + $0x1a8] sm:$0xff] 0.0
        %1076 = vst [vmem:[#allocation2 + $0x1b0] sm:$0xff] 0.0
        %1077 = vst [vmem:[#allocation2 + $0x1b8] sm:$0xff] 0.0
        %1078 = vst [vmem:[#allocation2 + $0x1c0] sm:$0xff] 0.0
        %1079 = vst [vmem:[#allocation2 + $0x1c8] sm:$0xff] 0.0
        %1080 = vst [vmem:[#allocation2 + $0x1d0] sm:$0xff] 0.0
        %1081 = vst [vmem:[#allocation2 + $0x1d8] sm:$0xff] 0.0
        %1082 = vst [vmem:[#allocation2 + $0x1e0] sm:$0xff] 0.0
        %1083 = vst [vmem:[#allocation2 + $0x1e8] sm:$0xff] 0.0
        %1084 = vst [vmem:[#allocation2 + $0x1f0] sm:$0xff] 0.0
        %1085 = vst [vmem:[#allocation2 + $0x1f8] sm:$0xff] 0.0
        %1086 = vst [vmem:[#allocation2 + $0x200] sm:$0xff] 0.0
        %1087 = vst [vmem:[#allocation2 + $0x208] sm:$0xff] 0.0
        %1088 = vst [vmem:[#allocation2 + $0x210] sm:$0xff] 0.0
        %1089 = vst [vmem:[#allocation2 + $0x218] sm:$0xff] 0.0
        %1090 = vst [vmem:[#allocation2 + $0x220] sm:$0xff] 0.0
        %1091 = vst [vmem:[#allocation2 + $0x228] sm:$0xff] 0.0
        %1092 = vst [vmem:[#allocation2 + $0x230] sm:$0xff] 0.0
        %1093 = vst [vmem:[#allocation2 + $0x238] sm:$0xff] 0.0
        %1094 = vst [vmem:[#allocation2 + $0x240] sm:$0xff] 0.0
        %1095 = vst [vmem:[#allocation2 + $0x248] sm:$0xff] 0.0
        %1096 = vst [vmem:[#allocation2 + $0x250] sm:$0xff] 0.0
        %1097 = vst [vmem:[#allocation2 + $0x258] sm:$0xff] 0.0
        %1098 = vst [vmem:[#allocation2 + $0x260] sm:$0xff] 0.0
        %1099 = vst [vmem:[#allocation2 + $0x268] sm:$0xff] 0.0
        %1100 = vst [vmem:[#allocation2 + $0x270] sm:$0xff] 0.0
        %1101 = vst [vmem:[#allocation2 + $0x278] sm:$0xff] 0.0
        %1102 = vst [vmem:[#allocation2 + $0x280] sm:$0xff] 0.0
        %1103 = vst [vmem:[#allocation2 + $0x288] sm:$0xff] 0.0
        %1104 = vst [vmem:[#allocation2 + $0x290] sm:$0xff] 0.0
        %1105 = vst [vmem:[#allocation2 + $0x298] sm:$0xff] 0.0
        %1106 = vst [vmem:[#allocation2 + $0x2a0] sm:$0xff] 0.0
        %1107 = vst [vmem:[#allocation2 + $0x2a8] sm:$0xff] 0.0
        %1108 = vst [vmem:[#allocation2 + $0x2b0] sm:$0xff] 0.0
        %1109 = vst [vmem:[#allocation2 + $0x2b8] sm:$0xff] 0.0
        %1110 = vst [vmem:[#allocation2 + $0x2c0] sm:$0xff] 0.0
        %1111 = vst [vmem:[#allocation2 + $0x2c8] sm:$0xff] 0.0
        %1112 = vst [vmem:[#allocation2 + $0x2d0] sm:$0xff] 0.0
        %1113 = vst [vmem:[#allocation2 + $0x2d8] sm:$0xff] 0.0
        %1114 = vst [vmem:[#allocation2 + $0x2e0] sm:$0xff] 0.0
        %1115 = vst [vmem:[#allocation2 + $0x2e8] sm:$0xff] 0.0
        %1116 = vst [vmem:[#allocation2 + $0x2f0] sm:$0xff] 0.0
        %1117 = vst [vmem:[#allocation2 + $0x2f8] sm:$0xff] 0.0
        %s1118 = scalar_lea.vmem [#allocation2], 128
        %1119 = vst [vmem:[%s1118 + $0x8] sm:$0xff] %v990
        %1120 = vst [vmem:[%s1118 + $0x10] sm:$0xff] %v991
        %1121 = vst [vmem:[%s1118 + $0x28] sm:$0xff] %v992
        %1122 = vst [vmem:[%s1118 + $0x30] sm:$0xff] %v993
        %1123 = vst [vmem:[%s1118 + $0x48] sm:$0xff] %v994
        %1124 = vst [vmem:[%s1118 + $0x50] sm:$0xff] %v995
        %1125 = vst [vmem:[%s1118 + $0x68] sm:$0xff] %v996
        %1126 = vst [vmem:[%s1118 + $0x70] sm:$0xff] %v997
        %1127 = vst [vmem:[%s1118 + $0x88] sm:$0xff] %v998
        %1128 = vst [vmem:[%s1118 + $0x90] sm:$0xff] %v999
        %1129 = vst [vmem:[%s1118 + $0xa8] sm:$0xff] %v1000
        %1130 = vst [vmem:[%s1118 + $0xb0] sm:$0xff] %v1001
        %1131 = vst [vmem:[%s1118 + $0xc8] sm:$0xff] %v1002
        %1132 = vst [vmem:[%s1118 + $0xd0] sm:$0xff] %v1003
        %1133 = vst [vmem:[%s1118 + $0xe8] sm:$0xff] %v1004
        %1134 = vst [vmem:[%s1118 + $0xf0] sm:$0xff] %v1005
        %1135 = vst [vmem:[%s1118 + $0x108] sm:$0xff] %v1006
        %1136 = vst [vmem:[%s1118 + $0x110] sm:$0xff] %v1007
        %1137 = vst [vmem:[%s1118 + $0x128] sm:$0xff] %v1008
        %1138 = vst [vmem:[%s1118 + $0x130] sm:$0xff] %v1009
        %1139 = vst [vmem:[%s1118 + $0x148] sm:$0xff] %v1010
        %1140 = vst [vmem:[%s1118 + $0x150] sm:$0xff] %v1011
        %1141 = vst [vmem:[%s1118 + $0x168] sm:$0xff] %v1012
        %1142 = vst [vmem:[%s1118 + $0x170] sm:$0xff] %v1013
        %1143 = vst [vmem:[%s1118 + $0x188] sm:$0xff] %v1014
        %1144 = vst [vmem:[%s1118 + $0x190] sm:$0xff] %v1015
        %1145 = vst [vmem:[%s1118 + $0x1a8] sm:$0xff] %v1016
        %1146 = vst [vmem:[%s1118 + $0x1b0] sm:$0xff] %v1017
        %1147 = vst [vmem:[%s1118 + $0x1c8] sm:$0xff] %v1018
        %1148 = vst [vmem:[%s1118 + $0x1d0] sm:$0xff] %v1019
        %1149 = vst [vmem:[%s1118 + $0x1e8] sm:$0xff] %v1020
        %1150 = vst [vmem:[%s1118 + $0x1f0] sm:$0xff] %v1021
        %v1151 = vld [vmem:[#allocation2 + $0x4] sm:$0xff]
        %v1152 = vld [vmem:[#allocation2 + $0xc] sm:$0xff]
        %v1153 = vld [vmem:[#allocation2 + $0x24] sm:$0xff]
        %v1154 = vld [vmem:[#allocation2 + $0x2c] sm:$0xff]
        %v1155 = vld [vmem:[#allocation2 + $0x44] sm:$0xff]
        %v1156 = vld [vmem:[#allocation2 + $0x4c] sm:$0xff]
        %v1157 = vld [vmem:[#allocation2 + $0x64] sm:$0xff]
        %v1158 = vld [vmem:[#allocation2 + $0x6c] sm:$0xff]
        %v1159 = vld [vmem:[#allocation2 + $0x84] sm:$0xff]
        %v1160 = vld [vmem:[#allocation2 + $0x8c] sm:$0xff]
        %v1161 = vld [vmem:[#allocation2 + $0xa4] sm:$0xff]
        %v1162 = vld [vmem:[#allocation2 + $0xac] sm:$0xff]
        %v1163 = vld [vmem:[#allocation2 + $0xc4] sm:$0xff]
        %v1164 = vld [vmem:[#allocation2 + $0xcc] sm:$0xff]
        %v1165 = vld [vmem:[#allocation2 + $0xe4] sm:$0xff]
        %v1166 = vld [vmem:[#allocation2 + $0xec] sm:$0xff]
        %v1167 = vld [vmem:[#allocation2 + $0x104] sm:$0xff]
        %v1168 = vld [vmem:[#allocation2 + $0x10c] sm:$0xff]
        %v1169 = vld [vmem:[#allocation2 + $0x124] sm:$0xff]
        %v1170 = vld [vmem:[#allocation2 + $0x12c] sm:$0xff]
        %v1171 = vld [vmem:[#allocation2 + $0x144] sm:$0xff]
        %v1172 = vld [vmem:[#allocation2 + $0x14c] sm:$0xff]
        %v1173 = vld [vmem:[#allocation2 + $0x164] sm:$0xff]
        %v1174 = vld [vmem:[#allocation2 + $0x16c] sm:$0xff]
        %v1175 = vld [vmem:[#allocation2 + $0x184] sm:$0xff]
        %v1176 = vld [vmem:[#allocation2 + $0x18c] sm:$0xff]
        %v1177 = vld [vmem:[#allocation2 + $0x1a4] sm:$0xff]
        %v1178 = vld [vmem:[#allocation2 + $0x1ac] sm:$0xff]
        %v1179 = vld [vmem:[#allocation2 + $0x1c4] sm:$0xff]
        %v1180 = vld [vmem:[#allocation2 + $0x1cc] sm:$0xff]
        %v1181 = vld [vmem:[#allocation2 + $0x1e4] sm:$0xff]
        %v1182 = vld [vmem:[#allocation2 + $0x1ec] sm:$0xff]
        %v1183 = vld [vmem:[#allocation8] sm:$0xff]
        %v1184 = vld [vmem:[#allocation8 + $0x8] sm:$0xff]
        %v1185 = vld [vmem:[#allocation8 + $0x10] sm:$0xff]
        %v1186 = vld [vmem:[#allocation8 + $0x18] sm:$0xff]
        %v1187 = vld [vmem:[#allocation8 + $0x20] sm:$0xff]
        %v1188 = vld [vmem:[#allocation8 + $0x28] sm:$0xff]
        %v1189 = vld [vmem:[#allocation8 + $0x30] sm:$0xff]
        %v1190 = vld [vmem:[#allocation8 + $0x38] sm:$0xff]
        %v1191 = vld [vmem:[#allocation8 + $0x40] sm:$0xff]
        %v1192 = vld [vmem:[#allocation8 + $0x48] sm:$0xff]
        %v1193 = vld [vmem:[#allocation8 + $0x50] sm:$0xff]
        %v1194 = vld [vmem:[#allocation8 + $0x58] sm:$0xff]
        %v1195 = vld [vmem:[#allocation8 + $0x60] sm:$0xff]
        %v1196 = vld [vmem:[#allocation8 + $0x68] sm:$0xff]
        %v1197 = vld [vmem:[#allocation8 + $0x70] sm:$0xff]
        %v1198 = vld [vmem:[#allocation8 + $0x78] sm:$0xff]
        %v1199 = vld [vmem:[#allocation2 + $0x8] sm:$0xff]
        %v1200 = vld [vmem:[#allocation2 + $0x10] sm:$0xff]
        %v1201 = vld [vmem:[#allocation2 + $0x28] sm:$0xff]
        %v1202 = vld [vmem:[#allocation2 + $0x30] sm:$0xff]
        %v1203 = vld [vmem:[#allocation2 + $0x48] sm:$0xff]
        %v1204 = vld [vmem:[#allocation2 + $0x50] sm:$0xff]
        %v1205 = vld [vmem:[#allocation2 + $0x68] sm:$0xff]
        %v1206 = vld [vmem:[#allocation2 + $0x70] sm:$0xff]
        %v1207 = vld [vmem:[#allocation2 + $0x88] sm:$0xff]
        %v1208 = vld [vmem:[#allocation2 + $0x90] sm:$0xff]
        %v1209 = vld [vmem:[#allocation2 + $0xa8] sm:$0xff]
        %v1210 = vld [vmem:[#allocation2 + $0xb0] sm:$0xff]
        %v1211 = vld [vmem:[#allocation2 + $0xc8] sm:$0xff]
        %v1212 = vld [vmem:[#allocation2 + $0xd0] sm:$0xff]
        %v1213 = vld [vmem:[#allocation2 + $0xe8] sm:$0xff]
        %v1214 = vld [vmem:[#allocation2 + $0xf0] sm:$0xff]
        %v1215 = vld [vmem:[#allocation2 + $0x108] sm:$0xff]
        %v1216 = vld [vmem:[#allocation2 + $0x110] sm:$0xff]
        %v1217 = vld [vmem:[#allocation2 + $0x128] sm:$0xff]
        %v1218 = vld [vmem:[#allocation2 + $0x130] sm:$0xff]
        %v1219 = vld [vmem:[#allocation2 + $0x148] sm:$0xff]
        %v1220 = vld [vmem:[#allocation2 + $0x150] sm:$0xff]
        %v1221 = vld [vmem:[#allocation2 + $0x168] sm:$0xff]
        %v1222 = vld [vmem:[#allocation2 + $0x170] sm:$0xff]
        %v1223 = vld [vmem:[#allocation2 + $0x188] sm:$0xff]
        %v1224 = vld [vmem:[#allocation2 + $0x190] sm:$0xff]
        %v1225 = vld [vmem:[#allocation2 + $0x1a8] sm:$0xff]
        %v1226 = vld [vmem:[#allocation2 + $0x1b0] sm:$0xff]
        %v1227 = vld [vmem:[#allocation2 + $0x1c8] sm:$0xff]
        %v1228 = vld [vmem:[#allocation2 + $0x1d0] sm:$0xff]
        %v1229 = vld [vmem:[#allocation2 + $0x1e8] sm:$0xff]
        %v1230 = vld [vmem:[#allocation2 + $0x1f0] sm:$0xff]
        %s1231 = scalar_lea.vmem [#allocation8], 128
        %v1232 = vld [vmem:[%s1231] sm:$0xff]
        %v1233 = vld [vmem:[%s1231 + $0x8] sm:$0xff]
        %v1234 = vld [vmem:[%s1231 + $0x10] sm:$0xff]
        %v1235 = vld [vmem:[%s1231 + $0x18] sm:$0xff]
        %v1236 = vld [vmem:[%s1231 + $0x20] sm:$0xff]
        %v1237 = vld [vmem:[%s1231 + $0x28] sm:$0xff]
        %v1238 = vld [vmem:[%s1231 + $0x30] sm:$0xff]
        %v1239 = vld [vmem:[%s1231 + $0x38] sm:$0xff]
        %v1240 = vld [vmem:[%s1231 + $0x40] sm:$0xff]
        %v1241 = vld [vmem:[%s1231 + $0x48] sm:$0xff]
        %v1242 = vld [vmem:[%s1231 + $0x50] sm:$0xff]
        %v1243 = vld [vmem:[%s1231 + $0x58] sm:$0xff]
        %v1244 = vld [vmem:[%s1231 + $0x60] sm:$0xff]
        %v1245 = vld [vmem:[%s1231 + $0x68] sm:$0xff]
        %v1246 = vld [vmem:[%s1231 + $0x70] sm:$0xff]
        %v1247 = vld [vmem:[%s1231 + $0x78] sm:$0xff]
        %1248 = vmatprep.subr.mxu0 0.0
        %1249 = vmatpush1.msra.mxu0 %v1232
        %1250 = vmatprep.subr.mxu0 0.0
        %1251 = vmatpush1.msra.mxu0 %v1233
        %1252 = vmatprep.subr.mxu0 0.0
        %1253 = vmatpush1.msra.mxu0 %v1234
        %1254 = vmatprep.subr.mxu0 0.0
        %1255 = vmatpush1.msra.mxu0 %v1235
        %1256 = vmatprep.subr.mxu0 0.0
        %1257 = vmatpush1.msra.mxu0 %v1236
        %1258 = vmatprep.subr.mxu0 0.0
        %1259 = vmatpush1.msra.mxu0 %v1237
        %1260 = vmatprep.subr.mxu0 0.0
        %1261 = vmatpush1.msra.mxu0 %v1238
        %1262 = vmatprep.subr.mxu0 0.0
        %1263 = vmatpush1.msra.mxu0 %v1239
        %1264 = vmatprep.subr.mxu0 0.0
        %1265 = vmatpush1.msra.mxu0 %v1240
        %1266 = vmatprep.subr.mxu0 0.0
        %1267 = vmatpush1.msra.mxu0 %v1241
        %1268 = vmatprep.subr.mxu0 0.0
        %1269 = vmatpush1.msra.mxu0 %v1242
        %1270 = vmatprep.subr.mxu0 0.0
        %1271 = vmatpush1.msra.mxu0 %v1243
        %1272 = vmatprep.subr.mxu0 0.0
        %1273 = vmatpush1.msra.mxu0 %v1244
        %1274 = vmatprep.subr.mxu0 0.0
        %1275 = vmatpush1.msra.mxu0 %v1245
        %1276 = vmatprep.subr.mxu0 0.0
        %1277 = vmatpush1.msra.mxu0 %v1246
        %1278 = vmatprep.subr.mxu0 0.0
        %1279 = vmatpush1.msra.mxu0 %v1247
        %1280 = vmatprep.subr.mxu0 0.0
        %1281 = vmatpush1.msra.mxu0 0.0
        %1282 = vmatprep.subr.mxu0 0.0
        %1283 = vmatpush1.msra.mxu0 0.0
        %1284 = vmatprep.subr.mxu0 0.0
        %1285 = vmatpush1.msra.mxu0 0.0
        %1286 = vmatprep.subr.mxu0 0.0
        %1287 = vmatpush1.msra.mxu0 0.0
        %1288 = vmatprep.subr.mxu0 0.0
        %1289 = vmatpush1.msra.mxu0 0.0
        %1290 = vmatprep.subr.mxu0 0.0
        %1291 = vmatpush1.msra.mxu0 0.0
        %1292 = vmatprep.subr.mxu0 0.0
        %1293 = vmatpush1.msra.mxu0 0.0
        %1294 = vmatprep.subr.mxu0 0.0
        %1295 = vmatpush1.msra.mxu0 0.0
        %1296 = vmatprep.subr.mxu0 0.0
        %1297 = vmatpush1.msra.mxu0 0.0
        %1298 = vmatprep.subr.mxu0 0.0
        %1299 = vmatpush1.msra.mxu0 0.0
        %1300 = vmatprep.subr.mxu0 0.0
        %1301 = vmatpush1.msra.mxu0 0.0
        %1302 = vmatprep.subr.mxu0 0.0
        %1303 = vmatpush1.msra.mxu0 0.0
        %1304 = vmatprep.subr.mxu0 0.0
        %1305 = vmatpush1.msra.mxu0 0.0
        %1306 = vmatprep.subr.mxu0 0.0
        %1307 = vmatpush1.msra.mxu0 0.0
        %1308 = vmatprep.subr.mxu0 0.0
        %1309 = vmatpush1.msra.mxu0 0.0
        %1310 = vmatprep.subr.mxu0 0.0
        %1311 = vmatpush1.msra.mxu0 0.0
        %1312 = vmatprep.mubr.f32.mxu0 0.0
        %1313 = vmatmul.mubr.f32.gmra.mrb[0].mxu0 %v1199
        %v1314 = vpop.f32.mrb[0].mxu0
        %v1315 = vadd.f32 0.0, %v1314
        %v1316 = vpop.f32.mrb[0].mxu0
        %1317 = vmatprep.mubr.f32.mxu0 0.0
        %1318 = vmatmul.mubr.f32.gmra.mrb[0].mxu0 %v1200
        %v1319 = vpop.f32.mrb[0].mxu0
        %v1320 = vadd.f32 0.0, %v1319
        %v1321 = vpop.f32.mrb[0].mxu0
        %1322 = vmatprep.mubr.f32.mxu0 0.0
        %1323 = vmatmul.mubr.f32.gmra.mrb[0].mxu0 %v1201
        %v1324 = vpop.f32.mrb[0].mxu0
        %v1325 = vadd.f32 0.0, %v1324
        %v1326 = vpop.f32.mrb[0].mxu0
        %1327 = vmatprep.mubr.f32.mxu0 0.0
        %1328 = vmatmul.mubr.f32.gmra.mrb[0].mxu0 %v1202
        %v1329 = vpop.f32.mrb[0].mxu0
        %v1330 = vadd.f32 0.0, %v1329
        %v1331 = vpop.f32.mrb[0].mxu0
        %1332 = vmatprep.mubr.f32.mxu0 0.0
        %1333 = vmatmul.mubr.f32.gmra.mrb[0].mxu0 %v1203
        %v1334 = vpop.f32.mrb[0].mxu0
        %v1335 = vadd.f32 0.0, %v1334
        %v1336 = vpop.f32.mrb[0].mxu0
        %1337 = vmatprep.mubr.f32.mxu0 0.0
        %1338 = vmatmul.mubr.f32.gmra.mrb[0].mxu0 %v1204
        %v1339 = vpop.f32.mrb[0].mxu0
        %v1340 = vadd.f32 0.0, %v1339
        %v1341 = vpop.f32.mrb[0].mxu0
        %1342 = vmatprep.mubr.f32.mxu0 0.0
        %1343 = vmatmul.mubr.f32.gmra.mrb[0].mxu0 %v1205
        %v1344 = vpop.f32.mrb[0].mxu0
        %v1345 = vadd.f32 0.0, %v1344
        %v1346 = vpop.f32.mrb[0].mxu0
        %1347 = vmatprep.mubr.f32.mxu0 0.0
        %1348 = vmatmul.mubr.f32.gmra.mrb[0].mxu0 %v1206
        %v1349 = vpop.f32.mrb[0].mxu0
        %v1350 = vadd.f32 0.0, %v1349
        %v1351 = vpop.f32.mrb[0].mxu0
        %1352 = vmatprep.mubr.f32.mxu0 0.0
        %1353 = vmatmul.mubr.f32.gmra.mrb[0].mxu0 %v1207
        %v1354 = vpop.f32.mrb[0].mxu0
        %v1355 = vadd.f32 0.0, %v1354
        %v1356 = vpop.f32.mrb[0].mxu0
        %1357 = vmatprep.mubr.f32.mxu0 0.0
        %1358 = vmatmul.mubr.f32.gmra.mrb[0].mxu0 %v1208
        %v1359 = vpop.f32.mrb[0].mxu0
        %v1360 = vadd.f32 0.0, %v1359
        %v1361 = vpop.f32.mrb[0].mxu0
        %1362 = vmatprep.mubr.f32.mxu0 0.0
        %1363 = vmatmul.mubr.f32.gmra.mrb[0].mxu0 %v1209
        %v1364 = vpop.f32.mrb[0].mxu0
        %v1365 = vadd.f32 0.0, %v1364
        %v1366 = vpop.f32.mrb[0].mxu0
        %1367 = vmatprep.mubr.f32.mxu0 0.0
        %1368 = vmatmul.mubr.f32.gmra.mrb[0].mxu0 %v1210
        %v1369 = vpop.f32.mrb[0].mxu0
        %v1370 = vadd.f32 0.0, %v1369
        %v1371 = vpop.f32.mrb[0].mxu0
        %1372 = vmatprep.mubr.f32.mxu0 0.0
        %1373 = vmatmul.mubr.f32.gmra.mrb[0].mxu0 %v1211
        %v1374 = vpop.f32.mrb[0].mxu0
        %v1375 = vadd.f32 0.0, %v1374
        %v1376 = vpop.f32.mrb[0].mxu0
        %1377 = vmatprep.mubr.f32.mxu0 0.0
        %1378 = vmatmul.mubr.f32.gmra.mrb[0].mxu0 %v1212
        %v1379 = vpop.f32.mrb[0].mxu0
        %v1380 = vadd.f32 0.0, %v1379
        %v1381 = vpop.f32.mrb[0].mxu0
        %1382 = vmatprep.mubr.f32.mxu0 0.0
        %1383 = vmatmul.mubr.f32.gmra.mrb[0].mxu0 %v1213
        %v1384 = vpop.f32.mrb[0].mxu0
        %v1385 = vadd.f32 0.0, %v1384
        %v1386 = vpop.f32.mrb[0].mxu0
        %1387 = vmatprep.mubr.f32.mxu0 0.0
        %1388 = vmatmul.mubr.f32.gmra.mrb[0].mxu0 %v1214
        %v1389 = vpop.f32.mrb[0].mxu0
        %v1390 = vadd.f32 0.0, %v1389
        %v1391 = vpop.f32.mrb[0].mxu0
        %1392 = vmatprep.mubr.f32.mxu0 0.0
        %1393 = vmatmul.mubr.f32.gmra.mrb[0].mxu0 %v1215
        %v1394 = vpop.f32.mrb[0].mxu0
        %v1395 = vadd.f32 0.0, %v1394
        %v1396 = vpop.f32.mrb[0].mxu0
        %1397 = vmatprep.mubr.f32.mxu0 0.0
        %1398 = vmatmul.mubr.f32.gmra.mrb[0].mxu0 %v1216
        %v1399 = vpop.f32.mrb[0].mxu0
        %v1400 = vadd.f32 0.0, %v1399
        %v1401 = vpop.f32.mrb[0].mxu0
        %1402 = vmatprep.mubr.f32.mxu0 0.0
        %1403 = vmatmul.mubr.f32.gmra.mrb[0].mxu0 %v1217
        %v1404 = vpop.f32.mrb[0].mxu0
        %v1405 = vadd.f32 0.0, %v1404
        %v1406 = vpop.f32.mrb[0].mxu0
        %1407 = vmatprep.mubr.f32.mxu0 0.0
        %1408 = vmatmul.mubr.f32.gmra.mrb[0].mxu0 %v1218
        %v1409 = vpop.f32.mrb[0].mxu0
        %v1410 = vadd.f32 0.0, %v1409
        %v1411 = vpop.f32.mrb[0].mxu0
        %1412 = vmatprep.mubr.f32.mxu0 0.0
        %1413 = vmatmul.mubr.f32.gmra.mrb[0].mxu0 %v1219
        %v1414 = vpop.f32.mrb[0].mxu0
        %v1415 = vadd.f32 0.0, %v1414
        %v1416 = vpop.f32.mrb[0].mxu0
        %1417 = vmatprep.mubr.f32.mxu0 0.0
        %1418 = vmatmul.mubr.f32.gmra.mrb[0].mxu0 %v1220
        %v1419 = vpop.f32.mrb[0].mxu0
        %v1420 = vadd.f32 0.0, %v1419
        %v1421 = vpop.f32.mrb[0].mxu0
        %1422 = vmatprep.mubr.f32.mxu0 0.0
        %1423 = vmatmul.mubr.f32.gmra.mrb[0].mxu0 %v1221
        %v1424 = vpop.f32.mrb[0].mxu0
        %v1425 = vadd.f32 0.0, %v1424
        %v1426 = vpop.f32.mrb[0].mxu0
        %1427 = vmatprep.mubr.f32.mxu0 0.0
        %1428 = vmatmul.mubr.f32.gmra.mrb[0].mxu0 %v1222
        %v1429 = vpop.f32.mrb[0].mxu0
        %v1430 = vadd.f32 0.0, %v1429
        %v1431 = vpop.f32.mrb[0].mxu0
        %1432 = vmatprep.mubr.f32.mxu0 0.0
        %1433 = vmatmul.mubr.f32.gmra.mrb[0].mxu0 %v1223
        %v1434 = vpop.f32.mrb[0].mxu0
        %v1435 = vadd.f32 0.0, %v1434
        %v1436 = vpop.f32.mrb[0].mxu0
        %1437 = vmatprep.mubr.f32.mxu0 0.0
        %1438 = vmatmul.mubr.f32.gmra.mrb[0].mxu0 %v1224
        %v1439 = vpop.f32.mrb[0].mxu0
        %v1440 = vadd.f32 0.0, %v1439
        %v1441 = vpop.f32.mrb[0].mxu0
        %1442 = vmatprep.mubr.f32.mxu0 0.0
        %1443 = vmatmul.mubr.f32.gmra.mrb[0].mxu0 %v1225
        %v1444 = vpop.f32.mrb[0].mxu0
        %v1445 = vadd.f32 0.0, %v1444
        %v1446 = vpop.f32.mrb[0].mxu0
        %1447 = vmatprep.mubr.f32.mxu0 0.0
        %1448 = vmatmul.mubr.f32.gmra.mrb[0].mxu0 %v1226
        %v1449 = vpop.f32.mrb[0].mxu0
        %v1450 = vadd.f32 0.0, %v1449
        %v1451 = vpop.f32.mrb[0].mxu0
        %1452 = vmatprep.mubr.f32.mxu0 0.0
        %1453 = vmatmul.mubr.f32.gmra.mrb[0].mxu0 %v1227
        %v1454 = vpop.f32.mrb[0].mxu0
        %v1455 = vadd.f32 0.0, %v1454
        %v1456 = vpop.f32.mrb[0].mxu0
        %1457 = vmatprep.mubr.f32.mxu0 0.0
        %1458 = vmatmul.mubr.f32.gmra.mrb[0].mxu0 %v1228
        %v1459 = vpop.f32.mrb[0].mxu0
        %v1460 = vadd.f32 0.0, %v1459
        %v1461 = vpop.f32.mrb[0].mxu0
        %1462 = vmatprep.mubr.f32.mxu0 0.0
        %1463 = vmatmul.mubr.f32.gmra.mrb[0].mxu0 %v1229
        %v1464 = vpop.f32.mrb[0].mxu0
        %v1465 = vadd.f32 0.0, %v1464
        %v1466 = vpop.f32.mrb[0].mxu0
        %1467 = vmatprep.mubr.f32.mxu0 0.0
        %1468 = vmatmul.mubr.f32.gmra.mrb[0].mxu0 %v1230
        %v1469 = vpop.f32.mrb[0].mxu0
        %v1470 = vadd.f32 0.0, %v1469
        %v1471 = vpop.f32.mrb[0].mxu0
        %1472 = vdwg.mxu0
        %1473 = vmatprep.subr.mxu0 0.0
        %1474 = vmatpush1.msra.mxu0 %v1183
        %1475 = vmatprep.subr.mxu0 0.0
        %1476 = vmatpush1.msra.mxu0 %v1184
        %1477 = vmatprep.subr.mxu0 0.0
        %1478 = vmatpush1.msra.mxu0 %v1185
        %1479 = vmatprep.subr.mxu0 0.0
        %1480 = vmatpush1.msra.mxu0 %v1186
        %1481 = vmatprep.subr.mxu0 0.0
        %1482 = vmatpush1.msra.mxu0 %v1187
        %1483 = vmatprep.subr.mxu0 0.0
        %1484 = vmatpush1.msra.mxu0 %v1188
        %1485 = vmatprep.subr.mxu0 0.0
        %1486 = vmatpush1.msra.mxu0 %v1189
        %1487 = vmatprep.subr.mxu0 0.0
        %1488 = vmatpush1.msra.mxu0 %v1190
        %1489 = vmatprep.subr.mxu0 0.0
        %1490 = vmatpush1.msra.mxu0 %v1191
        %1491 = vmatprep.subr.mxu0 0.0
        %1492 = vmatpush1.msra.mxu0 %v1192
        %1493 = vmatprep.subr.mxu0 0.0
        %1494 = vmatpush1.msra.mxu0 %v1193
        %1495 = vmatprep.subr.mxu0 0.0
        %1496 = vmatpush1.msra.mxu0 %v1194
        %1497 = vmatprep.subr.mxu0 0.0
        %1498 = vmatpush1.msra.mxu0 %v1195
        %1499 = vmatprep.subr.mxu0 0.0
        %1500 = vmatpush1.msra.mxu0 %v1196
        %1501 = vmatprep.subr.mxu0 0.0
        %1502 = vmatpush1.msra.mxu0 %v1197
        %1503 = vmatprep.subr.mxu0 0.0
        %1504 = vmatpush1.msra.mxu0 %v1198
        %1505 = vmatprep.subr.mxu0 0.0
        %1506 = vmatpush1.msra.mxu0 0.0
        %1507 = vmatprep.subr.mxu0 0.0
        %1508 = vmatpush1.msra.mxu0 0.0
        %1509 = vmatprep.subr.mxu0 0.0
        %1510 = vmatpush1.msra.mxu0 0.0
        %1511 = vmatprep.subr.mxu0 0.0
        %1512 = vmatpush1.msra.mxu0 0.0
        %1513 = vmatprep.subr.mxu0 0.0
        %1514 = vmatpush1.msra.mxu0 0.0
        %1515 = vmatprep.subr.mxu0 0.0
        %1516 = vmatpush1.msra.mxu0 0.0
        %1517 = vmatprep.subr.mxu0 0.0
        %1518 = vmatpush1.msra.mxu0 0.0
        %1519 = vmatprep.subr.mxu0 0.0
        %1520 = vmatpush1.msra.mxu0 0.0
        %1521 = vmatprep.subr.mxu0 0.0
        %1522 = vmatpush1.msra.mxu0 0.0
        %1523 = vmatprep.subr.mxu0 0.0
        %1524 = vmatpush1.msra.mxu0 0.0
        %1525 = vmatprep.subr.mxu0 0.0
        %1526 = vmatpush1.msra.mxu0 0.0
        %1527 = vmatprep.subr.mxu0 0.0
        %1528 = vmatpush1.msra.mxu0 0.0
        %1529 = vmatprep.subr.mxu0 0.0
        %1530 = vmatpush1.msra.mxu0 0.0
        %1531 = vmatprep.subr.mxu0 0.0
        %1532 = vmatpush1.msra.mxu0 0.0
        %1533 = vmatprep.subr.mxu0 0.0
        %1534 = vmatpush1.msra.mxu0 0.0
        %1535 = vmatprep.subr.mxu0 0.0
        %1536 = vmatpush1.msra.mxu0 0.0
        %1537 = vmatprep.mubr.f32.mxu0 0.0
        %1538 = vmatmul.mubr.f32.gmra.mrb[0].mxu0 %v1151
        %v1539 = vpop.f32.mrb[0].mxu0
        %v1540 = vadd.f32 %v1315, %v1539
        %v1541 = vpop.f32.mrb[0].mxu0
        %1542 = vmatprep.mubr.f32.mxu0 0.0
        %1543 = vmatmul.mubr.f32.gmra.mrb[0].mxu0 %v1152
        %v1544 = vpop.f32.mrb[0].mxu0
        %v1545 = vadd.f32 %v1320, %v1544
        %v1546 = vpop.f32.mrb[0].mxu0
        %1547 = vmatprep.mubr.f32.mxu0 0.0
        %1548 = vmatmul.mubr.f32.gmra.mrb[0].mxu0 %v1153
        %v1549 = vpop.f32.mrb[0].mxu0
        %v1550 = vadd.f32 %v1325, %v1549
        %v1551 = vpop.f32.mrb[0].mxu0
        %1552 = vmatprep.mubr.f32.mxu0 0.0
        %1553 = vmatmul.mubr.f32.gmra.mrb[0].mxu0 %v1154
        %v1554 = vpop.f32.mrb[0].mxu0
        %v1555 = vadd.f32 %v1330, %v1554
        %v1556 = vpop.f32.mrb[0].mxu0
        %1557 = vmatprep.mubr.f32.mxu0 0.0
        %1558 = vmatmul.mubr.f32.gmra.mrb[0].mxu0 %v1155
        %v1559 = vpop.f32.mrb[0].mxu0
        %v1560 = vadd.f32 %v1335, %v1559
        %v1561 = vpop.f32.mrb[0].mxu0
        %1562 = vmatprep.mubr.f32.mxu0 0.0
        %1563 = vmatmul.mubr.f32.gmra.mrb[0].mxu0 %v1156
        %v1564 = vpop.f32.mrb[0].mxu0
        %v1565 = vadd.f32 %v1340, %v1564
        %v1566 = vpop.f32.mrb[0].mxu0
        %1567 = vmatprep.mubr.f32.mxu0 0.0
        %1568 = vmatmul.mubr.f32.gmra.mrb[0].mxu0 %v1157
        %v1569 = vpop.f32.mrb[0].mxu0
        %v1570 = vadd.f32 %v1345, %v1569
        %v1571 = vpop.f32.mrb[0].mxu0
        %1572 = vmatprep.mubr.f32.mxu0 0.0
        %1573 = vmatmul.mubr.f32.gmra.mrb[0].mxu0 %v1158
        %v1574 = vpop.f32.mrb[0].mxu0
        %v1575 = vadd.f32 %v1350, %v1574
        %v1576 = vpop.f32.mrb[0].mxu0
        %1577 = vmatprep.mubr.f32.mxu0 0.0
        %1578 = vmatmul.mubr.f32.gmra.mrb[0].mxu0 %v1159
        %v1579 = vpop.f32.mrb[0].mxu0
        %v1580 = vadd.f32 %v1355, %v1579
        %v1581 = vpop.f32.mrb[0].mxu0
        %1582 = vmatprep.mubr.f32.mxu0 0.0
        %1583 = vmatmul.mubr.f32.gmra.mrb[0].mxu0 %v1160
        %v1584 = vpop.f32.mrb[0].mxu0
        %v1585 = vadd.f32 %v1360, %v1584
        %v1586 = vpop.f32.mrb[0].mxu0
        %1587 = vmatprep.mubr.f32.mxu0 0.0
        %1588 = vmatmul.mubr.f32.gmra.mrb[0].mxu0 %v1161
        %v1589 = vpop.f32.mrb[0].mxu0
        %v1590 = vadd.f32 %v1365, %v1589
        %v1591 = vpop.f32.mrb[0].mxu0
        %1592 = vmatprep.mubr.f32.mxu0 0.0
        %1593 = vmatmul.mubr.f32.gmra.mrb[0].mxu0 %v1162
        %v1594 = vpop.f32.mrb[0].mxu0
        %v1595 = vadd.f32 %v1370, %v1594
        %v1596 = vpop.f32.mrb[0].mxu0
        %1597 = vmatprep.mubr.f32.mxu0 0.0
        %1598 = vmatmul.mubr.f32.gmra.mrb[0].mxu0 %v1163
        %v1599 = vpop.f32.mrb[0].mxu0
        %v1600 = vadd.f32 %v1375, %v1599
        %v1601 = vpop.f32.mrb[0].mxu0
        %1602 = vmatprep.mubr.f32.mxu0 0.0
        %1603 = vmatmul.mubr.f32.gmra.mrb[0].mxu0 %v1164
        %v1604 = vpop.f32.mrb[0].mxu0
        %v1605 = vadd.f32 %v1380, %v1604
        %v1606 = vpop.f32.mrb[0].mxu0
        %1607 = vmatprep.mubr.f32.mxu0 0.0
        %1608 = vmatmul.mubr.f32.gmra.mrb[0].mxu0 %v1165
        %v1609 = vpop.f32.mrb[0].mxu0
        %v1610 = vadd.f32 %v1385, %v1609
        %v1611 = vpop.f32.mrb[0].mxu0
        %1612 = vmatprep.mubr.f32.mxu0 0.0
        %1613 = vmatmul.mubr.f32.gmra.mrb[0].mxu0 %v1166
        %v1614 = vpop.f32.mrb[0].mxu0
        %v1615 = vadd.f32 %v1390, %v1614
        %v1616 = vpop.f32.mrb[0].mxu0
        %1617 = vmatprep.mubr.f32.mxu0 0.0
        %1618 = vmatmul.mubr.f32.gmra.mrb[0].mxu0 %v1167
        %v1619 = vpop.f32.mrb[0].mxu0
        %v1620 = vadd.f32 %v1395, %v1619
        %v1621 = vpop.f32.mrb[0].mxu0
        %1622 = vmatprep.mubr.f32.mxu0 0.0
        %1623 = vmatmul.mubr.f32.gmra.mrb[0].mxu0 %v1168
        %v1624 = vpop.f32.mrb[0].mxu0
        %v1625 = vadd.f32 %v1400, %v1624
        %v1626 = vpop.f32.mrb[0].mxu0
        %1627 = vmatprep.mubr.f32.mxu0 0.0
        %1628 = vmatmul.mubr.f32.gmra.mrb[0].mxu0 %v1169
        %v1629 = vpop.f32.mrb[0].mxu0
        %v1630 = vadd.f32 %v1405, %v1629
        %v1631 = vpop.f32.mrb[0].mxu0
        %1632 = vmatprep.mubr.f32.mxu0 0.0
        %1633 = vmatmul.mubr.f32.gmra.mrb[0].mxu0 %v1170
        %v1634 = vpop.f32.mrb[0].mxu0
        %v1635 = vadd.f32 %v1410, %v1634
        %v1636 = vpop.f32.mrb[0].mxu0
        %1637 = vmatprep.mubr.f32.mxu0 0.0
        %1638 = vmatmul.mubr.f32.gmra.mrb[0].mxu0 %v1171
        %v1639 = vpop.f32.mrb[0].mxu0
        %v1640 = vadd.f32 %v1415, %v1639
        %v1641 = vpop.f32.mrb[0].mxu0
        %1642 = vmatprep.mubr.f32.mxu0 0.0
        %1643 = vmatmul.mubr.f32.gmra.mrb[0].mxu0 %v1172
        %v1644 = vpop.f32.mrb[0].mxu0
        %v1645 = vadd.f32 %v1420, %v1644
        %v1646 = vpop.f32.mrb[0].mxu0
        %1647 = vmatprep.mubr.f32.mxu0 0.0
        %1648 = vmatmul.mubr.f32.gmra.mrb[0].mxu0 %v1173
        %v1649 = vpop.f32.mrb[0].mxu0
        %v1650 = vadd.f32 %v1425, %v1649
        %v1651 = vpop.f32.mrb[0].mxu0
        %1652 = vmatprep.mubr.f32.mxu0 0.0
        %1653 = vmatmul.mubr.f32.gmra.mrb[0].mxu0 %v1174
        %v1654 = vpop.f32.mrb[0].mxu0
        %v1655 = vadd.f32 %v1430, %v1654
        %v1656 = vpop.f32.mrb[0].mxu0
        %1657 = vmatprep.mubr.f32.mxu0 0.0
        %1658 = vmatmul.mubr.f32.gmra.mrb[0].mxu0 %v1175
        %v1659 = vpop.f32.mrb[0].mxu0
        %v1660 = vadd.f32 %v1435, %v1659
        %v1661 = vpop.f32.mrb[0].mxu0
        %1662 = vmatprep.mubr.f32.mxu0 0.0
        %1663 = vmatmul.mubr.f32.gmra.mrb[0].mxu0 %v1176
        %v1664 = vpop.f32.mrb[0].mxu0
        %v1665 = vadd.f32 %v1440, %v1664
        %v1666 = vpop.f32.mrb[0].mxu0
        %1667 = vmatprep.mubr.f32.mxu0 0.0
        %1668 = vmatmul.mubr.f32.gmra.mrb[0].mxu0 %v1177
        %v1669 = vpop.f32.mrb[0].mxu0
        %v1670 = vadd.f32 %v1445, %v1669
        %v1671 = vpop.f32.mrb[0].mxu0
        %1672 = vmatprep.mubr.f32.mxu0 0.0
        %1673 = vmatmul.mubr.f32.gmra.mrb[0].mxu0 %v1178
        %v1674 = vpop.f32.mrb[0].mxu0
        %v1675 = vadd.f32 %v1450, %v1674
        %v1676 = vpop.f32.mrb[0].mxu0
        %1677 = vmatprep.mubr.f32.mxu0 0.0
        %1678 = vmatmul.mubr.f32.gmra.mrb[0].mxu0 %v1179
        %v1679 = vpop.f32.mrb[0].mxu0
        %v1680 = vadd.f32 %v1455, %v1679
        %v1681 = vpop.f32.mrb[0].mxu0
        %1682 = vmatprep.mubr.f32.mxu0 0.0
        %1683 = vmatmul.mubr.f32.gmra.mrb[0].mxu0 %v1180
        %v1684 = vpop.f32.mrb[0].mxu0
        %v1685 = vadd.f32 %v1460, %v1684
        %v1686 = vpop.f32.mrb[0].mxu0
        %1687 = vmatprep.mubr.f32.mxu0 0.0
        %1688 = vmatmul.mubr.f32.gmra.mrb[0].mxu0 %v1181
        %v1689 = vpop.f32.mrb[0].mxu0
        %v1690 = vadd.f32 %v1465, %v1689
        %v1691 = vpop.f32.mrb[0].mxu0
        %1692 = vmatprep.mubr.f32.mxu0 0.0
        %1693 = vmatmul.mubr.f32.gmra.mrb[0].mxu0 %v1182
        %v1694 = vpop.f32.mrb[0].mxu0
        %v1695 = vadd.f32 %v1470, %v1694
        %v1696 = vpop.f32.mrb[0].mxu0
        %1697 = vdwg.mxu0
        %v1698 = vld [vmem:[#allocation2 + $0xc] sm:$0xff]
        %v1699 = vld [vmem:[#allocation2 + $0x14] sm:$0xff]
        %v1700 = vld [vmem:[#allocation2 + $0x2c] sm:$0xff]
        %v1701 = vld [vmem:[#allocation2 + $0x34] sm:$0xff]
        %v1702 = vld [vmem:[#allocation2 + $0x4c] sm:$0xff]
        %v1703 = vld [vmem:[#allocation2 + $0x54] sm:$0xff]
        %v1704 = vld [vmem:[#allocation2 + $0x6c] sm:$0xff]
        %v1705 = vld [vmem:[#allocation2 + $0x74] sm:$0xff]
        %v1706 = vld [vmem:[#allocation2 + $0x8c] sm:$0xff]
        %v1707 = vld [vmem:[#allocation2 + $0x94] sm:$0xff]
        %v1708 = vld [vmem:[#allocation2 + $0xac] sm:$0xff]
        %v1709 = vld [vmem:[#allocation2 + $0xb4] sm:$0xff]
        %v1710 = vld [vmem:[#allocation2 + $0xcc] sm:$0xff]
        %v1711 = vld [vmem:[#allocation2 + $0xd4] sm:$0xff]
        %v1712 = vld [vmem:[#allocation2 + $0xec] sm:$0xff]
        %v1713 = vld [vmem:[#allocation2 + $0xf4] sm:$0xff]
        %v1714 = vld [vmem:[#allocation2 + $0x10c] sm:$0xff]
        %v1715 = vld [vmem:[#allocation2 + $0x114] sm:$0xff]
        %v1716 = vld [vmem:[#allocation2 + $0x12c] sm:$0xff]
        %v1717 = vld [vmem:[#allocation2 + $0x134] sm:$0xff]
        %v1718 = vld [vmem:[#allocation2 + $0x14c] sm:$0xff]
        %v1719 = vld [vmem:[#allocation2 + $0x154] sm:$0xff]
        %v1720 = vld [vmem:[#allocation2 + $0x16c] sm:$0xff]
        %v1721 = vld [vmem:[#allocation2 + $0x174] sm:$0xff]
        %v1722 = vld [vmem:[#allocation2 + $0x18c] sm:$0xff]
        %v1723 = vld [vmem:[#allocation2 + $0x194] sm:$0xff]
        %v1724 = vld [vmem:[#allocation2 + $0x1ac] sm:$0xff]
        %v1725 = vld [vmem:[#allocation2 + $0x1b4] sm:$0xff]
        %v1726 = vld [vmem:[#allocation2 + $0x1cc] sm:$0xff]
        %v1727 = vld [vmem:[#allocation2 + $0x1d4] sm:$0xff]
        %v1728 = vld [vmem:[#allocation2 + $0x1ec] sm:$0xff]
        %v1729 = vld [vmem:[#allocation2 + $0x1f4] sm:$0xff]
        %s1730 = scalar_lea.vmem [#allocation8], 256
        %v1731 = vld [vmem:[%s1730] sm:$0xff]
        %v1732 = vld [vmem:[%s1730 + $0x8] sm:$0xff]
        %v1733 = vld [vmem:[%s1730 + $0x10] sm:$0xff]
        %v1734 = vld [vmem:[%s1730 + $0x18] sm:$0xff]
        %v1735 = vld [vmem:[%s1730 + $0x20] sm:$0xff]
        %v1736 = vld [vmem:[%s1730 + $0x28] sm:$0xff]
        %v1737 = vld [vmem:[%s1730 + $0x30] sm:$0xff]
        %v1738 = vld [vmem:[%s1730 + $0x38] sm:$0xff]
        %v1739 = vld [vmem:[%s1730 + $0x40] sm:$0xff]
        %v1740 = vld [vmem:[%s1730 + $0x48] sm:$0xff]
        %v1741 = vld [vmem:[%s1730 + $0x50] sm:$0xff]
        %v1742 = vld [vmem:[%s1730 + $0x58] sm:$0xff]
        %v1743 = vld [vmem:[%s1730 + $0x60] sm:$0xff]
        %v1744 = vld [vmem:[%s1730 + $0x68] sm:$0xff]
        %v1745 = vld [vmem:[%s1730 + $0x70] sm:$0xff]
        %v1746 = vld [vmem:[%s1730 + $0x78] sm:$0xff]
        %1747 = vmatprep.subr.mxu0 0.0
        %1748 = vmatpush1.msra.mxu0 %v1731
        %1749 = vmatprep.subr.mxu0 0.0
        %1750 = vmatpush1.msra.mxu0 %v1732
        %1751 = vmatprep.subr.mxu0 0.0
        %1752 = vmatpush1.msra.mxu0 %v1733
        %1753 = vmatprep.subr.mxu0 0.0
        %1754 = vmatpush1.msra.mxu0 %v1734
        %1755 = vmatprep.subr.mxu0 0.0
        %1756 = vmatpush1.msra.mxu0 %v1735
        %1757 = vmatprep.subr.mxu0 0.0
        %1758 = vmatpush1.msra.mxu0 %v1736
        %1759 = vmatprep.subr.mxu0 0.0
        %1760 = vmatpush1.msra.mxu0 %v1737
        %1761 = vmatprep.subr.mxu0 0.0
        %1762 = vmatpush1.msra.mxu0 %v1738
        %1763 = vmatprep.subr.mxu0 0.0
        %1764 = vmatpush1.msra.mxu0 %v1739
        %1765 = vmatprep.subr.mxu0 0.0
        %1766 = vmatpush1.msra.mxu0 %v1740
        %1767 = vmatprep.subr.mxu0 0.0
        %1768 = vmatpush1.msra.mxu0 %v1741
        %1769 = vmatprep.subr.mxu0 0.0
        %1770 = vmatpush1.msra.mxu0 %v1742
        %1771 = vmatprep.subr.mxu0 0.0
        %1772 = vmatpush1.msra.mxu0 %v1743
        %1773 = vmatprep.subr.mxu0 0.0
        %1774 = vmatpush1.msra.mxu0 %v1744
        %1775 = vmatprep.subr.mxu0 0.0
        %1776 = vmatpush1.msra.mxu0 %v1745
        %1777 = vmatprep.subr.mxu0 0.0
        %1778 = vmatpush1.msra.mxu0 %v1746
        %1779 = vmatprep.subr.mxu0 0.0
        %1780 = vmatpush1.msra.mxu0 0.0
        %1781 = vmatprep.subr.mxu0 0.0
        %1782 = vmatpush1.msra.mxu0 0.0
        %1783 = vmatprep.subr.mxu0 0.0
        %1784 = vmatpush1.msra.mxu0 0.0
        %1785 = vmatprep.subr.mxu0 0.0
        %1786 = vmatpush1.msra.mxu0 0.0
        %1787 = vmatprep.subr.mxu0 0.0
        %1788 = vmatpush1.msra.mxu0 0.0
        %1789 = vmatprep.subr.mxu0 0.0
        %1790 = vmatpush1.msra.mxu0 0.0
        %1791 = vmatprep.subr.mxu0 0.0
        %1792 = vmatpush1.msra.mxu0 0.0
        %1793 = vmatprep.subr.mxu0 0.0
        %1794 = vmatpush1.msra.mxu0 0.0
        %1795 = vmatprep.subr.mxu0 0.0
        %1796 = vmatpush1.msra.mxu0 0.0
        %1797 = vmatprep.subr.mxu0 0.0
        %1798 = vmatpush1.msra.mxu0 0.0
        %1799 = vmatprep.subr.mxu0 0.0
        %1800 = vmatpush1.msra.mxu0 0.0
        %1801 = vmatprep.subr.mxu0 0.0
        %1802 = vmatpush1.msra.mxu0 0.0
        %1803 = vmatprep.subr.mxu0 0.0
        %1804 = vmatpush1.msra.mxu0 0.0
        %1805 = vmatprep.subr.mxu0 0.0
        %1806 = vmatpush1.msra.mxu0 0.0
        %1807 = vmatprep.subr.mxu0 0.0
        %1808 = vmatpush1.msra.mxu0 0.0
        %1809 = vmatprep.subr.mxu0 0.0
        %1810 = vmatpush1.msra.mxu0 0.0
        %1811 = vmatprep.mubr.f32.mxu0 0.0
        %1812 = vmatmul.mubr.f32.gmra.mrb[0].mxu0 %v1698
        %v1813 = vpop.f32.mrb[0].mxu0
        %v1814 = vadd.f32 0.0, %v1813
        %v1815 = vpop.f32.mrb[0].mxu0
        %1816 = vmatprep.mubr.f32.mxu0 0.0
        %1817 = vmatmul.mubr.f32.gmra.mrb[0].mxu0 %v1699
        %v1818 = vpop.f32.mrb[0].mxu0
        %v1819 = vadd.f32 0.0, %v1818
        %v1820 = vpop.f32.mrb[0].mxu0
        %1821 = vmatprep.mubr.f32.mxu0 0.0
        %1822 = vmatmul.mubr.f32.gmra.mrb[0].mxu0 %v1700
        %v1823 = vpop.f32.mrb[0].mxu0
        %v1824 = vadd.f32 0.0, %v1823
        %v1825 = vpop.f32.mrb[0].mxu0
        %1826 = vmatprep.mubr.f32.mxu0 0.0
        %1827 = vmatmul.mubr.f32.gmra.mrb[0].mxu0 %v1701
        %v1828 = vpop.f32.mrb[0].mxu0
        %v1829 = vadd.f32 0.0, %v1828
        %v1830 = vpop.f32.mrb[0].mxu0
        %1831 = vmatprep.mubr.f32.mxu0 0.0
        %1832 = vmatmul.mubr.f32.gmra.mrb[0].mxu0 %v1702
        %v1833 = vpop.f32.mrb[0].mxu0
        %v1834 = vadd.f32 0.0, %v1833
        %v1835 = vpop.f32.mrb[0].mxu0
        %1836 = vmatprep.mubr.f32.mxu0 0.0
        %1837 = vmatmul.mubr.f32.gmra.mrb[0].mxu0 %v1703
        %v1838 = vpop.f32.mrb[0].mxu0
        %v1839 = vadd.f32 0.0, %v1838
        %v1840 = vpop.f32.mrb[0].mxu0
        %1841 = vmatprep.mubr.f32.mxu0 0.0
        %1842 = vmatmul.mubr.f32.gmra.mrb[0].mxu0 %v1704
        %v1843 = vpop.f32.mrb[0].mxu0
        %v1844 = vadd.f32 0.0, %v1843
        %v1845 = vpop.f32.mrb[0].mxu0
        %1846 = vmatprep.mubr.f32.mxu0 0.0
        %1847 = vmatmul.mubr.f32.gmra.mrb[0].mxu0 %v1705
        %v1848 = vpop.f32.mrb[0].mxu0
        %v1849 = vadd.f32 0.0, %v1848
        %v1850 = vpop.f32.mrb[0].mxu0
        %1851 = vmatprep.mubr.f32.mxu0 0.0
        %1852 = vmatmul.mubr.f32.gmra.mrb[0].mxu0 %v1706
        %v1853 = vpop.f32.mrb[0].mxu0
        %v1854 = vadd.f32 0.0, %v1853
        %v1855 = vpop.f32.mrb[0].mxu0
        %1856 = vmatprep.mubr.f32.mxu0 0.0
        %1857 = vmatmul.mubr.f32.gmra.mrb[0].mxu0 %v1707
        %v1858 = vpop.f32.mrb[0].mxu0
        %v1859 = vadd.f32 0.0, %v1858
        %v1860 = vpop.f32.mrb[0].mxu0
        %1861 = vmatprep.mubr.f32.mxu0 0.0
        %1862 = vmatmul.mubr.f32.gmra.mrb[0].mxu0 %v1708
        %v1863 = vpop.f32.mrb[0].mxu0
        %v1864 = vadd.f32 0.0, %v1863
        %v1865 = vpop.f32.mrb[0].mxu0
        %1866 = vmatprep.mubr.f32.mxu0 0.0
        %1867 = vmatmul.mubr.f32.gmra.mrb[0].mxu0 %v1709
        %v1868 = vpop.f32.mrb[0].mxu0
        %v1869 = vadd.f32 0.0, %v1868
        %v1870 = vpop.f32.mrb[0].mxu0
        %1871 = vmatprep.mubr.f32.mxu0 0.0
        %1872 = vmatmul.mubr.f32.gmra.mrb[0].mxu0 %v1710
        %v1873 = vpop.f32.mrb[0].mxu0
        %v1874 = vadd.f32 0.0, %v1873
        %v1875 = vpop.f32.mrb[0].mxu0
        %1876 = vmatprep.mubr.f32.mxu0 0.0
        %1877 = vmatmul.mubr.f32.gmra.mrb[0].mxu0 %v1711
        %v1878 = vpop.f32.mrb[0].mxu0
        %v1879 = vadd.f32 0.0, %v1878
        %v1880 = vpop.f32.mrb[0].mxu0
        %1881 = vmatprep.mubr.f32.mxu0 0.0
        %1882 = vmatmul.mubr.f32.gmra.mrb[0].mxu0 %v1712
        %v1883 = vpop.f32.mrb[0].mxu0
        %v1884 = vadd.f32 0.0, %v1883
        %v1885 = vpop.f32.mrb[0].mxu0
        %1886 = vmatprep.mubr.f32.mxu0 0.0
        %1887 = vmatmul.mubr.f32.gmra.mrb[0].mxu0 %v1713
        %v1888 = vpop.f32.mrb[0].mxu0
        %v1889 = vadd.f32 0.0, %v1888
        %v1890 = vpop.f32.mrb[0].mxu0
        %1891 = vmatprep.mubr.f32.mxu0 0.0
        %1892 = vmatmul.mubr.f32.gmra.mrb[0].mxu0 %v1714
        %v1893 = vpop.f32.mrb[0].mxu0
        %v1894 = vadd.f32 0.0, %v1893
        %v1895 = vpop.f32.mrb[0].mxu0
        %1896 = vmatprep.mubr.f32.mxu0 0.0
        %1897 = vmatmul.mubr.f32.gmra.mrb[0].mxu0 %v1715
        %v1898 = vpop.f32.mrb[0].mxu0
        %v1899 = vadd.f32 0.0, %v1898
        %v1900 = vpop.f32.mrb[0].mxu0
        %1901 = vmatprep.mubr.f32.mxu0 0.0
        %1902 = vmatmul.mubr.f32.gmra.mrb[0].mxu0 %v1716
        %v1903 = vpop.f32.mrb[0].mxu0
        %v1904 = vadd.f32 0.0, %v1903
        %v1905 = vpop.f32.mrb[0].mxu0
        %1906 = vmatprep.mubr.f32.mxu0 0.0
        %1907 = vmatmul.mubr.f32.gmra.mrb[0].mxu0 %v1717
        %v1908 = vpop.f32.mrb[0].mxu0
        %v1909 = vadd.f32 0.0, %v1908
        %v1910 = vpop.f32.mrb[0].mxu0
        %1911 = vmatprep.mubr.f32.mxu0 0.0
        %1912 = vmatmul.mubr.f32.gmra.mrb[0].mxu0 %v1718
        %v1913 = vpop.f32.mrb[0].mxu0
        %v1914 = vadd.f32 0.0, %v1913
        %v1915 = vpop.f32.mrb[0].mxu0
        %1916 = vmatprep.mubr.f32.mxu0 0.0
        %1917 = vmatmul.mubr.f32.gmra.mrb[0].mxu0 %v1719
        %v1918 = vpop.f32.mrb[0].mxu0
        %v1919 = vadd.f32 0.0, %v1918
        %v1920 = vpop.f32.mrb[0].mxu0
        %1921 = vmatprep.mubr.f32.mxu0 0.0
        %1922 = vmatmul.mubr.f32.gmra.mrb[0].mxu0 %v1720
        %v1923 = vpop.f32.mrb[0].mxu0
        %v1924 = vadd.f32 0.0, %v1923
        %v1925 = vpop.f32.mrb[0].mxu0
        %1926 = vmatprep.mubr.f32.mxu0 0.0
        %1927 = vmatmul.mubr.f32.gmra.mrb[0].mxu0 %v1721
        %v1928 = vpop.f32.mrb[0].mxu0
        %v1929 = vadd.f32 0.0, %v1928
        %v1930 = vpop.f32.mrb[0].mxu0
        %1931 = vmatprep.mubr.f32.mxu0 0.0
        %1932 = vmatmul.mubr.f32.gmra.mrb[0].mxu0 %v1722
        %v1933 = vpop.f32.mrb[0].mxu0
        %v1934 = vadd.f32 0.0, %v1933
        %v1935 = vpop.f32.mrb[0].mxu0
        %1936 = vmatprep.mubr.f32.mxu0 0.0
        %1937 = vmatmul.mubr.f32.gmra.mrb[0].mxu0 %v1723
        %v1938 = vpop.f32.mrb[0].mxu0
        %v1939 = vadd.f32 0.0, %v1938
        %v1940 = vpop.f32.mrb[0].mxu0
        %1941 = vmatprep.mubr.f32.mxu0 0.0
        %1942 = vmatmul.mubr.f32.gmra.mrb[0].mxu0 %v1724
        %v1943 = vpop.f32.mrb[0].mxu0
        %v1944 = vadd.f32 0.0, %v1943
        %v1945 = vpop.f32.mrb[0].mxu0
        %1946 = vmatprep.mubr.f32.mxu0 0.0
        %1947 = vmatmul.mubr.f32.gmra.mrb[0].mxu0 %v1725
        %v1948 = vpop.f32.mrb[0].mxu0
        %v1949 = vadd.f32 0.0, %v1948
        %v1950 = vpop.f32.mrb[0].mxu0
        %1951 = vmatprep.mubr.f32.mxu0 0.0
        %1952 = vmatmul.mubr.f32.gmra.mrb[0].mxu0 %v1726
        %v1953 = vpop.f32.mrb[0].mxu0
        %v1954 = vadd.f32 0.0, %v1953
        %v1955 = vpop.f32.mrb[0].mxu0
        %1956 = vmatprep.mubr.f32.mxu0 0.0
        %1957 = vmatmul.mubr.f32.gmra.mrb[0].mxu0 %v1727
        %v1958 = vpop.f32.mrb[0].mxu0
        %v1959 = vadd.f32 0.0, %v1958
        %v1960 = vpop.f32.mrb[0].mxu0
        %1961 = vmatprep.mubr.f32.mxu0 0.0
        %1962 = vmatmul.mubr.f32.gmra.mrb[0].mxu0 %v1728
        %v1963 = vpop.f32.mrb[0].mxu0
        %v1964 = vadd.f32 0.0, %v1963
        %v1965 = vpop.f32.mrb[0].mxu0
        %1966 = vmatprep.mubr.f32.mxu0 0.0
        %1967 = vmatmul.mubr.f32.gmra.mrb[0].mxu0 %v1729
        %v1968 = vpop.f32.mrb[0].mxu0
        %v1969 = vadd.f32 0.0, %v1968
        %v1970 = vpop.f32.mrb[0].mxu0
        %1971 = vdwg.mxu0
        %v1972 = vadd.f32 %v1540, %v1814
        %v1973 = vadd.f32 %v1545, %v1819
        %v1974 = vadd.f32 %v1550, %v1824
        %v1975 = vadd.f32 %v1555, %v1829
        %v1976 = vadd.f32 %v1560, %v1834
        %v1977 = vadd.f32 %v1565, %v1839
        %v1978 = vadd.f32 %v1570, %v1844
        %v1979 = vadd.f32 %v1575, %v1849
        %v1980 = vadd.f32 %v1580, %v1854
        %v1981 = vadd.f32 %v1585, %v1859
        %v1982 = vadd.f32 %v1590, %v1864
        %v1983 = vadd.f32 %v1595, %v1869
        %v1984 = vadd.f32 %v1600, %v1874
        %v1985 = vadd.f32 %v1605, %v1879
        %v1986 = vadd.f32 %v1610, %v1884
        %v1987 = vadd.f32 %v1615, %v1889
        %v1988 = vadd.f32 %v1620, %v1894
        %v1989 = vadd.f32 %v1625, %v1899
        %v1990 = vadd.f32 %v1630, %v1904
        %v1991 = vadd.f32 %v1635, %v1909
        %v1992 = vadd.f32 %v1640, %v1914
        %v1993 = vadd.f32 %v1645, %v1919
        %v1994 = vadd.f32 %v1650, %v1924
        %v1995 = vadd.f32 %v1655, %v1929
        %v1996 = vadd.f32 %v1660, %v1934
        %v1997 = vadd.f32 %v1665, %v1939
        %v1998 = vadd.f32 %v1670, %v1944
        %v1999 = vadd.f32 %v1675, %v1949
        %v2000 = vadd.f32 %v1680, %v1954
        %v2001 = vadd.f32 %v1685, %v1959
        %v2002 = vadd.f32 %v1690, %v1964
        %v2003 = vadd.f32 %v1695, %v1969
        %v2004 = vld [vmem:[%s1118 + $0x4] sm:$0xff]
        %v2005 = vld [vmem:[%s1118 + $0xc] sm:$0xff]
        %v2006 = vld [vmem:[%s1118 + $0x24] sm:$0xff]
        %v2007 = vld [vmem:[%s1118 + $0x2c] sm:$0xff]
        %v2008 = vld [vmem:[%s1118 + $0x44] sm:$0xff]
        %v2009 = vld [vmem:[%s1118 + $0x4c] sm:$0xff]
        %v2010 = vld [vmem:[%s1118 + $0x64] sm:$0xff]
        %v2011 = vld [vmem:[%s1118 + $0x6c] sm:$0xff]
        %v2012 = vld [vmem:[%s1118 + $0x84] sm:$0xff]
        %v2013 = vld [vmem:[%s1118 + $0x8c] sm:$0xff]
        %v2014 = vld [vmem:[%s1118 + $0xa4] sm:$0xff]
        %v2015 = vld [vmem:[%s1118 + $0xac] sm:$0xff]
        %v2016 = vld [vmem:[%s1118 + $0xc4] sm:$0xff]
        %v2017 = vld [vmem:[%s1118 + $0xcc] sm:$0xff]
        %v2018 = vld [vmem:[%s1118 + $0xe4] sm:$0xff]
        %v2019 = vld [vmem:[%s1118 + $0xec] sm:$0xff]
        %v2020 = vld [vmem:[%s1118 + $0x104] sm:$0xff]
        %v2021 = vld [vmem:[%s1118 + $0x10c] sm:$0xff]
        %v2022 = vld [vmem:[%s1118 + $0x124] sm:$0xff]
        %v2023 = vld [vmem:[%s1118 + $0x12c] sm:$0xff]
        %v2024 = vld [vmem:[%s1118 + $0x144] sm:$0xff]
        %v2025 = vld [vmem:[%s1118 + $0x14c] sm:$0xff]
        %v2026 = vld [vmem:[%s1118 + $0x164] sm:$0xff]
        %v2027 = vld [vmem:[%s1118 + $0x16c] sm:$0xff]
        %v2028 = vld [vmem:[%s1118 + $0x184] sm:$0xff]
        %v2029 = vld [vmem:[%s1118 + $0x18c] sm:$0xff]
        %v2030 = vld [vmem:[%s1118 + $0x1a4] sm:$0xff]
        %v2031 = vld [vmem:[%s1118 + $0x1ac] sm:$0xff]
        %v2032 = vld [vmem:[%s1118 + $0x1c4] sm:$0xff]
        %v2033 = vld [vmem:[%s1118 + $0x1cc] sm:$0xff]
        %v2034 = vld [vmem:[%s1118 + $0x1e4] sm:$0xff]
        %v2035 = vld [vmem:[%s1118 + $0x1ec] sm:$0xff]
        %s2036 = scalar_lea.vmem [#allocation8], 384
        %v2037 = vld [vmem:[%s2036] sm:$0xff]
        %v2038 = vld [vmem:[%s2036 + $0x8] sm:$0xff]
        %v2039 = vld [vmem:[%s2036 + $0x10] sm:$0xff]
        %v2040 = vld [vmem:[%s2036 + $0x18] sm:$0xff]
        %v2041 = vld [vmem:[%s2036 + $0x20] sm:$0xff]
        %v2042 = vld [vmem:[%s2036 + $0x28] sm:$0xff]
        %v2043 = vld [vmem:[%s2036 + $0x30] sm:$0xff]
        %v2044 = vld [vmem:[%s2036 + $0x38] sm:$0xff]
        %v2045 = vld [vmem:[%s2036 + $0x40] sm:$0xff]
        %v2046 = vld [vmem:[%s2036 + $0x48] sm:$0xff]
        %v2047 = vld [vmem:[%s2036 + $0x50] sm:$0xff]
        %v2048 = vld [vmem:[%s2036 + $0x58] sm:$0xff]
        %v2049 = vld [vmem:[%s2036 + $0x60] sm:$0xff]
        %v2050 = vld [vmem:[%s2036 + $0x68] sm:$0xff]
        %v2051 = vld [vmem:[%s2036 + $0x70] sm:$0xff]
        %v2052 = vld [vmem:[%s2036 + $0x78] sm:$0xff]
        %2053 = vmatprep.subr.mxu0 0.0
        %2054 = vmatpush1.msra.mxu0 %v2037
        %2055 = vmatprep.subr.mxu0 0.0
        %2056 = vmatpush1.msra.mxu0 %v2038
        %2057 = vmatprep.subr.mxu0 0.0
        %2058 = vmatpush1.msra.mxu0 %v2039
        %2059 = vmatprep.subr.mxu0 0.0
        %2060 = vmatpush1.msra.mxu0 %v2040
        %2061 = vmatprep.subr.mxu0 0.0
        %2062 = vmatpush1.msra.mxu0 %v2041
        %2063 = vmatprep.subr.mxu0 0.0
        %2064 = vmatpush1.msra.mxu0 %v2042
        %2065 = vmatprep.subr.mxu0 0.0
        %2066 = vmatpush1.msra.mxu0 %v2043
        %2067 = vmatprep.subr.mxu0 0.0
        %2068 = vmatpush1.msra.mxu0 %v2044
        %2069 = vmatprep.subr.mxu0 0.0
        %2070 = vmatpush1.msra.mxu0 %v2045
        %2071 = vmatprep.subr.mxu0 0.0
        %2072 = vmatpush1.msra.mxu0 %v2046
        %2073 = vmatprep.subr.mxu0 0.0
        %2074 = vmatpush1.msra.mxu0 %v2047
        %2075 = vmatprep.subr.mxu0 0.0
        %2076 = vmatpush1.msra.mxu0 %v2048
        %2077 = vmatprep.subr.mxu0 0.0
        %2078 = vmatpush1.msra.mxu0 %v2049
        %2079 = vmatprep.subr.mxu0 0.0
        %2080 = vmatpush1.msra.mxu0 %v2050
        %2081 = vmatprep.subr.mxu0 0.0
        %2082 = vmatpush1.msra.mxu0 %v2051
        %2083 = vmatprep.subr.mxu0 0.0
        %2084 = vmatpush1.msra.mxu0 %v2052
        %2085 = vmatprep.subr.mxu0 0.0
        %2086 = vmatpush1.msra.mxu0 0.0
        %2087 = vmatprep.subr.mxu0 0.0
        %2088 = vmatpush1.msra.mxu0 0.0
        %2089 = vmatprep.subr.mxu0 0.0
        %2090 = vmatpush1.msra.mxu0 0.0
        %2091 = vmatprep.subr.mxu0 0.0
        %2092 = vmatpush1.msra.mxu0 0.0
        %2093 = vmatprep.subr.mxu0 0.0
        %2094 = vmatpush1.msra.mxu0 0.0
        %2095 = vmatprep.subr.mxu0 0.0
        %2096 = vmatpush1.msra.mxu0 0.0
        %2097 = vmatprep.subr.mxu0 0.0
        %2098 = vmatpush1.msra.mxu0 0.0
        %2099 = vmatprep.subr.mxu0 0.0
        %2100 = vmatpush1.msra.mxu0 0.0
        %2101 = vmatprep.subr.mxu0 0.0
        %2102 = vmatpush1.msra.mxu0 0.0
        %2103 = vmatprep.subr.mxu0 0.0
        %2104 = vmatpush1.msra.mxu0 0.0
        %2105 = vmatprep.subr.mxu0 0.0
        %2106 = vmatpush1.msra.mxu0 0.0
        %2107 = vmatprep.subr.mxu0 0.0
        %2108 = vmatpush1.msra.mxu0 0.0
        %2109 = vmatprep.subr.mxu0 0.0
        %2110 = vmatpush1.msra.mxu0 0.0
        %2111 = vmatprep.subr.mxu0 0.0
        %2112 = vmatpush1.msra.mxu0 0.0
        %2113 = vmatprep.subr.mxu0 0.0
        %2114 = vmatpush1.msra.mxu0 0.0
        %2115 = vmatprep.subr.mxu0 0.0
        %2116 = vmatpush1.msra.mxu0 0.0
        %2117 = vmatprep.mubr.f32.mxu0 0.0
        %2118 = vmatmul.mubr.f32.gmra.mrb[0].mxu0 %v2004
        %v2119 = vpop.f32.mrb[0].mxu0
        %v2120 = vadd.f32 0.0, %v2119
        %v2121 = vpop.f32.mrb[0].mxu0
        %2122 = vmatprep.mubr.f32.mxu0 0.0
        %2123 = vmatmul.mubr.f32.gmra.mrb[0].mxu0 %v2005
        %v2124 = vpop.f32.mrb[0].mxu0
        %v2125 = vadd.f32 0.0, %v2124
        %v2126 = vpop.f32.mrb[0].mxu0
        %2127 = vmatprep.mubr.f32.mxu0 0.0
        %2128 = vmatmul.mubr.f32.gmra.mrb[0].mxu0 %v2006
        %v2129 = vpop.f32.mrb[0].mxu0
        %v2130 = vadd.f32 0.0, %v2129
        %v2131 = vpop.f32.mrb[0].mxu0
        %2132 = vmatprep.mubr.f32.mxu0 0.0
        %2133 = vmatmul.mubr.f32.gmra.mrb[0].mxu0 %v2007
        %v2134 = vpop.f32.mrb[0].mxu0
        %v2135 = vadd.f32 0.0, %v2134
        %v2136 = vpop.f32.mrb[0].mxu0
        %2137 = vmatprep.mubr.f32.mxu0 0.0
        %2138 = vmatmul.mubr.f32.gmra.mrb[0].mxu0 %v2008
        %v2139 = vpop.f32.mrb[0].mxu0
        %v2140 = vadd.f32 0.0, %v2139
        %v2141 = vpop.f32.mrb[0].mxu0
        %2142 = vmatprep.mubr.f32.mxu0 0.0
        %2143 = vmatmul.mubr.f32.gmra.mrb[0].mxu0 %v2009
        %v2144 = vpop.f32.mrb[0].mxu0
        %v2145 = vadd.f32 0.0, %v2144
        %v2146 = vpop.f32.mrb[0].mxu0
        %2147 = vmatprep.mubr.f32.mxu0 0.0
        %2148 = vmatmul.mubr.f32.gmra.mrb[0].mxu0 %v2010
        %v2149 = vpop.f32.mrb[0].mxu0
        %v2150 = vadd.f32 0.0, %v2149
        %v2151 = vpop.f32.mrb[0].mxu0
        %2152 = vmatprep.mubr.f32.mxu0 0.0
        %2153 = vmatmul.mubr.f32.gmra.mrb[0].mxu0 %v2011
        %v2154 = vpop.f32.mrb[0].mxu0
        %v2155 = vadd.f32 0.0, %v2154
        %v2156 = vpop.f32.mrb[0].mxu0
        %2157 = vmatprep.mubr.f32.mxu0 0.0
        %2158 = vmatmul.mubr.f32.gmra.mrb[0].mxu0 %v2012
        %v2159 = vpop.f32.mrb[0].mxu0
        %v2160 = vadd.f32 0.0, %v2159
        %v2161 = vpop.f32.mrb[0].mxu0
        %2162 = vmatprep.mubr.f32.mxu0 0.0
        %2163 = vmatmul.mubr.f32.gmra.mrb[0].mxu0 %v2013
        %v2164 = vpop.f32.mrb[0].mxu0
        %v2165 = vadd.f32 0.0, %v2164
        %v2166 = vpop.f32.mrb[0].mxu0
        %2167 = vmatprep.mubr.f32.mxu0 0.0
        %2168 = vmatmul.mubr.f32.gmra.mrb[0].mxu0 %v2014
        %v2169 = vpop.f32.mrb[0].mxu0
        %v2170 = vadd.f32 0.0, %v2169
        %v2171 = vpop.f32.mrb[0].mxu0
        %2172 = vmatprep.mubr.f32.mxu0 0.0
        %2173 = vmatmul.mubr.f32.gmra.mrb[0].mxu0 %v2015
        %v2174 = vpop.f32.mrb[0].mxu0
        %v2175 = vadd.f32 0.0, %v2174
        %v2176 = vpop.f32.mrb[0].mxu0
        %2177 = vmatprep.mubr.f32.mxu0 0.0
        %2178 = vmatmul.mubr.f32.gmra.mrb[0].mxu0 %v2016
        %v2179 = vpop.f32.mrb[0].mxu0
        %v2180 = vadd.f32 0.0, %v2179
        %v2181 = vpop.f32.mrb[0].mxu0
        %2182 = vmatprep.mubr.f32.mxu0 0.0
        %2183 = vmatmul.mubr.f32.gmra.mrb[0].mxu0 %v2017
        %v2184 = vpop.f32.mrb[0].mxu0
        %v2185 = vadd.f32 0.0, %v2184
        %v2186 = vpop.f32.mrb[0].mxu0
        %2187 = vmatprep.mubr.f32.mxu0 0.0
        %2188 = vmatmul.mubr.f32.gmra.mrb[0].mxu0 %v2018
        %v2189 = vpop.f32.mrb[0].mxu0
        %v2190 = vadd.f32 0.0, %v2189
        %v2191 = vpop.f32.mrb[0].mxu0
        %2192 = vmatprep.mubr.f32.mxu0 0.0
        %2193 = vmatmul.mubr.f32.gmra.mrb[0].mxu0 %v2019
        %v2194 = vpop.f32.mrb[0].mxu0
        %v2195 = vadd.f32 0.0, %v2194
        %v2196 = vpop.f32.mrb[0].mxu0
        %2197 = vmatprep.mubr.f32.mxu0 0.0
        %2198 = vmatmul.mubr.f32.gmra.mrb[0].mxu0 %v2020
        %v2199 = vpop.f32.mrb[0].mxu0
        %v2200 = vadd.f32 0.0, %v2199
        %v2201 = vpop.f32.mrb[0].mxu0
        %2202 = vmatprep.mubr.f32.mxu0 0.0
        %2203 = vmatmul.mubr.f32.gmra.mrb[0].mxu0 %v2021
        %v2204 = vpop.f32.mrb[0].mxu0
        %v2205 = vadd.f32 0.0, %v2204
        %v2206 = vpop.f32.mrb[0].mxu0
        %2207 = vmatprep.mubr.f32.mxu0 0.0
        %2208 = vmatmul.mubr.f32.gmra.mrb[0].mxu0 %v2022
        %v2209 = vpop.f32.mrb[0].mxu0
        %v2210 = vadd.f32 0.0, %v2209
        %v2211 = vpop.f32.mrb[0].mxu0
        %2212 = vmatprep.mubr.f32.mxu0 0.0
        %2213 = vmatmul.mubr.f32.gmra.mrb[0].mxu0 %v2023
        %v2214 = vpop.f32.mrb[0].mxu0
        %v2215 = vadd.f32 0.0, %v2214
        %v2216 = vpop.f32.mrb[0].mxu0
        %2217 = vmatprep.mubr.f32.mxu0 0.0
        %2218 = vmatmul.mubr.f32.gmra.mrb[0].mxu0 %v2024
        %v2219 = vpop.f32.mrb[0].mxu0
        %v2220 = vadd.f32 0.0, %v2219
        %v2221 = vpop.f32.mrb[0].mxu0
        %2222 = vmatprep.mubr.f32.mxu0 0.0
        %2223 = vmatmul.mubr.f32.gmra.mrb[0].mxu0 %v2025
        %v2224 = vpop.f32.mrb[0].mxu0
        %v2225 = vadd.f32 0.0, %v2224
        %v2226 = vpop.f32.mrb[0].mxu0
        %2227 = vmatprep.mubr.f32.mxu0 0.0
        %2228 = vmatmul.mubr.f32.gmra.mrb[0].mxu0 %v2026
        %v2229 = vpop.f32.mrb[0].mxu0
        %v2230 = vadd.f32 0.0, %v2229
        %v2231 = vpop.f32.mrb[0].mxu0
        %2232 = vmatprep.mubr.f32.mxu0 0.0
        %2233 = vmatmul.mubr.f32.gmra.mrb[0].mxu0 %v2027
        %v2234 = vpop.f32.mrb[0].mxu0
        %v2235 = vadd.f32 0.0, %v2234
        %v2236 = vpop.f32.mrb[0].mxu0
        %2237 = vmatprep.mubr.f32.mxu0 0.0
        %2238 = vmatmul.mubr.f32.gmra.mrb[0].mxu0 %v2028
        %v2239 = vpop.f32.mrb[0].mxu0
        %v2240 = vadd.f32 0.0, %v2239
        %v2241 = vpop.f32.mrb[0].mxu0
        %2242 = vmatprep.mubr.f32.mxu0 0.0
        %2243 = vmatmul.mubr.f32.gmra.mrb[0].mxu0 %v2029
        %v2244 = vpop.f32.mrb[0].mxu0
        %v2245 = vadd.f32 0.0, %v2244
        %v2246 = vpop.f32.mrb[0].mxu0
        %2247 = vmatprep.mubr.f32.mxu0 0.0
        %2248 = vmatmul.mubr.f32.gmra.mrb[0].mxu0 %v2030
        %v2249 = vpop.f32.mrb[0].mxu0
        %v2250 = vadd.f32 0.0, %v2249
        %v2251 = vpop.f32.mrb[0].mxu0
        %2252 = vmatprep.mubr.f32.mxu0 0.0
        %2253 = vmatmul.mubr.f32.gmra.mrb[0].mxu0 %v2031
        %v2254 = vpop.f32.mrb[0].mxu0
        %v2255 = vadd.f32 0.0, %v2254
        %v2256 = vpop.f32.mrb[0].mxu0
        %2257 = vmatprep.mubr.f32.mxu0 0.0
        %2258 = vmatmul.mubr.f32.gmra.mrb[0].mxu0 %v2032
        %v2259 = vpop.f32.mrb[0].mxu0
        %v2260 = vadd.f32 0.0, %v2259
        %v2261 = vpop.f32.mrb[0].mxu0
        %2262 = vmatprep.mubr.f32.mxu0 0.0
        %2263 = vmatmul.mubr.f32.gmra.mrb[0].mxu0 %v2033
        %v2264 = vpop.f32.mrb[0].mxu0
        %v2265 = vadd.f32 0.0, %v2264
        %v2266 = vpop.f32.mrb[0].mxu0
        %2267 = vmatprep.mubr.f32.mxu0 0.0
        %2268 = vmatmul.mubr.f32.gmra.mrb[0].mxu0 %v2034
        %v2269 = vpop.f32.mrb[0].mxu0
        %v2270 = vadd.f32 0.0, %v2269
        %v2271 = vpop.f32.mrb[0].mxu0
        %2272 = vmatprep.mubr.f32.mxu0 0.0
        %2273 = vmatmul.mubr.f32.gmra.mrb[0].mxu0 %v2035
        %v2274 = vpop.f32.mrb[0].mxu0
        %v2275 = vadd.f32 0.0, %v2274
        %v2276 = vpop.f32.mrb[0].mxu0
        %2277 = vdwg.mxu0
        %v2278 = vadd.f32 %v1972, %v2120
        %v2279 = vadd.f32 %v1973, %v2125
        %v2280 = vadd.f32 %v1974, %v2130
        %v2281 = vadd.f32 %v1975, %v2135
        %v2282 = vadd.f32 %v1976, %v2140
        %v2283 = vadd.f32 %v1977, %v2145
        %v2284 = vadd.f32 %v1978, %v2150
        %v2285 = vadd.f32 %v1979, %v2155
        %v2286 = vadd.f32 %v1980, %v2160
        %v2287 = vadd.f32 %v1981, %v2165
        %v2288 = vadd.f32 %v1982, %v2170
        %v2289 = vadd.f32 %v1983, %v2175
        %v2290 = vadd.f32 %v1984, %v2180
        %v2291 = vadd.f32 %v1985, %v2185
        %v2292 = vadd.f32 %v1986, %v2190
        %v2293 = vadd.f32 %v1987, %v2195
        %v2294 = vadd.f32 %v1988, %v2200
        %v2295 = vadd.f32 %v1989, %v2205
        %v2296 = vadd.f32 %v1990, %v2210
        %v2297 = vadd.f32 %v1991, %v2215
        %v2298 = vadd.f32 %v1992, %v2220
        %v2299 = vadd.f32 %v1993, %v2225
        %v2300 = vadd.f32 %v1994, %v2230
        %v2301 = vadd.f32 %v1995, %v2235
        %v2302 = vadd.f32 %v1996, %v2240
        %v2303 = vadd.f32 %v1997, %v2245
        %v2304 = vadd.f32 %v1998, %v2250
        %v2305 = vadd.f32 %v1999, %v2255
        %v2306 = vadd.f32 %v2000, %v2260
        %v2307 = vadd.f32 %v2001, %v2265
        %v2308 = vadd.f32 %v2002, %v2270
        %v2309 = vadd.f32 %v2003, %v2275
        %v2310 = vld [vmem:[%s1118 + $0x8] sm:$0xff]
        %v2311 = vld [vmem:[%s1118 + $0x10] sm:$0xff]
        %v2312 = vld [vmem:[%s1118 + $0x28] sm:$0xff]
        %v2313 = vld [vmem:[%s1118 + $0x30] sm:$0xff]
        %v2314 = vld [vmem:[%s1118 + $0x48] sm:$0xff]
        %v2315 = vld [vmem:[%s1118 + $0x50] sm:$0xff]
        %v2316 = vld [vmem:[%s1118 + $0x68] sm:$0xff]
        %v2317 = vld [vmem:[%s1118 + $0x70] sm:$0xff]
        %v2318 = vld [vmem:[%s1118 + $0x88] sm:$0xff]
        %v2319 = vld [vmem:[%s1118 + $0x90] sm:$0xff]
        %v2320 = vld [vmem:[%s1118 + $0xa8] sm:$0xff]
        %v2321 = vld [vmem:[%s1118 + $0xb0] sm:$0xff]
        %v2322 = vld [vmem:[%s1118 + $0xc8] sm:$0xff]
        %v2323 = vld [vmem:[%s1118 + $0xd0] sm:$0xff]
        %v2324 = vld [vmem:[%s1118 + $0xe8] sm:$0xff]
        %v2325 = vld [vmem:[%s1118 + $0xf0] sm:$0xff]
        %v2326 = vld [vmem:[%s1118 + $0x108] sm:$0xff]
        %v2327 = vld [vmem:[%s1118 + $0x110] sm:$0xff]
        %v2328 = vld [vmem:[%s1118 + $0x128] sm:$0xff]
        %v2329 = vld [vmem:[%s1118 + $0x130] sm:$0xff]
        %v2330 = vld [vmem:[%s1118 + $0x148] sm:$0xff]
        %v2331 = vld [vmem:[%s1118 + $0x150] sm:$0xff]
        %v2332 = vld [vmem:[%s1118 + $0x168] sm:$0xff]
        %v2333 = vld [vmem:[%s1118 + $0x170] sm:$0xff]
        %v2334 = vld [vmem:[%s1118 + $0x188] sm:$0xff]
        %v2335 = vld [vmem:[%s1118 + $0x190] sm:$0xff]
        %v2336 = vld [vmem:[%s1118 + $0x1a8] sm:$0xff]
        %v2337 = vld [vmem:[%s1118 + $0x1b0] sm:$0xff]
        %v2338 = vld [vmem:[%s1118 + $0x1c8] sm:$0xff]
        %v2339 = vld [vmem:[%s1118 + $0x1d0] sm:$0xff]
        %v2340 = vld [vmem:[%s1118 + $0x1e8] sm:$0xff]
        %v2341 = vld [vmem:[%s1118 + $0x1f0] sm:$0xff]
        %s2342 = scalar_lea.vmem [#allocation8], 512
        %v2343 = vld [vmem:[%s2342] sm:$0xff]
        %v2344 = vld [vmem:[%s2342 + $0x8] sm:$0xff]
        %v2345 = vld [vmem:[%s2342 + $0x10] sm:$0xff]
        %v2346 = vld [vmem:[%s2342 + $0x18] sm:$0xff]
        %v2347 = vld [vmem:[%s2342 + $0x20] sm:$0xff]
        %v2348 = vld [vmem:[%s2342 + $0x28] sm:$0xff]
        %v2349 = vld [vmem:[%s2342 + $0x30] sm:$0xff]
        %v2350 = vld [vmem:[%s2342 + $0x38] sm:$0xff]
        %v2351 = vld [vmem:[%s2342 + $0x40] sm:$0xff]
        %v2352 = vld [vmem:[%s2342 + $0x48] sm:$0xff]
        %v2353 = vld [vmem:[%s2342 + $0x50] sm:$0xff]
        %v2354 = vld [vmem:[%s2342 + $0x58] sm:$0xff]
        %v2355 = vld [vmem:[%s2342 + $0x60] sm:$0xff]
        %v2356 = vld [vmem:[%s2342 + $0x68] sm:$0xff]
        %v2357 = vld [vmem:[%s2342 + $0x70] sm:$0xff]
        %v2358 = vld [vmem:[%s2342 + $0x78] sm:$0xff]
        %2359 = vmatprep.subr.mxu0 0.0
        %2360 = vmatpush1.msra.mxu0 %v2343
        %2361 = vmatprep.subr.mxu0 0.0
        %2362 = vmatpush1.msra.mxu0 %v2344
        %2363 = vmatprep.subr.mxu0 0.0
        %2364 = vmatpush1.msra.mxu0 %v2345
        %2365 = vmatprep.subr.mxu0 0.0
        %2366 = vmatpush1.msra.mxu0 %v2346
        %2367 = vmatprep.subr.mxu0 0.0
        %2368 = vmatpush1.msra.mxu0 %v2347
        %2369 = vmatprep.subr.mxu0 0.0
        %2370 = vmatpush1.msra.mxu0 %v2348
        %2371 = vmatprep.subr.mxu0 0.0
        %2372 = vmatpush1.msra.mxu0 %v2349
        %2373 = vmatprep.subr.mxu0 0.0
        %2374 = vmatpush1.msra.mxu0 %v2350
        %2375 = vmatprep.subr.mxu0 0.0
        %2376 = vmatpush1.msra.mxu0 %v2351
        %2377 = vmatprep.subr.mxu0 0.0
        %2378 = vmatpush1.msra.mxu0 %v2352
        %2379 = vmatprep.subr.mxu0 0.0
        %2380 = vmatpush1.msra.mxu0 %v2353
        %2381 = vmatprep.subr.mxu0 0.0
        %2382 = vmatpush1.msra.mxu0 %v2354
        %2383 = vmatprep.subr.mxu0 0.0
        %2384 = vmatpush1.msra.mxu0 %v2355
        %2385 = vmatprep.subr.mxu0 0.0
        %2386 = vmatpush1.msra.mxu0 %v2356
        %2387 = vmatprep.subr.mxu0 0.0
        %2388 = vmatpush1.msra.mxu0 %v2357
        %2389 = vmatprep.subr.mxu0 0.0
        %2390 = vmatpush1.msra.mxu0 %v2358
        %2391 = vmatprep.subr.mxu0 0.0
        %2392 = vmatpush1.msra.mxu0 0.0
        %2393 = vmatprep.subr.mxu0 0.0
        %2394 = vmatpush1.msra.mxu0 0.0
        %2395 = vmatprep.subr.mxu0 0.0
        %2396 = vmatpush1.msra.mxu0 0.0
        %2397 = vmatprep.subr.mxu0 0.0
        %2398 = vmatpush1.msra.mxu0 0.0
        %2399 = vmatprep.subr.mxu0 0.0
        %2400 = vmatpush1.msra.mxu0 0.0
        %2401 = vmatprep.subr.mxu0 0.0
        %2402 = vmatpush1.msra.mxu0 0.0
        %2403 = vmatprep.subr.mxu0 0.0
        %2404 = vmatpush1.msra.mxu0 0.0
        %2405 = vmatprep.subr.mxu0 0.0
        %2406 = vmatpush1.msra.mxu0 0.0
        %2407 = vmatprep.subr.mxu0 0.0
        %2408 = vmatpush1.msra.mxu0 0.0
        %2409 = vmatprep.subr.mxu0 0.0
        %2410 = vmatpush1.msra.mxu0 0.0
        %2411 = vmatprep.subr.mxu0 0.0
        %2412 = vmatpush1.msra.mxu0 0.0
        %2413 = vmatprep.subr.mxu0 0.0
        %2414 = vmatpush1.msra.mxu0 0.0
        %2415 = vmatprep.subr.mxu0 0.0
        %2416 = vmatpush1.msra.mxu0 0.0
        %2417 = vmatprep.subr.mxu0 0.0
        %2418 = vmatpush1.msra.mxu0 0.0
        %2419 = vmatprep.subr.mxu0 0.0
        %2420 = vmatpush1.msra.mxu0 0.0
        %2421 = vmatprep.subr.mxu0 0.0
        %2422 = vmatpush1.msra.mxu0 0.0
        %2423 = vmatprep.mubr.f32.mxu0 0.0
        %2424 = vmatmul.mubr.f32.gmra.mrb[0].mxu0 %v2310
        %v2425 = vpop.f32.mrb[0].mxu0
        %v2426 = vadd.f32 0.0, %v2425
        %v2427 = vpop.f32.mrb[0].mxu0
        %2428 = vmatprep.mubr.f32.mxu0 0.0
        %2429 = vmatmul.mubr.f32.gmra.mrb[0].mxu0 %v2311
        %v2430 = vpop.f32.mrb[0].mxu0
        %v2431 = vadd.f32 0.0, %v2430
        %v2432 = vpop.f32.mrb[0].mxu0
        %2433 = vmatprep.mubr.f32.mxu0 0.0
        %2434 = vmatmul.mubr.f32.gmra.mrb[0].mxu0 %v2312
        %v2435 = vpop.f32.mrb[0].mxu0
        %v2436 = vadd.f32 0.0, %v2435
        %v2437 = vpop.f32.mrb[0].mxu0
        %2438 = vmatprep.mubr.f32.mxu0 0.0
        %2439 = vmatmul.mubr.f32.gmra.mrb[0].mxu0 %v2313
        %v2440 = vpop.f32.mrb[0].mxu0
        %v2441 = vadd.f32 0.0, %v2440
        %v2442 = vpop.f32.mrb[0].mxu0
        %2443 = vmatprep.mubr.f32.mxu0 0.0
        %2444 = vmatmul.mubr.f32.gmra.mrb[0].mxu0 %v2314
        %v2445 = vpop.f32.mrb[0].mxu0
        %v2446 = vadd.f32 0.0, %v2445
        %v2447 = vpop.f32.mrb[0].mxu0
        %2448 = vmatprep.mubr.f32.mxu0 0.0
        %2449 = vmatmul.mubr.f32.gmra.mrb[0].mxu0 %v2315
        %v2450 = vpop.f32.mrb[0].mxu0
        %v2451 = vadd.f32 0.0, %v2450
        %v2452 = vpop.f32.mrb[0].mxu0
        %2453 = vmatprep.mubr.f32.mxu0 0.0
        %2454 = vmatmul.mubr.f32.gmra.mrb[0].mxu0 %v2316
        %v2455 = vpop.f32.mrb[0].mxu0
        %v2456 = vadd.f32 0.0, %v2455
        %v2457 = vpop.f32.mrb[0].mxu0
        %2458 = vmatprep.mubr.f32.mxu0 0.0
        %2459 = vmatmul.mubr.f32.gmra.mrb[0].mxu0 %v2317
        %v2460 = vpop.f32.mrb[0].mxu0
        %v2461 = vadd.f32 0.0, %v2460
        %v2462 = vpop.f32.mrb[0].mxu0
        %2463 = vmatprep.mubr.f32.mxu0 0.0
        %2464 = vmatmul.mubr.f32.gmra.mrb[0].mxu0 %v2318
        %v2465 = vpop.f32.mrb[0].mxu0
        %v2466 = vadd.f32 0.0, %v2465
        %v2467 = vpop.f32.mrb[0].mxu0
        %2468 = vmatprep.mubr.f32.mxu0 0.0
        %2469 = vmatmul.mubr.f32.gmra.mrb[0].mxu0 %v2319
        %v2470 = vpop.f32.mrb[0].mxu0
        %v2471 = vadd.f32 0.0, %v2470
        %v2472 = vpop.f32.mrb[0].mxu0
        %2473 = vmatprep.mubr.f32.mxu0 0.0
        %2474 = vmatmul.mubr.f32.gmra.mrb[0].mxu0 %v2320
        %v2475 = vpop.f32.mrb[0].mxu0
        %v2476 = vadd.f32 0.0, %v2475
        %v2477 = vpop.f32.mrb[0].mxu0
        %2478 = vmatprep.mubr.f32.mxu0 0.0
        %2479 = vmatmul.mubr.f32.gmra.mrb[0].mxu0 %v2321
        %v2480 = vpop.f32.mrb[0].mxu0
        %v2481 = vadd.f32 0.0, %v2480
        %v2482 = vpop.f32.mrb[0].mxu0
        %2483 = vmatprep.mubr.f32.mxu0 0.0
        %2484 = vmatmul.mubr.f32.gmra.mrb[0].mxu0 %v2322
        %v2485 = vpop.f32.mrb[0].mxu0
        %v2486 = vadd.f32 0.0, %v2485
        %v2487 = vpop.f32.mrb[0].mxu0
        %2488 = vmatprep.mubr.f32.mxu0 0.0
        %2489 = vmatmul.mubr.f32.gmra.mrb[0].mxu0 %v2323
        %v2490 = vpop.f32.mrb[0].mxu0
        %v2491 = vadd.f32 0.0, %v2490
        %v2492 = vpop.f32.mrb[0].mxu0
        %2493 = vmatprep.mubr.f32.mxu0 0.0
        %2494 = vmatmul.mubr.f32.gmra.mrb[0].mxu0 %v2324
        %v2495 = vpop.f32.mrb[0].mxu0
        %v2496 = vadd.f32 0.0, %v2495
        %v2497 = vpop.f32.mrb[0].mxu0
        %2498 = vmatprep.mubr.f32.mxu0 0.0
        %2499 = vmatmul.mubr.f32.gmra.mrb[0].mxu0 %v2325
        %v2500 = vpop.f32.mrb[0].mxu0
        %v2501 = vadd.f32 0.0, %v2500
        %v2502 = vpop.f32.mrb[0].mxu0
        %2503 = vmatprep.mubr.f32.mxu0 0.0
        %2504 = vmatmul.mubr.f32.gmra.mrb[0].mxu0 %v2326
        %v2505 = vpop.f32.mrb[0].mxu0
        %v2506 = vadd.f32 0.0, %v2505
        %v2507 = vpop.f32.mrb[0].mxu0
        %2508 = vmatprep.mubr.f32.mxu0 0.0
        %2509 = vmatmul.mubr.f32.gmra.mrb[0].mxu0 %v2327
        %v2510 = vpop.f32.mrb[0].mxu0
        %v2511 = vadd.f32 0.0, %v2510
        %v2512 = vpop.f32.mrb[0].mxu0
        %2513 = vmatprep.mubr.f32.mxu0 0.0
        %2514 = vmatmul.mubr.f32.gmra.mrb[0].mxu0 %v2328
        %v2515 = vpop.f32.mrb[0].mxu0
        %v2516 = vadd.f32 0.0, %v2515
        %v2517 = vpop.f32.mrb[0].mxu0
        %2518 = vmatprep.mubr.f32.mxu0 0.0
        %2519 = vmatmul.mubr.f32.gmra.mrb[0].mxu0 %v2329
        %v2520 = vpop.f32.mrb[0].mxu0
        %v2521 = vadd.f32 0.0, %v2520
        %v2522 = vpop.f32.mrb[0].mxu0
        %2523 = vmatprep.mubr.f32.mxu0 0.0
        %2524 = vmatmul.mubr.f32.gmra.mrb[0].mxu0 %v2330
        %v2525 = vpop.f32.mrb[0].mxu0
        %v2526 = vadd.f32 0.0, %v2525
        %v2527 = vpop.f32.mrb[0].mxu0
        %2528 = vmatprep.mubr.f32.mxu0 0.0
        %2529 = vmatmul.mubr.f32.gmra.mrb[0].mxu0 %v2331
        %v2530 = vpop.f32.mrb[0].mxu0
        %v2531 = vadd.f32 0.0, %v2530
        %v2532 = vpop.f32.mrb[0].mxu0
        %2533 = vmatprep.mubr.f32.mxu0 0.0
        %2534 = vmatmul.mubr.f32.gmra.mrb[0].mxu0 %v2332
        %v2535 = vpop.f32.mrb[0].mxu0
        %v2536 = vadd.f32 0.0, %v2535
        %v2537 = vpop.f32.mrb[0].mxu0
        %2538 = vmatprep.mubr.f32.mxu0 0.0
        %2539 = vmatmul.mubr.f32.gmra.mrb[0].mxu0 %v2333
        %v2540 = vpop.f32.mrb[0].mxu0
        %v2541 = vadd.f32 0.0, %v2540
        %v2542 = vpop.f32.mrb[0].mxu0
        %2543 = vmatprep.mubr.f32.mxu0 0.0
        %2544 = vmatmul.mubr.f32.gmra.mrb[0].mxu0 %v2334
        %v2545 = vpop.f32.mrb[0].mxu0
        %v2546 = vadd.f32 0.0, %v2545
        %v2547 = vpop.f32.mrb[0].mxu0
        %2548 = vmatprep.mubr.f32.mxu0 0.0
        %2549 = vmatmul.mubr.f32.gmra.mrb[0].mxu0 %v2335
        %v2550 = vpop.f32.mrb[0].mxu0
        %v2551 = vadd.f32 0.0, %v2550
        %v2552 = vpop.f32.mrb[0].mxu0
        %2553 = vmatprep.mubr.f32.mxu0 0.0
        %2554 = vmatmul.mubr.f32.gmra.mrb[0].mxu0 %v2336
        %v2555 = vpop.f32.mrb[0].mxu0
        %v2556 = vadd.f32 0.0, %v2555
        %v2557 = vpop.f32.mrb[0].mxu0
        %2558 = vmatprep.mubr.f32.mxu0 0.0
        %2559 = vmatmul.mubr.f32.gmra.mrb[0].mxu0 %v2337
        %v2560 = vpop.f32.mrb[0].mxu0
        %v2561 = vadd.f32 0.0, %v2560
        %v2562 = vpop.f32.mrb[0].mxu0
        %2563 = vmatprep.mubr.f32.mxu0 0.0
        %2564 = vmatmul.mubr.f32.gmra.mrb[0].mxu0 %v2338
        %v2565 = vpop.f32.mrb[0].mxu0
        %v2566 = vadd.f32 0.0, %v2565
        %v2567 = vpop.f32.mrb[0].mxu0
        %2568 = vmatprep.mubr.f32.mxu0 0.0
        %2569 = vmatmul.mubr.f32.gmra.mrb[0].mxu0 %v2339
        %v2570 = vpop.f32.mrb[0].mxu0
        %v2571 = vadd.f32 0.0, %v2570
        %v2572 = vpop.f32.mrb[0].mxu0
        %2573 = vmatprep.mubr.f32.mxu0 0.0
        %2574 = vmatmul.mubr.f32.gmra.mrb[0].mxu0 %v2340
        %v2575 = vpop.f32.mrb[0].mxu0
        %v2576 = vadd.f32 0.0, %v2575
        %v2577 = vpop.f32.mrb[0].mxu0
        %2578 = vmatprep.mubr.f32.mxu0 0.0
        %2579 = vmatmul.mubr.f32.gmra.mrb[0].mxu0 %v2341
        %v2580 = vpop.f32.mrb[0].mxu0
        %v2581 = vadd.f32 0.0, %v2580
        %v2582 = vpop.f32.mrb[0].mxu0
        %2583 = vdwg.mxu0
        %v2584 = vadd.f32 %v2278, %v2426
        %v2585 = vadd.f32 %v2279, %v2431
        %v2586 = vadd.f32 %v2280, %v2436
        %v2587 = vadd.f32 %v2281, %v2441
        %v2588 = vadd.f32 %v2282, %v2446
        %v2589 = vadd.f32 %v2283, %v2451
        %v2590 = vadd.f32 %v2284, %v2456
        %v2591 = vadd.f32 %v2285, %v2461
        %v2592 = vadd.f32 %v2286, %v2466
        %v2593 = vadd.f32 %v2287, %v2471
        %v2594 = vadd.f32 %v2288, %v2476
        %v2595 = vadd.f32 %v2289, %v2481
        %v2596 = vadd.f32 %v2290, %v2486
        %v2597 = vadd.f32 %v2291, %v2491
        %v2598 = vadd.f32 %v2292, %v2496
        %v2599 = vadd.f32 %v2293, %v2501
        %v2600 = vadd.f32 %v2294, %v2506
        %v2601 = vadd.f32 %v2295, %v2511
        %v2602 = vadd.f32 %v2296, %v2516
        %v2603 = vadd.f32 %v2297, %v2521
        %v2604 = vadd.f32 %v2298, %v2526
        %v2605 = vadd.f32 %v2299, %v2531
        %v2606 = vadd.f32 %v2300, %v2536
        %v2607 = vadd.f32 %v2301, %v2541
        %v2608 = vadd.f32 %v2302, %v2546
        %v2609 = vadd.f32 %v2303, %v2551
        %v2610 = vadd.f32 %v2304, %v2556
        %v2611 = vadd.f32 %v2305, %v2561
        %v2612 = vadd.f32 %v2306, %v2566
        %v2613 = vadd.f32 %v2307, %v2571
        %v2614 = vadd.f32 %v2308, %v2576
        %v2615 = vadd.f32 %v2309, %v2581
        %v2616 = vld [vmem:[%s1118 + $0xc] sm:$0xff]
        %v2617 = vld [vmem:[%s1118 + $0x14] sm:$0xff]
        %v2618 = vld [vmem:[%s1118 + $0x2c] sm:$0xff]
        %v2619 = vld [vmem:[%s1118 + $0x34] sm:$0xff]
        %v2620 = vld [vmem:[%s1118 + $0x4c] sm:$0xff]
        %v2621 = vld [vmem:[%s1118 + $0x54] sm:$0xff]
        %v2622 = vld [vmem:[%s1118 + $0x6c] sm:$0xff]
        %v2623 = vld [vmem:[%s1118 + $0x74] sm:$0xff]
        %v2624 = vld [vmem:[%s1118 + $0x8c] sm:$0xff]
        %v2625 = vld [vmem:[%s1118 + $0x94] sm:$0xff]
        %v2626 = vld [vmem:[%s1118 + $0xac] sm:$0xff]
        %v2627 = vld [vmem:[%s1118 + $0xb4] sm:$0xff]
        %v2628 = vld [vmem:[%s1118 + $0xcc] sm:$0xff]
        %v2629 = vld [vmem:[%s1118 + $0xd4] sm:$0xff]
        %v2630 = vld [vmem:[%s1118 + $0xec] sm:$0xff]
        %v2631 = vld [vmem:[%s1118 + $0xf4] sm:$0xff]
        %v2632 = vld [vmem:[%s1118 + $0x10c] sm:$0xff]
        %v2633 = vld [vmem:[%s1118 + $0x114] sm:$0xff]
        %v2634 = vld [vmem:[%s1118 + $0x12c] sm:$0xff]
        %v2635 = vld [vmem:[%s1118 + $0x134] sm:$0xff]
        %v2636 = vld [vmem:[%s1118 + $0x14c] sm:$0xff]
        %v2637 = vld [vmem:[%s1118 + $0x154] sm:$0xff]
        %v2638 = vld [vmem:[%s1118 + $0x16c] sm:$0xff]
        %v2639 = vld [vmem:[%s1118 + $0x174] sm:$0xff]
        %v2640 = vld [vmem:[%s1118 + $0x18c] sm:$0xff]
        %v2641 = vld [vmem:[%s1118 + $0x194] sm:$0xff]
        %v2642 = vld [vmem:[%s1118 + $0x1ac] sm:$0xff]
        %v2643 = vld [vmem:[%s1118 + $0x1b4] sm:$0xff]
        %v2644 = vld [vmem:[%s1118 + $0x1cc] sm:$0xff]
        %v2645 = vld [vmem:[%s1118 + $0x1d4] sm:$0xff]
        %v2646 = vld [vmem:[%s1118 + $0x1ec] sm:$0xff]
        %v2647 = vld [vmem:[%s1118 + $0x1f4] sm:$0xff]
        %s2648 = scalar_lea.vmem [#allocation8], 640
        %v2649 = vld [vmem:[%s2648] sm:$0xff]
        %v2650 = vld [vmem:[%s2648 + $0x8] sm:$0xff]
        %v2651 = vld [vmem:[%s2648 + $0x10] sm:$0xff]
        %v2652 = vld [vmem:[%s2648 + $0x18] sm:$0xff]
        %v2653 = vld [vmem:[%s2648 + $0x20] sm:$0xff]
        %v2654 = vld [vmem:[%s2648 + $0x28] sm:$0xff]
        %v2655 = vld [vmem:[%s2648 + $0x30] sm:$0xff]
        %v2656 = vld [vmem:[%s2648 + $0x38] sm:$0xff]
        %v2657 = vld [vmem:[%s2648 + $0x40] sm:$0xff]
        %v2658 = vld [vmem:[%s2648 + $0x48] sm:$0xff]
        %v2659 = vld [vmem:[%s2648 + $0x50] sm:$0xff]
        %v2660 = vld [vmem:[%s2648 + $0x58] sm:$0xff]
        %v2661 = vld [vmem:[%s2648 + $0x60] sm:$0xff]
        %v2662 = vld [vmem:[%s2648 + $0x68] sm:$0xff]
        %v2663 = vld [vmem:[%s2648 + $0x70] sm:$0xff]
        %v2664 = vld [vmem:[%s2648 + $0x78] sm:$0xff]
        %2665 = vmatprep.subr.mxu0 0.0
        %2666 = vmatpush1.msra.mxu0 %v2649
        %2667 = vmatprep.subr.mxu0 0.0
        %2668 = vmatpush1.msra.mxu0 %v2650
        %2669 = vmatprep.subr.mxu0 0.0
        %2670 = vmatpush1.msra.mxu0 %v2651
        %2671 = vmatprep.subr.mxu0 0.0
        %2672 = vmatpush1.msra.mxu0 %v2652
        %2673 = vmatprep.subr.mxu0 0.0
        %2674 = vmatpush1.msra.mxu0 %v2653
        %2675 = vmatprep.subr.mxu0 0.0
        %2676 = vmatpush1.msra.mxu0 %v2654
        %2677 = vmatprep.subr.mxu0 0.0
        %2678 = vmatpush1.msra.mxu0 %v2655
        %2679 = vmatprep.subr.mxu0 0.0
        %2680 = vmatpush1.msra.mxu0 %v2656
        %2681 = vmatprep.subr.mxu0 0.0
        %2682 = vmatpush1.msra.mxu0 %v2657
        %2683 = vmatprep.subr.mxu0 0.0
        %2684 = vmatpush1.msra.mxu0 %v2658
        %2685 = vmatprep.subr.mxu0 0.0
        %2686 = vmatpush1.msra.mxu0 %v2659
        %2687 = vmatprep.subr.mxu0 0.0
        %2688 = vmatpush1.msra.mxu0 %v2660
        %2689 = vmatprep.subr.mxu0 0.0
        %2690 = vmatpush1.msra.mxu0 %v2661
        %2691 = vmatprep.subr.mxu0 0.0
        %2692 = vmatpush1.msra.mxu0 %v2662
        %2693 = vmatprep.subr.mxu0 0.0
        %2694 = vmatpush1.msra.mxu0 %v2663
        %2695 = vmatprep.subr.mxu0 0.0
        %2696 = vmatpush1.msra.mxu0 %v2664
        %2697 = vmatprep.subr.mxu0 0.0
        %2698 = vmatpush1.msra.mxu0 0.0
        %2699 = vmatprep.subr.mxu0 0.0
        %2700 = vmatpush1.msra.mxu0 0.0
        %2701 = vmatprep.subr.mxu0 0.0
        %2702 = vmatpush1.msra.mxu0 0.0
        %2703 = vmatprep.subr.mxu0 0.0
        %2704 = vmatpush1.msra.mxu0 0.0
        %2705 = vmatprep.subr.mxu0 0.0
        %2706 = vmatpush1.msra.mxu0 0.0
        %2707 = vmatprep.subr.mxu0 0.0
        %2708 = vmatpush1.msra.mxu0 0.0
        %2709 = vmatprep.subr.mxu0 0.0
        %2710 = vmatpush1.msra.mxu0 0.0
        %2711 = vmatprep.subr.mxu0 0.0
        %2712 = vmatpush1.msra.mxu0 0.0
        %2713 = vmatprep.subr.mxu0 0.0
        %2714 = vmatpush1.msra.mxu0 0.0
        %2715 = vmatprep.subr.mxu0 0.0
        %2716 = vmatpush1.msra.mxu0 0.0
        %2717 = vmatprep.subr.mxu0 0.0
        %2718 = vmatpush1.msra.mxu0 0.0
        %2719 = vmatprep.subr.mxu0 0.0
        %2720 = vmatpush1.msra.mxu0 0.0
        %2721 = vmatprep.subr.mxu0 0.0
        %2722 = vmatpush1.msra.mxu0 0.0
        %2723 = vmatprep.subr.mxu0 0.0
        %2724 = vmatpush1.msra.mxu0 0.0
        %2725 = vmatprep.subr.mxu0 0.0
        %2726 = vmatpush1.msra.mxu0 0.0
        %2727 = vmatprep.subr.mxu0 0.0
        %2728 = vmatpush1.msra.mxu0 0.0
        %2729 = vmatprep.mubr.f32.mxu0 0.0
        %2730 = vmatmul.mubr.f32.gmra.mrb[0].mxu0 %v2616
        %v2731 = vpop.f32.mrb[0].mxu0
        %v2732 = vadd.f32 0.0, %v2731
        %v2733 = vpop.f32.mrb[0].mxu0
        %2734 = vmatprep.mubr.f32.mxu0 0.0
        %2735 = vmatmul.mubr.f32.gmra.mrb[0].mxu0 %v2617
        %v2736 = vpop.f32.mrb[0].mxu0
        %v2737 = vadd.f32 0.0, %v2736
        %v2738 = vpop.f32.mrb[0].mxu0
        %2739 = vmatprep.mubr.f32.mxu0 0.0
        %2740 = vmatmul.mubr.f32.gmra.mrb[0].mxu0 %v2618
        %v2741 = vpop.f32.mrb[0].mxu0
        %v2742 = vadd.f32 0.0, %v2741
        %v2743 = vpop.f32.mrb[0].mxu0
        %2744 = vmatprep.mubr.f32.mxu0 0.0
        %2745 = vmatmul.mubr.f32.gmra.mrb[0].mxu0 %v2619
        %v2746 = vpop.f32.mrb[0].mxu0
        %v2747 = vadd.f32 0.0, %v2746
        %v2748 = vpop.f32.mrb[0].mxu0
        %2749 = vmatprep.mubr.f32.mxu0 0.0
        %2750 = vmatmul.mubr.f32.gmra.mrb[0].mxu0 %v2620
        %v2751 = vpop.f32.mrb[0].mxu0
        %v2752 = vadd.f32 0.0, %v2751
        %v2753 = vpop.f32.mrb[0].mxu0
        %2754 = vmatprep.mubr.f32.mxu0 0.0
        %2755 = vmatmul.mubr.f32.gmra.mrb[0].mxu0 %v2621
        %v2756 = vpop.f32.mrb[0].mxu0
        %v2757 = vadd.f32 0.0, %v2756
        %v2758 = vpop.f32.mrb[0].mxu0
        %2759 = vmatprep.mubr.f32.mxu0 0.0
        %2760 = vmatmul.mubr.f32.gmra.mrb[0].mxu0 %v2622
        %v2761 = vpop.f32.mrb[0].mxu0
        %v2762 = vadd.f32 0.0, %v2761
        %v2763 = vpop.f32.mrb[0].mxu0
        %2764 = vmatprep.mubr.f32.mxu0 0.0
        %2765 = vmatmul.mubr.f32.gmra.mrb[0].mxu0 %v2623
        %v2766 = vpop.f32.mrb[0].mxu0
        %v2767 = vadd.f32 0.0, %v2766
        %v2768 = vpop.f32.mrb[0].mxu0
        %2769 = vmatprep.mubr.f32.mxu0 0.0
        %2770 = vmatmul.mubr.f32.gmra.mrb[0].mxu0 %v2624
        %v2771 = vpop.f32.mrb[0].mxu0
        %v2772 = vadd.f32 0.0, %v2771
        %v2773 = vpop.f32.mrb[0].mxu0
        %2774 = vmatprep.mubr.f32.mxu0 0.0
        %2775 = vmatmul.mubr.f32.gmra.mrb[0].mxu0 %v2625
        %v2776 = vpop.f32.mrb[0].mxu0
        %v2777 = vadd.f32 0.0, %v2776
        %v2778 = vpop.f32.mrb[0].mxu0
        %2779 = vmatprep.mubr.f32.mxu0 0.0
        %2780 = vmatmul.mubr.f32.gmra.mrb[0].mxu0 %v2626
        %v2781 = vpop.f32.mrb[0].mxu0
        %v2782 = vadd.f32 0.0, %v2781
        %v2783 = vpop.f32.mrb[0].mxu0
        %2784 = vmatprep.mubr.f32.mxu0 0.0
        %2785 = vmatmul.mubr.f32.gmra.mrb[0].mxu0 %v2627
        %v2786 = vpop.f32.mrb[0].mxu0
        %v2787 = vadd.f32 0.0, %v2786
        %v2788 = vpop.f32.mrb[0].mxu0
        %2789 = vmatprep.mubr.f32.mxu0 0.0
        %2790 = vmatmul.mubr.f32.gmra.mrb[0].mxu0 %v2628
        %v2791 = vpop.f32.mrb[0].mxu0
        %v2792 = vadd.f32 0.0, %v2791
        %v2793 = vpop.f32.mrb[0].mxu0
        %2794 = vmatprep.mubr.f32.mxu0 0.0
        %2795 = vmatmul.mubr.f32.gmra.mrb[0].mxu0 %v2629
        %v2796 = vpop.f32.mrb[0].mxu0
        %v2797 = vadd.f32 0.0, %v2796
        %v2798 = vpop.f32.mrb[0].mxu0
        %2799 = vmatprep.mubr.f32.mxu0 0.0
        %2800 = vmatmul.mubr.f32.gmra.mrb[0].mxu0 %v2630
        %v2801 = vpop.f32.mrb[0].mxu0
        %v2802 = vadd.f32 0.0, %v2801
        %v2803 = vpop.f32.mrb[0].mxu0
        %2804 = vmatprep.mubr.f32.mxu0 0.0
        %2805 = vmatmul.mubr.f32.gmra.mrb[0].mxu0 %v2631
        %v2806 = vpop.f32.mrb[0].mxu0
        %v2807 = vadd.f32 0.0, %v2806
        %v2808 = vpop.f32.mrb[0].mxu0
        %2809 = vmatprep.mubr.f32.mxu0 0.0
        %2810 = vmatmul.mubr.f32.gmra.mrb[0].mxu0 %v2632
        %v2811 = vpop.f32.mrb[0].mxu0
        %v2812 = vadd.f32 0.0, %v2811
        %v2813 = vpop.f32.mrb[0].mxu0
        %2814 = vmatprep.mubr.f32.mxu0 0.0
        %2815 = vmatmul.mubr.f32.gmra.mrb[0].mxu0 %v2633
        %v2816 = vpop.f32.mrb[0].mxu0
        %v2817 = vadd.f32 0.0, %v2816
        %v2818 = vpop.f32.mrb[0].mxu0
        %2819 = vmatprep.mubr.f32.mxu0 0.0
        %2820 = vmatmul.mubr.f32.gmra.mrb[0].mxu0 %v2634
        %v2821 = vpop.f32.mrb[0].mxu0
        %v2822 = vadd.f32 0.0, %v2821
        %v2823 = vpop.f32.mrb[0].mxu0
        %2824 = vmatprep.mubr.f32.mxu0 0.0
        %2825 = vmatmul.mubr.f32.gmra.mrb[0].mxu0 %v2635
        %v2826 = vpop.f32.mrb[0].mxu0
        %v2827 = vadd.f32 0.0, %v2826
        %v2828 = vpop.f32.mrb[0].mxu0
        %2829 = vmatprep.mubr.f32.mxu0 0.0
        %2830 = vmatmul.mubr.f32.gmra.mrb[0].mxu0 %v2636
        %v2831 = vpop.f32.mrb[0].mxu0
        %v2832 = vadd.f32 0.0, %v2831
        %v2833 = vpop.f32.mrb[0].mxu0
        %2834 = vmatprep.mubr.f32.mxu0 0.0
        %2835 = vmatmul.mubr.f32.gmra.mrb[0].mxu0 %v2637
        %v2836 = vpop.f32.mrb[0].mxu0
        %v2837 = vadd.f32 0.0, %v2836
        %v2838 = vpop.f32.mrb[0].mxu0
        %2839 = vmatprep.mubr.f32.mxu0 0.0
        %2840 = vmatmul.mubr.f32.gmra.mrb[0].mxu0 %v2638
        %v2841 = vpop.f32.mrb[0].mxu0
        %v2842 = vadd.f32 0.0, %v2841
        %v2843 = vpop.f32.mrb[0].mxu0
        %2844 = vmatprep.mubr.f32.mxu0 0.0
        %2845 = vmatmul.mubr.f32.gmra.mrb[0].mxu0 %v2639
        %v2846 = vpop.f32.mrb[0].mxu0
        %v2847 = vadd.f32 0.0, %v2846
        %v2848 = vpop.f32.mrb[0].mxu0
        %2849 = vmatprep.mubr.f32.mxu0 0.0
        %2850 = vmatmul.mubr.f32.gmra.mrb[0].mxu0 %v2640
        %v2851 = vpop.f32.mrb[0].mxu0
        %v2852 = vadd.f32 0.0, %v2851
        %v2853 = vpop.f32.mrb[0].mxu0
        %2854 = vmatprep.mubr.f32.mxu0 0.0
        %2855 = vmatmul.mubr.f32.gmra.mrb[0].mxu0 %v2641
        %v2856 = vpop.f32.mrb[0].mxu0
        %v2857 = vadd.f32 0.0, %v2856
        %v2858 = vpop.f32.mrb[0].mxu0
        %2859 = vmatprep.mubr.f32.mxu0 0.0
        %2860 = vmatmul.mubr.f32.gmra.mrb[0].mxu0 %v2642
        %v2861 = vpop.f32.mrb[0].mxu0
        %v2862 = vadd.f32 0.0, %v2861
        %v2863 = vpop.f32.mrb[0].mxu0
        %2864 = vmatprep.mubr.f32.mxu0 0.0
        %2865 = vmatmul.mubr.f32.gmra.mrb[0].mxu0 %v2643
        %v2866 = vpop.f32.mrb[0].mxu0
        %v2867 = vadd.f32 0.0, %v2866
        %v2868 = vpop.f32.mrb[0].mxu0
        %2869 = vmatprep.mubr.f32.mxu0 0.0
        %2870 = vmatmul.mubr.f32.gmra.mrb[0].mxu0 %v2644
        %v2871 = vpop.f32.mrb[0].mxu0
        %v2872 = vadd.f32 0.0, %v2871
        %v2873 = vpop.f32.mrb[0].mxu0
        %2874 = vmatprep.mubr.f32.mxu0 0.0
        %2875 = vmatmul.mubr.f32.gmra.mrb[0].mxu0 %v2645
        %v2876 = vpop.f32.mrb[0].mxu0
        %v2877 = vadd.f32 0.0, %v2876
        %v2878 = vpop.f32.mrb[0].mxu0
        %2879 = vmatprep.mubr.f32.mxu0 0.0
        %2880 = vmatmul.mubr.f32.gmra.mrb[0].mxu0 %v2646
        %v2881 = vpop.f32.mrb[0].mxu0
        %v2882 = vadd.f32 0.0, %v2881
        %v2883 = vpop.f32.mrb[0].mxu0
        %2884 = vmatprep.mubr.f32.mxu0 0.0
        %2885 = vmatmul.mubr.f32.gmra.mrb[0].mxu0 %v2647
        %v2886 = vpop.f32.mrb[0].mxu0
        %v2887 = vadd.f32 0.0, %v2886
        %v2888 = vpop.f32.mrb[0].mxu0
        %2889 = vdwg.mxu0
        %v2890 = vadd.f32 %v2584, %v2732
        %v2891 = vadd.f32 %v2585, %v2737
        %v2892 = vadd.f32 %v2586, %v2742
        %v2893 = vadd.f32 %v2587, %v2747
        %v2894 = vadd.f32 %v2588, %v2752
        %v2895 = vadd.f32 %v2589, %v2757
        %v2896 = vadd.f32 %v2590, %v2762
        %v2897 = vadd.f32 %v2591, %v2767
        %v2898 = vadd.f32 %v2592, %v2772
        %v2899 = vadd.f32 %v2593, %v2777
        %v2900 = vadd.f32 %v2594, %v2782
        %v2901 = vadd.f32 %v2595, %v2787
        %v2902 = vadd.f32 %v2596, %v2792
        %v2903 = vadd.f32 %v2597, %v2797
        %v2904 = vadd.f32 %v2598, %v2802
        %v2905 = vadd.f32 %v2599, %v2807
        %v2906 = vadd.f32 %v2600, %v2812
        %v2907 = vadd.f32 %v2601, %v2817
        %v2908 = vadd.f32 %v2602, %v2822
        %v2909 = vadd.f32 %v2603, %v2827
        %v2910 = vadd.f32 %v2604, %v2832
        %v2911 = vadd.f32 %v2605, %v2837
        %v2912 = vadd.f32 %v2606, %v2842
        %v2913 = vadd.f32 %v2607, %v2847
        %v2914 = vadd.f32 %v2608, %v2852
        %v2915 = vadd.f32 %v2609, %v2857
        %v2916 = vadd.f32 %v2610, %v2862
        %v2917 = vadd.f32 %v2611, %v2867
        %v2918 = vadd.f32 %v2612, %v2872
        %v2919 = vadd.f32 %v2613, %v2877
        %v2920 = vadd.f32 %v2614, %v2882
        %v2921 = vadd.f32 %v2615, %v2887
        %s2922 = scalar_lea.vmem [#allocation2], 256
        %v2923 = vld [vmem:[%s2922 + $0x4] sm:$0xff]
        %v2924 = vld [vmem:[%s2922 + $0xc] sm:$0xff]
        %v2925 = vld [vmem:[%s2922 + $0x24] sm:$0xff]
        %v2926 = vld [vmem:[%s2922 + $0x2c] sm:$0xff]
        %v2927 = vld [vmem:[%s2922 + $0x44] sm:$0xff]
        %v2928 = vld [vmem:[%s2922 + $0x4c] sm:$0xff]
        %v2929 = vld [vmem:[%s2922 + $0x64] sm:$0xff]
        %v2930 = vld [vmem:[%s2922 + $0x6c] sm:$0xff]
        %v2931 = vld [vmem:[%s2922 + $0x84] sm:$0xff]
        %v2932 = vld [vmem:[%s2922 + $0x8c] sm:$0xff]
        %v2933 = vld [vmem:[%s2922 + $0xa4] sm:$0xff]
        %v2934 = vld [vmem:[%s2922 + $0xac] sm:$0xff]
        %v2935 = vld [vmem:[%s2922 + $0xc4] sm:$0xff]
        %v2936 = vld [vmem:[%s2922 + $0xcc] sm:$0xff]
        %v2937 = vld [vmem:[%s2922 + $0xe4] sm:$0xff]
        %v2938 = vld [vmem:[%s2922 + $0xec] sm:$0xff]
        %v2939 = vld [vmem:[%s2922 + $0x104] sm:$0xff]
        %v2940 = vld [vmem:[%s2922 + $0x10c] sm:$0xff]
        %v2941 = vld [vmem:[%s2922 + $0x124] sm:$0xff]
        %v2942 = vld [vmem:[%s2922 + $0x12c] sm:$0xff]
        %v2943 = vld [vmem:[%s2922 + $0x144] sm:$0xff]
        %v2944 = vld [vmem:[%s2922 + $0x14c] sm:$0xff]
        %v2945 = vld [vmem:[%s2922 + $0x164] sm:$0xff]
        %v2946 = vld [vmem:[%s2922 + $0x16c] sm:$0xff]
        %v2947 = vld [vmem:[%s2922 + $0x184] sm:$0xff]
        %v2948 = vld [vmem:[%s2922 + $0x18c] sm:$0xff]
        %v2949 = vld [vmem:[%s2922 + $0x1a4] sm:$0xff]
        %v2950 = vld [vmem:[%s2922 + $0x1ac] sm:$0xff]
        %v2951 = vld [vmem:[%s2922 + $0x1c4] sm:$0xff]
        %v2952 = vld [vmem:[%s2922 + $0x1cc] sm:$0xff]
        %v2953 = vld [vmem:[%s2922 + $0x1e4] sm:$0xff]
        %v2954 = vld [vmem:[%s2922 + $0x1ec] sm:$0xff]
        %s2955 = scalar_lea.vmem [#allocation8], 768
        %v2956 = vld [vmem:[%s2955] sm:$0xff]
        %v2957 = vld [vmem:[%s2955 + $0x8] sm:$0xff]
        %v2958 = vld [vmem:[%s2955 + $0x10] sm:$0xff]
        %v2959 = vld [vmem:[%s2955 + $0x18] sm:$0xff]
        %v2960 = vld [vmem:[%s2955 + $0x20] sm:$0xff]
        %v2961 = vld [vmem:[%s2955 + $0x28] sm:$0xff]
        %v2962 = vld [vmem:[%s2955 + $0x30] sm:$0xff]
        %v2963 = vld [vmem:[%s2955 + $0x38] sm:$0xff]
        %v2964 = vld [vmem:[%s2955 + $0x40] sm:$0xff]
        %v2965 = vld [vmem:[%s2955 + $0x48] sm:$0xff]
        %v2966 = vld [vmem:[%s2955 + $0x50] sm:$0xff]
        %v2967 = vld [vmem:[%s2955 + $0x58] sm:$0xff]
        %v2968 = vld [vmem:[%s2955 + $0x60] sm:$0xff]
        %v2969 = vld [vmem:[%s2955 + $0x68] sm:$0xff]
        %v2970 = vld [vmem:[%s2955 + $0x70] sm:$0xff]
        %v2971 = vld [vmem:[%s2955 + $0x78] sm:$0xff]
        %2972 = vmatprep.subr.mxu0 0.0
        %2973 = vmatpush1.msra.mxu0 %v2956
        %2974 = vmatprep.subr.mxu0 0.0
        %2975 = vmatpush1.msra.mxu0 %v2957
        %2976 = vmatprep.subr.mxu0 0.0
        %2977 = vmatpush1.msra.mxu0 %v2958
        %2978 = vmatprep.subr.mxu0 0.0
        %2979 = vmatpush1.msra.mxu0 %v2959
        %2980 = vmatprep.subr.mxu0 0.0
        %2981 = vmatpush1.msra.mxu0 %v2960
        %2982 = vmatprep.subr.mxu0 0.0
        %2983 = vmatpush1.msra.mxu0 %v2961
        %2984 = vmatprep.subr.mxu0 0.0
        %2985 = vmatpush1.msra.mxu0 %v2962
        %2986 = vmatprep.subr.mxu0 0.0
        %2987 = vmatpush1.msra.mxu0 %v2963
        %2988 = vmatprep.subr.mxu0 0.0
        %2989 = vmatpush1.msra.mxu0 %v2964
        %2990 = vmatprep.subr.mxu0 0.0
        %2991 = vmatpush1.msra.mxu0 %v2965
        %2992 = vmatprep.subr.mxu0 0.0
        %2993 = vmatpush1.msra.mxu0 %v2966
        %2994 = vmatprep.subr.mxu0 0.0
        %2995 = vmatpush1.msra.mxu0 %v2967
        %2996 = vmatprep.subr.mxu0 0.0
        %2997 = vmatpush1.msra.mxu0 %v2968
        %2998 = vmatprep.subr.mxu0 0.0
        %2999 = vmatpush1.msra.mxu0 %v2969
        %3000 = vmatprep.subr.mxu0 0.0
        %3001 = vmatpush1.msra.mxu0 %v2970
        %3002 = vmatprep.subr.mxu0 0.0
        %3003 = vmatpush1.msra.mxu0 %v2971
        %3004 = vmatprep.subr.mxu0 0.0
        %3005 = vmatpush1.msra.mxu0 0.0
        %3006 = vmatprep.subr.mxu0 0.0
        %3007 = vmatpush1.msra.mxu0 0.0
        %3008 = vmatprep.subr.mxu0 0.0
        %3009 = vmatpush1.msra.mxu0 0.0
        %3010 = vmatprep.subr.mxu0 0.0
        %3011 = vmatpush1.msra.mxu0 0.0
        %3012 = vmatprep.subr.mxu0 0.0
        %3013 = vmatpush1.msra.mxu0 0.0
        %3014 = vmatprep.subr.mxu0 0.0
        %3015 = vmatpush1.msra.mxu0 0.0
        %3016 = vmatprep.subr.mxu0 0.0
        %3017 = vmatpush1.msra.mxu0 0.0
        %3018 = vmatprep.subr.mxu0 0.0
        %3019 = vmatpush1.msra.mxu0 0.0
        %3020 = vmatprep.subr.mxu0 0.0
        %3021 = vmatpush1.msra.mxu0 0.0
        %3022 = vmatprep.subr.mxu0 0.0
        %3023 = vmatpush1.msra.mxu0 0.0
        %3024 = vmatprep.subr.mxu0 0.0
        %3025 = vmatpush1.msra.mxu0 0.0
        %3026 = vmatprep.subr.mxu0 0.0
        %3027 = vmatpush1.msra.mxu0 0.0
        %3028 = vmatprep.subr.mxu0 0.0
        %3029 = vmatpush1.msra.mxu0 0.0
        %3030 = vmatprep.subr.mxu0 0.0
        %3031 = vmatpush1.msra.mxu0 0.0
        %3032 = vmatprep.subr.mxu0 0.0
        %3033 = vmatpush1.msra.mxu0 0.0
        %3034 = vmatprep.subr.mxu0 0.0
        %3035 = vmatpush1.msra.mxu0 0.0
        %3036 = vmatprep.mubr.f32.mxu0 0.0
        %3037 = vmatmul.mubr.f32.gmra.mrb[0].mxu0 %v2923
        %v3038 = vpop.f32.mrb[0].mxu0
        %v3039 = vadd.f32 0.0, %v3038
        %v3040 = vpop.f32.mrb[0].mxu0
        %3041 = vmatprep.mubr.f32.mxu0 0.0
        %3042 = vmatmul.mubr.f32.gmra.mrb[0].mxu0 %v2924
        %v3043 = vpop.f32.mrb[0].mxu0
        %v3044 = vadd.f32 0.0, %v3043
        %v3045 = vpop.f32.mrb[0].mxu0
        %3046 = vmatprep.mubr.f32.mxu0 0.0
        %3047 = vmatmul.mubr.f32.gmra.mrb[0].mxu0 %v2925
        %v3048 = vpop.f32.mrb[0].mxu0
        %v3049 = vadd.f32 0.0, %v3048
        %v3050 = vpop.f32.mrb[0].mxu0
        %3051 = vmatprep.mubr.f32.mxu0 0.0
        %3052 = vmatmul.mubr.f32.gmra.mrb[0].mxu0 %v2926
        %v3053 = vpop.f32.mrb[0].mxu0
        %v3054 = vadd.f32 0.0, %v3053
        %v3055 = vpop.f32.mrb[0].mxu0
        %3056 = vmatprep.mubr.f32.mxu0 0.0
        %3057 = vmatmul.mubr.f32.gmra.mrb[0].mxu0 %v2927
        %v3058 = vpop.f32.mrb[0].mxu0
        %v3059 = vadd.f32 0.0, %v3058
        %v3060 = vpop.f32.mrb[0].mxu0
        %3061 = vmatprep.mubr.f32.mxu0 0.0
        %3062 = vmatmul.mubr.f32.gmra.mrb[0].mxu0 %v2928
        %v3063 = vpop.f32.mrb[0].mxu0
        %v3064 = vadd.f32 0.0, %v3063
        %v3065 = vpop.f32.mrb[0].mxu0
        %3066 = vmatprep.mubr.f32.mxu0 0.0
        %3067 = vmatmul.mubr.f32.gmra.mrb[0].mxu0 %v2929
        %v3068 = vpop.f32.mrb[0].mxu0
        %v3069 = vadd.f32 0.0, %v3068
        %v3070 = vpop.f32.mrb[0].mxu0
        %3071 = vmatprep.mubr.f32.mxu0 0.0
        %3072 = vmatmul.mubr.f32.gmra.mrb[0].mxu0 %v2930
        %v3073 = vpop.f32.mrb[0].mxu0
        %v3074 = vadd.f32 0.0, %v3073
        %v3075 = vpop.f32.mrb[0].mxu0
        %3076 = vmatprep.mubr.f32.mxu0 0.0
        %3077 = vmatmul.mubr.f32.gmra.mrb[0].mxu0 %v2931
        %v3078 = vpop.f32.mrb[0].mxu0
        %v3079 = vadd.f32 0.0, %v3078
        %v3080 = vpop.f32.mrb[0].mxu0
        %3081 = vmatprep.mubr.f32.mxu0 0.0
        %3082 = vmatmul.mubr.f32.gmra.mrb[0].mxu0 %v2932
        %v3083 = vpop.f32.mrb[0].mxu0
        %v3084 = vadd.f32 0.0, %v3083
        %v3085 = vpop.f32.mrb[0].mxu0
        %3086 = vmatprep.mubr.f32.mxu0 0.0
        %3087 = vmatmul.mubr.f32.gmra.mrb[0].mxu0 %v2933
        %v3088 = vpop.f32.mrb[0].mxu0
        %v3089 = vadd.f32 0.0, %v3088
        %v3090 = vpop.f32.mrb[0].mxu0
        %3091 = vmatprep.mubr.f32.mxu0 0.0
        %3092 = vmatmul.mubr.f32.gmra.mrb[0].mxu0 %v2934
        %v3093 = vpop.f32.mrb[0].mxu0
        %v3094 = vadd.f32 0.0, %v3093
        %v3095 = vpop.f32.mrb[0].mxu0
        %3096 = vmatprep.mubr.f32.mxu0 0.0
        %3097 = vmatmul.mubr.f32.gmra.mrb[0].mxu0 %v2935
        %v3098 = vpop.f32.mrb[0].mxu0
        %v3099 = vadd.f32 0.0, %v3098
        %v3100 = vpop.f32.mrb[0].mxu0
        %3101 = vmatprep.mubr.f32.mxu0 0.0
        %3102 = vmatmul.mubr.f32.gmra.mrb[0].mxu0 %v2936
        %v3103 = vpop.f32.mrb[0].mxu0
        %v3104 = vadd.f32 0.0, %v3103
        %v3105 = vpop.f32.mrb[0].mxu0
        %3106 = vmatprep.mubr.f32.mxu0 0.0
        %3107 = vmatmul.mubr.f32.gmra.mrb[0].mxu0 %v2937
        %v3108 = vpop.f32.mrb[0].mxu0
        %v3109 = vadd.f32 0.0, %v3108
        %v3110 = vpop.f32.mrb[0].mxu0
        %3111 = vmatprep.mubr.f32.mxu0 0.0
        %3112 = vmatmul.mubr.f32.gmra.mrb[0].mxu0 %v2938
        %v3113 = vpop.f32.mrb[0].mxu0
        %v3114 = vadd.f32 0.0, %v3113
        %v3115 = vpop.f32.mrb[0].mxu0
        %3116 = vmatprep.mubr.f32.mxu0 0.0
        %3117 = vmatmul.mubr.f32.gmra.mrb[0].mxu0 %v2939
        %v3118 = vpop.f32.mrb[0].mxu0
        %v3119 = vadd.f32 0.0, %v3118
        %v3120 = vpop.f32.mrb[0].mxu0
        %3121 = vmatprep.mubr.f32.mxu0 0.0
        %3122 = vmatmul.mubr.f32.gmra.mrb[0].mxu0 %v2940
        %v3123 = vpop.f32.mrb[0].mxu0
        %v3124 = vadd.f32 0.0, %v3123
        %v3125 = vpop.f32.mrb[0].mxu0
        %3126 = vmatprep.mubr.f32.mxu0 0.0
        %3127 = vmatmul.mubr.f32.gmra.mrb[0].mxu0 %v2941
        %v3128 = vpop.f32.mrb[0].mxu0
        %v3129 = vadd.f32 0.0, %v3128
        %v3130 = vpop.f32.mrb[0].mxu0
        %3131 = vmatprep.mubr.f32.mxu0 0.0
        %3132 = vmatmul.mubr.f32.gmra.mrb[0].mxu0 %v2942
        %v3133 = vpop.f32.mrb[0].mxu0
        %v3134 = vadd.f32 0.0, %v3133
        %v3135 = vpop.f32.mrb[0].mxu0
        %3136 = vmatprep.mubr.f32.mxu0 0.0
        %3137 = vmatmul.mubr.f32.gmra.mrb[0].mxu0 %v2943
        %v3138 = vpop.f32.mrb[0].mxu0
        %v3139 = vadd.f32 0.0, %v3138
        %v3140 = vpop.f32.mrb[0].mxu0
        %3141 = vmatprep.mubr.f32.mxu0 0.0
        %3142 = vmatmul.mubr.f32.gmra.mrb[0].mxu0 %v2944
        %v3143 = vpop.f32.mrb[0].mxu0
        %v3144 = vadd.f32 0.0, %v3143
        %v3145 = vpop.f32.mrb[0].mxu0
        %3146 = vmatprep.mubr.f32.mxu0 0.0
        %3147 = vmatmul.mubr.f32.gmra.mrb[0].mxu0 %v2945
        %v3148 = vpop.f32.mrb[0].mxu0
        %v3149 = vadd.f32 0.0, %v3148
        %v3150 = vpop.f32.mrb[0].mxu0
        %3151 = vmatprep.mubr.f32.mxu0 0.0
        %3152 = vmatmul.mubr.f32.gmra.mrb[0].mxu0 %v2946
        %v3153 = vpop.f32.mrb[0].mxu0
        %v3154 = vadd.f32 0.0, %v3153
        %v3155 = vpop.f32.mrb[0].mxu0
        %3156 = vmatprep.mubr.f32.mxu0 0.0
        %3157 = vmatmul.mubr.f32.gmra.mrb[0].mxu0 %v2947
        %v3158 = vpop.f32.mrb[0].mxu0
        %v3159 = vadd.f32 0.0, %v3158
        %v3160 = vpop.f32.mrb[0].mxu0
        %3161 = vmatprep.mubr.f32.mxu0 0.0
        %3162 = vmatmul.mubr.f32.gmra.mrb[0].mxu0 %v2948
        %v3163 = vpop.f32.mrb[0].mxu0
        %v3164 = vadd.f32 0.0, %v3163
        %v3165 = vpop.f32.mrb[0].mxu0
        %3166 = vmatprep.mubr.f32.mxu0 0.0
        %3167 = vmatmul.mubr.f32.gmra.mrb[0].mxu0 %v2949
        %v3168 = vpop.f32.mrb[0].mxu0
        %v3169 = vadd.f32 0.0, %v3168
        %v3170 = vpop.f32.mrb[0].mxu0
        %3171 = vmatprep.mubr.f32.mxu0 0.0
        %3172 = vmatmul.mubr.f32.gmra.mrb[0].mxu0 %v2950
        %v3173 = vpop.f32.mrb[0].mxu0
        %v3174 = vadd.f32 0.0, %v3173
        %v3175 = vpop.f32.mrb[0].mxu0
        %3176 = vmatprep.mubr.f32.mxu0 0.0
        %3177 = vmatmul.mubr.f32.gmra.mrb[0].mxu0 %v2951
        %v3178 = vpop.f32.mrb[0].mxu0
        %v3179 = vadd.f32 0.0, %v3178
        %v3180 = vpop.f32.mrb[0].mxu0
        %3181 = vmatprep.mubr.f32.mxu0 0.0
        %3182 = vmatmul.mubr.f32.gmra.mrb[0].mxu0 %v2952
        %v3183 = vpop.f32.mrb[0].mxu0
        %v3184 = vadd.f32 0.0, %v3183
        %v3185 = vpop.f32.mrb[0].mxu0
        %3186 = vmatprep.mubr.f32.mxu0 0.0
        %3187 = vmatmul.mubr.f32.gmra.mrb[0].mxu0 %v2953
        %v3188 = vpop.f32.mrb[0].mxu0
        %v3189 = vadd.f32 0.0, %v3188
        %v3190 = vpop.f32.mrb[0].mxu0
        %3191 = vmatprep.mubr.f32.mxu0 0.0
        %3192 = vmatmul.mubr.f32.gmra.mrb[0].mxu0 %v2954
        %v3193 = vpop.f32.mrb[0].mxu0
        %v3194 = vadd.f32 0.0, %v3193
        %v3195 = vpop.f32.mrb[0].mxu0
        %3196 = vdwg.mxu0
        %v3197 = vadd.f32 %v2890, %v3039
        %v3198 = vadd.f32 %v2891, %v3044
        %v3199 = vadd.f32 %v2892, %v3049
        %v3200 = vadd.f32 %v2893, %v3054
        %v3201 = vadd.f32 %v2894, %v3059
        %v3202 = vadd.f32 %v2895, %v3064
        %v3203 = vadd.f32 %v2896, %v3069
        %v3204 = vadd.f32 %v2897, %v3074
        %v3205 = vadd.f32 %v2898, %v3079
        %v3206 = vadd.f32 %v2899, %v3084
        %v3207 = vadd.f32 %v2900, %v3089
        %v3208 = vadd.f32 %v2901, %v3094
        %v3209 = vadd.f32 %v2902, %v3099
        %v3210 = vadd.f32 %v2903, %v3104
        %v3211 = vadd.f32 %v2904, %v3109
        %v3212 = vadd.f32 %v2905, %v3114
        %v3213 = vadd.f32 %v2906, %v3119
        %v3214 = vadd.f32 %v2907, %v3124
        %v3215 = vadd.f32 %v2908, %v3129
        %v3216 = vadd.f32 %v2909, %v3134
        %v3217 = vadd.f32 %v2910, %v3139
        %v3218 = vadd.f32 %v2911, %v3144
        %v3219 = vadd.f32 %v2912, %v3149
        %v3220 = vadd.f32 %v2913, %v3154
        %v3221 = vadd.f32 %v2914, %v3159
        %v3222 = vadd.f32 %v2915, %v3164
        %v3223 = vadd.f32 %v2916, %v3169
        %v3224 = vadd.f32 %v2917, %v3174
        %v3225 = vadd.f32 %v2918, %v3179
        %v3226 = vadd.f32 %v2919, %v3184
        %v3227 = vadd.f32 %v2920, %v3189
        %v3228 = vadd.f32 %v2921, %v3194
        %v3229 = vld [vmem:[%s2922 + $0x8] sm:$0xff]
        %v3230 = vld [vmem:[%s2922 + $0x10] sm:$0xff]
        %v3231 = vld [vmem:[%s2922 + $0x28] sm:$0xff]
        %v3232 = vld [vmem:[%s2922 + $0x30] sm:$0xff]
        %v3233 = vld [vmem:[%s2922 + $0x48] sm:$0xff]
        %v3234 = vld [vmem:[%s2922 + $0x50] sm:$0xff]
        %v3235 = vld [vmem:[%s2922 + $0x68] sm:$0xff]
        %v3236 = vld [vmem:[%s2922 + $0x70] sm:$0xff]
        %v3237 = vld [vmem:[%s2922 + $0x88] sm:$0xff]
        %v3238 = vld [vmem:[%s2922 + $0x90] sm:$0xff]
        %v3239 = vld [vmem:[%s2922 + $0xa8] sm:$0xff]
        %v3240 = vld [vmem:[%s2922 + $0xb0] sm:$0xff]
        %v3241 = vld [vmem:[%s2922 + $0xc8] sm:$0xff]
        %v3242 = vld [vmem:[%s2922 + $0xd0] sm:$0xff]
        %v3243 = vld [vmem:[%s2922 + $0xe8] sm:$0xff]
        %v3244 = vld [vmem:[%s2922 + $0xf0] sm:$0xff]
        %v3245 = vld [vmem:[%s2922 + $0x108] sm:$0xff]
        %v3246 = vld [vmem:[%s2922 + $0x110] sm:$0xff]
        %v3247 = vld [vmem:[%s2922 + $0x128] sm:$0xff]
        %v3248 = vld [vmem:[%s2922 + $0x130] sm:$0xff]
        %v3249 = vld [vmem:[%s2922 + $0x148] sm:$0xff]
        %v3250 = vld [vmem:[%s2922 + $0x150] sm:$0xff]
        %v3251 = vld [vmem:[%s2922 + $0x168] sm:$0xff]
        %v3252 = vld [vmem:[%s2922 + $0x170] sm:$0xff]
        %v3253 = vld [vmem:[%s2922 + $0x188] sm:$0xff]
        %v3254 = vld [vmem:[%s2922 + $0x190] sm:$0xff]
        %v3255 = vld [vmem:[%s2922 + $0x1a8] sm:$0xff]
        %v3256 = vld [vmem:[%s2922 + $0x1b0] sm:$0xff]
        %v3257 = vld [vmem:[%s2922 + $0x1c8] sm:$0xff]
        %v3258 = vld [vmem:[%s2922 + $0x1d0] sm:$0xff]
        %v3259 = vld [vmem:[%s2922 + $0x1e8] sm:$0xff]
        %v3260 = vld [vmem:[%s2922 + $0x1f0] sm:$0xff]
        %s3261 = scalar_lea.vmem [#allocation8], 896
        %v3262 = vld [vmem:[%s3261] sm:$0xff]
        %v3263 = vld [vmem:[%s3261 + $0x8] sm:$0xff]
        %v3264 = vld [vmem:[%s3261 + $0x10] sm:$0xff]
        %v3265 = vld [vmem:[%s3261 + $0x18] sm:$0xff]
        %v3266 = vld [vmem:[%s3261 + $0x20] sm:$0xff]
        %v3267 = vld [vmem:[%s3261 + $0x28] sm:$0xff]
        %v3268 = vld [vmem:[%s3261 + $0x30] sm:$0xff]
        %v3269 = vld [vmem:[%s3261 + $0x38] sm:$0xff]
        %v3270 = vld [vmem:[%s3261 + $0x40] sm:$0xff]
        %v3271 = vld [vmem:[%s3261 + $0x48] sm:$0xff]
        %v3272 = vld [vmem:[%s3261 + $0x50] sm:$0xff]
        %v3273 = vld [vmem:[%s3261 + $0x58] sm:$0xff]
        %v3274 = vld [vmem:[%s3261 + $0x60] sm:$0xff]
        %v3275 = vld [vmem:[%s3261 + $0x68] sm:$0xff]
        %v3276 = vld [vmem:[%s3261 + $0x70] sm:$0xff]
        %v3277 = vld [vmem:[%s3261 + $0x78] sm:$0xff]
        %3278 = vmatprep.subr.mxu0 0.0
        %3279 = vmatpush1.msra.mxu0 %v3262
        %3280 = vmatprep.subr.mxu0 0.0
        %3281 = vmatpush1.msra.mxu0 %v3263
        %3282 = vmatprep.subr.mxu0 0.0
        %3283 = vmatpush1.msra.mxu0 %v3264
        %3284 = vmatprep.subr.mxu0 0.0
        %3285 = vmatpush1.msra.mxu0 %v3265
        %3286 = vmatprep.subr.mxu0 0.0
        %3287 = vmatpush1.msra.mxu0 %v3266
        %3288 = vmatprep.subr.mxu0 0.0
        %3289 = vmatpush1.msra.mxu0 %v3267
        %3290 = vmatprep.subr.mxu0 0.0
        %3291 = vmatpush1.msra.mxu0 %v3268
        %3292 = vmatprep.subr.mxu0 0.0
        %3293 = vmatpush1.msra.mxu0 %v3269
        %3294 = vmatprep.subr.mxu0 0.0
        %3295 = vmatpush1.msra.mxu0 %v3270
        %3296 = vmatprep.subr.mxu0 0.0
        %3297 = vmatpush1.msra.mxu0 %v3271
        %3298 = vmatprep.subr.mxu0 0.0
        %3299 = vmatpush1.msra.mxu0 %v3272
        %3300 = vmatprep.subr.mxu0 0.0
        %3301 = vmatpush1.msra.mxu0 %v3273
        %3302 = vmatprep.subr.mxu0 0.0
        %3303 = vmatpush1.msra.mxu0 %v3274
        %3304 = vmatprep.subr.mxu0 0.0
        %3305 = vmatpush1.msra.mxu0 %v3275
        %3306 = vmatprep.subr.mxu0 0.0
        %3307 = vmatpush1.msra.mxu0 %v3276
        %3308 = vmatprep.subr.mxu0 0.0
        %3309 = vmatpush1.msra.mxu0 %v3277
        %3310 = vmatprep.subr.mxu0 0.0
        %3311 = vmatpush1.msra.mxu0 0.0
        %3312 = vmatprep.subr.mxu0 0.0
        %3313 = vmatpush1.msra.mxu0 0.0
        %3314 = vmatprep.subr.mxu0 0.0
        %3315 = vmatpush1.msra.mxu0 0.0
        %3316 = vmatprep.subr.mxu0 0.0
        %3317 = vmatpush1.msra.mxu0 0.0
        %3318 = vmatprep.subr.mxu0 0.0
        %3319 = vmatpush1.msra.mxu0 0.0
        %3320 = vmatprep.subr.mxu0 0.0
        %3321 = vmatpush1.msra.mxu0 0.0
        %3322 = vmatprep.subr.mxu0 0.0
        %3323 = vmatpush1.msra.mxu0 0.0
        %3324 = vmatprep.subr.mxu0 0.0
        %3325 = vmatpush1.msra.mxu0 0.0
        %3326 = vmatprep.subr.mxu0 0.0
        %3327 = vmatpush1.msra.mxu0 0.0
        %3328 = vmatprep.subr.mxu0 0.0
        %3329 = vmatpush1.msra.mxu0 0.0
        %3330 = vmatprep.subr.mxu0 0.0
        %3331 = vmatpush1.msra.mxu0 0.0
        %3332 = vmatprep.subr.mxu0 0.0
        %3333 = vmatpush1.msra.mxu0 0.0
        %3334 = vmatprep.subr.mxu0 0.0
        %3335 = vmatpush1.msra.mxu0 0.0
        %3336 = vmatprep.subr.mxu0 0.0
        %3337 = vmatpush1.msra.mxu0 0.0
        %3338 = vmatprep.subr.mxu0 0.0
        %3339 = vmatpush1.msra.mxu0 0.0
        %3340 = vmatprep.subr.mxu0 0.0
        %3341 = vmatpush1.msra.mxu0 0.0
        %3342 = vmatprep.mubr.f32.mxu0 0.0
        %3343 = vmatmul.mubr.f32.gmra.mrb[0].mxu0 %v3229
        %v3344 = vpop.f32.mrb[0].mxu0
        %v3345 = vadd.f32 0.0, %v3344
        %v3346 = vpop.f32.mrb[0].mxu0
        %3347 = vmatprep.mubr.f32.mxu0 0.0
        %3348 = vmatmul.mubr.f32.gmra.mrb[0].mxu0 %v3230
        %v3349 = vpop.f32.mrb[0].mxu0
        %v3350 = vadd.f32 0.0, %v3349
        %v3351 = vpop.f32.mrb[0].mxu0
        %3352 = vmatprep.mubr.f32.mxu0 0.0
        %3353 = vmatmul.mubr.f32.gmra.mrb[0].mxu0 %v3231
        %v3354 = vpop.f32.mrb[0].mxu0
        %v3355 = vadd.f32 0.0, %v3354
        %v3356 = vpop.f32.mrb[0].mxu0
        %3357 = vmatprep.mubr.f32.mxu0 0.0
        %3358 = vmatmul.mubr.f32.gmra.mrb[0].mxu0 %v3232
        %v3359 = vpop.f32.mrb[0].mxu0
        %v3360 = vadd.f32 0.0, %v3359
        %v3361 = vpop.f32.mrb[0].mxu0
        %3362 = vmatprep.mubr.f32.mxu0 0.0
        %3363 = vmatmul.mubr.f32.gmra.mrb[0].mxu0 %v3233
        %v3364 = vpop.f32.mrb[0].mxu0
        %v3365 = vadd.f32 0.0, %v3364
        %v3366 = vpop.f32.mrb[0].mxu0
        %3367 = vmatprep.mubr.f32.mxu0 0.0
        %3368 = vmatmul.mubr.f32.gmra.mrb[0].mxu0 %v3234
        %v3369 = vpop.f32.mrb[0].mxu0
        %v3370 = vadd.f32 0.0, %v3369
        %v3371 = vpop.f32.mrb[0].mxu0
        %3372 = vmatprep.mubr.f32.mxu0 0.0
        %3373 = vmatmul.mubr.f32.gmra.mrb[0].mxu0 %v3235
        %v3374 = vpop.f32.mrb[0].mxu0
        %v3375 = vadd.f32 0.0, %v3374
        %v3376 = vpop.f32.mrb[0].mxu0
        %3377 = vmatprep.mubr.f32.mxu0 0.0
        %3378 = vmatmul.mubr.f32.gmra.mrb[0].mxu0 %v3236
        %v3379 = vpop.f32.mrb[0].mxu0
        %v3380 = vadd.f32 0.0, %v3379
        %v3381 = vpop.f32.mrb[0].mxu0
        %3382 = vmatprep.mubr.f32.mxu0 0.0
        %3383 = vmatmul.mubr.f32.gmra.mrb[0].mxu0 %v3237
        %v3384 = vpop.f32.mrb[0].mxu0
        %v3385 = vadd.f32 0.0, %v3384
        %v3386 = vpop.f32.mrb[0].mxu0
        %3387 = vmatprep.mubr.f32.mxu0 0.0
        %3388 = vmatmul.mubr.f32.gmra.mrb[0].mxu0 %v3238
        %v3389 = vpop.f32.mrb[0].mxu0
        %v3390 = vadd.f32 0.0, %v3389
        %v3391 = vpop.f32.mrb[0].mxu0
        %3392 = vmatprep.mubr.f32.mxu0 0.0
        %3393 = vmatmul.mubr.f32.gmra.mrb[0].mxu0 %v3239
        %v3394 = vpop.f32.mrb[0].mxu0
        %v3395 = vadd.f32 0.0, %v3394
        %v3396 = vpop.f32.mrb[0].mxu0
        %3397 = vmatprep.mubr.f32.mxu0 0.0
        %3398 = vmatmul.mubr.f32.gmra.mrb[0].mxu0 %v3240
        %v3399 = vpop.f32.mrb[0].mxu0
        %v3400 = vadd.f32 0.0, %v3399
        %v3401 = vpop.f32.mrb[0].mxu0
        %3402 = vmatprep.mubr.f32.mxu0 0.0
        %3403 = vmatmul.mubr.f32.gmra.mrb[0].mxu0 %v3241
        %v3404 = vpop.f32.mrb[0].mxu0
        %v3405 = vadd.f32 0.0, %v3404
        %v3406 = vpop.f32.mrb[0].mxu0
        %3407 = vmatprep.mubr.f32.mxu0 0.0
        %3408 = vmatmul.mubr.f32.gmra.mrb[0].mxu0 %v3242
        %v3409 = vpop.f32.mrb[0].mxu0
        %v3410 = vadd.f32 0.0, %v3409
        %v3411 = vpop.f32.mrb[0].mxu0
        %3412 = vmatprep.mubr.f32.mxu0 0.0
        %3413 = vmatmul.mubr.f32.gmra.mrb[0].mxu0 %v3243
        %v3414 = vpop.f32.mrb[0].mxu0
        %v3415 = vadd.f32 0.0, %v3414
        %v3416 = vpop.f32.mrb[0].mxu0
        %3417 = vmatprep.mubr.f32.mxu0 0.0
        %3418 = vmatmul.mubr.f32.gmra.mrb[0].mxu0 %v3244
        %v3419 = vpop.f32.mrb[0].mxu0
        %v3420 = vadd.f32 0.0, %v3419
        %v3421 = vpop.f32.mrb[0].mxu0
        %3422 = vmatprep.mubr.f32.mxu0 0.0
        %3423 = vmatmul.mubr.f32.gmra.mrb[0].mxu0 %v3245
        %v3424 = vpop.f32.mrb[0].mxu0
        %v3425 = vadd.f32 0.0, %v3424
        %v3426 = vpop.f32.mrb[0].mxu0
        %3427 = vmatprep.mubr.f32.mxu0 0.0
        %3428 = vmatmul.mubr.f32.gmra.mrb[0].mxu0 %v3246
        %v3429 = vpop.f32.mrb[0].mxu0
        %v3430 = vadd.f32 0.0, %v3429
        %v3431 = vpop.f32.mrb[0].mxu0
        %3432 = vmatprep.mubr.f32.mxu0 0.0
        %3433 = vmatmul.mubr.f32.gmra.mrb[0].mxu0 %v3247
        %v3434 = vpop.f32.mrb[0].mxu0
        %v3435 = vadd.f32 0.0, %v3434
        %v3436 = vpop.f32.mrb[0].mxu0
        %3437 = vmatprep.mubr.f32.mxu0 0.0
        %3438 = vmatmul.mubr.f32.gmra.mrb[0].mxu0 %v3248
        %v3439 = vpop.f32.mrb[0].mxu0
        %v3440 = vadd.f32 0.0, %v3439
        %v3441 = vpop.f32.mrb[0].mxu0
        %3442 = vmatprep.mubr.f32.mxu0 0.0
        %3443 = vmatmul.mubr.f32.gmra.mrb[0].mxu0 %v3249
        %v3444 = vpop.f32.mrb[0].mxu0
        %v3445 = vadd.f32 0.0, %v3444
        %v3446 = vpop.f32.mrb[0].mxu0
        %3447 = vmatprep.mubr.f32.mxu0 0.0
        %3448 = vmatmul.mubr.f32.gmra.mrb[0].mxu0 %v3250
        %v3449 = vpop.f32.mrb[0].mxu0
        %v3450 = vadd.f32 0.0, %v3449
        %v3451 = vpop.f32.mrb[0].mxu0
        %3452 = vmatprep.mubr.f32.mxu0 0.0
        %3453 = vmatmul.mubr.f32.gmra.mrb[0].mxu0 %v3251
        %v3454 = vpop.f32.mrb[0].mxu0
        %v3455 = vadd.f32 0.0, %v3454
        %v3456 = vpop.f32.mrb[0].mxu0
        %3457 = vmatprep.mubr.f32.mxu0 0.0
        %3458 = vmatmul.mubr.f32.gmra.mrb[0].mxu0 %v3252
        %v3459 = vpop.f32.mrb[0].mxu0
        %v3460 = vadd.f32 0.0, %v3459
        %v3461 = vpop.f32.mrb[0].mxu0
        %3462 = vmatprep.mubr.f32.mxu0 0.0
        %3463 = vmatmul.mubr.f32.gmra.mrb[0].mxu0 %v3253
        %v3464 = vpop.f32.mrb[0].mxu0
        %v3465 = vadd.f32 0.0, %v3464
        %v3466 = vpop.f32.mrb[0].mxu0
        %3467 = vmatprep.mubr.f32.mxu0 0.0
        %3468 = vmatmul.mubr.f32.gmra.mrb[0].mxu0 %v3254
        %v3469 = vpop.f32.mrb[0].mxu0
        %v3470 = vadd.f32 0.0, %v3469
        %v3471 = vpop.f32.mrb[0].mxu0
        %3472 = vmatprep.mubr.f32.mxu0 0.0
        %3473 = vmatmul.mubr.f32.gmra.mrb[0].mxu0 %v3255
        %v3474 = vpop.f32.mrb[0].mxu0
        %v3475 = vadd.f32 0.0, %v3474
        %v3476 = vpop.f32.mrb[0].mxu0
        %3477 = vmatprep.mubr.f32.mxu0 0.0
        %3478 = vmatmul.mubr.f32.gmra.mrb[0].mxu0 %v3256
        %v3479 = vpop.f32.mrb[0].mxu0
        %v3480 = vadd.f32 0.0, %v3479
        %v3481 = vpop.f32.mrb[0].mxu0
        %3482 = vmatprep.mubr.f32.mxu0 0.0
        %3483 = vmatmul.mubr.f32.gmra.mrb[0].mxu0 %v3257
        %v3484 = vpop.f32.mrb[0].mxu0
        %v3485 = vadd.f32 0.0, %v3484
        %v3486 = vpop.f32.mrb[0].mxu0
        %3487 = vmatprep.mubr.f32.mxu0 0.0
        %3488 = vmatmul.mubr.f32.gmra.mrb[0].mxu0 %v3258
        %v3489 = vpop.f32.mrb[0].mxu0
        %v3490 = vadd.f32 0.0, %v3489
        %v3491 = vpop.f32.mrb[0].mxu0
        %3492 = vmatprep.mubr.f32.mxu0 0.0
        %3493 = vmatmul.mubr.f32.gmra.mrb[0].mxu0 %v3259
        %v3494 = vpop.f32.mrb[0].mxu0
        %v3495 = vadd.f32 0.0, %v3494
        %v3496 = vpop.f32.mrb[0].mxu0
        %3497 = vmatprep.mubr.f32.mxu0 0.0
        %3498 = vmatmul.mubr.f32.gmra.mrb[0].mxu0 %v3260
        %v3499 = vpop.f32.mrb[0].mxu0
        %v3500 = vadd.f32 0.0, %v3499
        %v3501 = vpop.f32.mrb[0].mxu0
        %3502 = vdwg.mxu0
        %v3503 = vadd.f32 %v3197, %v3345
        %v3504 = vadd.f32 %v3198, %v3350
        %v3505 = vadd.f32 %v3199, %v3355
        %v3506 = vadd.f32 %v3200, %v3360
        %v3507 = vadd.f32 %v3201, %v3365
        %v3508 = vadd.f32 %v3202, %v3370
        %v3509 = vadd.f32 %v3203, %v3375
        %v3510 = vadd.f32 %v3204, %v3380
        %v3511 = vadd.f32 %v3205, %v3385
        %v3512 = vadd.f32 %v3206, %v3390
        %v3513 = vadd.f32 %v3207, %v3395
        %v3514 = vadd.f32 %v3208, %v3400
        %v3515 = vadd.f32 %v3209, %v3405
        %v3516 = vadd.f32 %v3210, %v3410
        %v3517 = vadd.f32 %v3211, %v3415
        %v3518 = vadd.f32 %v3212, %v3420
        %v3519 = vadd.f32 %v3213, %v3425
        %v3520 = vadd.f32 %v3214, %v3430
        %v3521 = vadd.f32 %v3215, %v3435
        %v3522 = vadd.f32 %v3216, %v3440
        %v3523 = vadd.f32 %v3217, %v3445
        %v3524 = vadd.f32 %v3218, %v3450
        %v3525 = vadd.f32 %v3219, %v3455
        %v3526 = vadd.f32 %v3220, %v3460
        %v3527 = vadd.f32 %v3221, %v3465
        %v3528 = vadd.f32 %v3222, %v3470
        %v3529 = vadd.f32 %v3223, %v3475
        %v3530 = vadd.f32 %v3224, %v3480
        %v3531 = vadd.f32 %v3225, %v3485
        %v3532 = vadd.f32 %v3226, %v3490
        %v3533 = vadd.f32 %v3227, %v3495
        %v3534 = vadd.f32 %v3228, %v3500
        %v3535 = vld [vmem:[%s2922 + $0xc] sm:$0xff]
        %v3536 = vld [vmem:[%s2922 + $0x14] sm:$0xff]
        %v3537 = vld [vmem:[%s2922 + $0x2c] sm:$0xff]
        %v3538 = vld [vmem:[%s2922 + $0x34] sm:$0xff]
        %v3539 = vld [vmem:[%s2922 + $0x4c] sm:$0xff]
        %v3540 = vld [vmem:[%s2922 + $0x54] sm:$0xff]
        %v3541 = vld [vmem:[%s2922 + $0x6c] sm:$0xff]
        %v3542 = vld [vmem:[%s2922 + $0x74] sm:$0xff]
        %v3543 = vld [vmem:[%s2922 + $0x8c] sm:$0xff]
        %v3544 = vld [vmem:[%s2922 + $0x94] sm:$0xff]
        %v3545 = vld [vmem:[%s2922 + $0xac] sm:$0xff]
        %v3546 = vld [vmem:[%s2922 + $0xb4] sm:$0xff]
        %v3547 = vld [vmem:[%s2922 + $0xcc] sm:$0xff]
        %v3548 = vld [vmem:[%s2922 + $0xd4] sm:$0xff]
        %v3549 = vld [vmem:[%s2922 + $0xec] sm:$0xff]
        %v3550 = vld [vmem:[%s2922 + $0xf4] sm:$0xff]
        %v3551 = vld [vmem:[%s2922 + $0x10c] sm:$0xff]
        %v3552 = vld [vmem:[%s2922 + $0x114] sm:$0xff]
        %v3553 = vld [vmem:[%s2922 + $0x12c] sm:$0xff]
        %v3554 = vld [vmem:[%s2922 + $0x134] sm:$0xff]
        %v3555 = vld [vmem:[%s2922 + $0x14c] sm:$0xff]
        %v3556 = vld [vmem:[%s2922 + $0x154] sm:$0xff]
        %v3557 = vld [vmem:[%s2922 + $0x16c] sm:$0xff]
        %v3558 = vld [vmem:[%s2922 + $0x174] sm:$0xff]
        %v3559 = vld [vmem:[%s2922 + $0x18c] sm:$0xff]
        %v3560 = vld [vmem:[%s2922 + $0x194] sm:$0xff]
        %v3561 = vld [vmem:[%s2922 + $0x1ac] sm:$0xff]
        %v3562 = vld [vmem:[%s2922 + $0x1b4] sm:$0xff]
        %v3563 = vld [vmem:[%s2922 + $0x1cc] sm:$0xff]
        %v3564 = vld [vmem:[%s2922 + $0x1d4] sm:$0xff]
        %v3565 = vld [vmem:[%s2922 + $0x1ec] sm:$0xff]
        %v3566 = vld [vmem:[%s2922 + $0x1f4] sm:$0xff]
        %s3567 = scalar_lea.vmem [#allocation8], 1024
        %v3568 = vld [vmem:[%s3567] sm:$0xff]
        %v3569 = vld [vmem:[%s3567 + $0x8] sm:$0xff]
        %v3570 = vld [vmem:[%s3567 + $0x10] sm:$0xff]
        %v3571 = vld [vmem:[%s3567 + $0x18] sm:$0xff]
        %v3572 = vld [vmem:[%s3567 + $0x20] sm:$0xff]
        %v3573 = vld [vmem:[%s3567 + $0x28] sm:$0xff]
        %v3574 = vld [vmem:[%s3567 + $0x30] sm:$0xff]
        %v3575 = vld [vmem:[%s3567 + $0x38] sm:$0xff]
        %v3576 = vld [vmem:[%s3567 + $0x40] sm:$0xff]
        %v3577 = vld [vmem:[%s3567 + $0x48] sm:$0xff]
        %v3578 = vld [vmem:[%s3567 + $0x50] sm:$0xff]
        %v3579 = vld [vmem:[%s3567 + $0x58] sm:$0xff]
        %v3580 = vld [vmem:[%s3567 + $0x60] sm:$0xff]
        %v3581 = vld [vmem:[%s3567 + $0x68] sm:$0xff]
        %v3582 = vld [vmem:[%s3567 + $0x70] sm:$0xff]
        %v3583 = vld [vmem:[%s3567 + $0x78] sm:$0xff]
        %3584 = vmatprep.subr.mxu0 0.0
        %3585 = vmatpush1.msra.mxu0 %v3568
        %3586 = vmatprep.subr.mxu0 0.0
        %3587 = vmatpush1.msra.mxu0 %v3569
        %3588 = vmatprep.subr.mxu0 0.0
        %3589 = vmatpush1.msra.mxu0 %v3570
        %3590 = vmatprep.subr.mxu0 0.0
        %3591 = vmatpush1.msra.mxu0 %v3571
        %3592 = vmatprep.subr.mxu0 0.0
        %3593 = vmatpush1.msra.mxu0 %v3572
        %3594 = vmatprep.subr.mxu0 0.0
        %3595 = vmatpush1.msra.mxu0 %v3573
        %3596 = vmatprep.subr.mxu0 0.0
        %3597 = vmatpush1.msra.mxu0 %v3574
        %3598 = vmatprep.subr.mxu0 0.0
        %3599 = vmatpush1.msra.mxu0 %v3575
        %3600 = vmatprep.subr.mxu0 0.0
        %3601 = vmatpush1.msra.mxu0 %v3576
        %3602 = vmatprep.subr.mxu0 0.0
        %3603 = vmatpush1.msra.mxu0 %v3577
        %3604 = vmatprep.subr.mxu0 0.0
        %3605 = vmatpush1.msra.mxu0 %v3578
        %3606 = vmatprep.subr.mxu0 0.0
        %3607 = vmatpush1.msra.mxu0 %v3579
        %3608 = vmatprep.subr.mxu0 0.0
        %3609 = vmatpush1.msra.mxu0 %v3580
        %3610 = vmatprep.subr.mxu0 0.0
        %3611 = vmatpush1.msra.mxu0 %v3581
        %3612 = vmatprep.subr.mxu0 0.0
        %3613 = vmatpush1.msra.mxu0 %v3582
        %3614 = vmatprep.subr.mxu0 0.0
        %3615 = vmatpush1.msra.mxu0 %v3583
        %3616 = vmatprep.subr.mxu0 0.0
        %3617 = vmatpush1.msra.mxu0 0.0
        %3618 = vmatprep.subr.mxu0 0.0
        %3619 = vmatpush1.msra.mxu0 0.0
        %3620 = vmatprep.subr.mxu0 0.0
        %3621 = vmatpush1.msra.mxu0 0.0
        %3622 = vmatprep.subr.mxu0 0.0
        %3623 = vmatpush1.msra.mxu0 0.0
        %3624 = vmatprep.subr.mxu0 0.0
        %3625 = vmatpush1.msra.mxu0 0.0
        %3626 = vmatprep.subr.mxu0 0.0
        %3627 = vmatpush1.msra.mxu0 0.0
        %3628 = vmatprep.subr.mxu0 0.0
        %3629 = vmatpush1.msra.mxu0 0.0
        %3630 = vmatprep.subr.mxu0 0.0
        %3631 = vmatpush1.msra.mxu0 0.0
        %3632 = vmatprep.subr.mxu0 0.0
        %3633 = vmatpush1.msra.mxu0 0.0
        %3634 = vmatprep.subr.mxu0 0.0
        %3635 = vmatpush1.msra.mxu0 0.0
        %3636 = vmatprep.subr.mxu0 0.0
        %3637 = vmatpush1.msra.mxu0 0.0
        %3638 = vmatprep.subr.mxu0 0.0
        %3639 = vmatpush1.msra.mxu0 0.0
        %3640 = vmatprep.subr.mxu0 0.0
        %3641 = vmatpush1.msra.mxu0 0.0
        %3642 = vmatprep.subr.mxu0 0.0
        %3643 = vmatpush1.msra.mxu0 0.0
        %3644 = vmatprep.subr.mxu0 0.0
        %3645 = vmatpush1.msra.mxu0 0.0
        %3646 = vmatprep.subr.mxu0 0.0
        %3647 = vmatpush1.msra.mxu0 0.0
        %3648 = vmatprep.mubr.f32.mxu0 0.0
        %3649 = vmatmul.mubr.f32.gmra.mrb[0].mxu0 %v3535
        %v3650 = vpop.f32.mrb[0].mxu0
        %v3651 = vadd.f32 0.0, %v3650
        %v3652 = vpop.f32.mrb[0].mxu0
        %3653 = vmatprep.mubr.f32.mxu0 0.0
        %3654 = vmatmul.mubr.f32.gmra.mrb[0].mxu0 %v3536
        %v3655 = vpop.f32.mrb[0].mxu0
        %v3656 = vadd.f32 0.0, %v3655
        %v3657 = vpop.f32.mrb[0].mxu0
        %3658 = vmatprep.mubr.f32.mxu0 0.0
        %3659 = vmatmul.mubr.f32.gmra.mrb[0].mxu0 %v3537
        %v3660 = vpop.f32.mrb[0].mxu0
        %v3661 = vadd.f32 0.0, %v3660
        %v3662 = vpop.f32.mrb[0].mxu0
        %3663 = vmatprep.mubr.f32.mxu0 0.0
        %3664 = vmatmul.mubr.f32.gmra.mrb[0].mxu0 %v3538
        %v3665 = vpop.f32.mrb[0].mxu0
        %v3666 = vadd.f32 0.0, %v3665
        %v3667 = vpop.f32.mrb[0].mxu0
        %3668 = vmatprep.mubr.f32.mxu0 0.0
        %3669 = vmatmul.mubr.f32.gmra.mrb[0].mxu0 %v3539
        %v3670 = vpop.f32.mrb[0].mxu0
        %v3671 = vadd.f32 0.0, %v3670
        %v3672 = vpop.f32.mrb[0].mxu0
        %3673 = vmatprep.mubr.f32.mxu0 0.0
        %3674 = vmatmul.mubr.f32.gmra.mrb[0].mxu0 %v3540
        %v3675 = vpop.f32.mrb[0].mxu0
        %v3676 = vadd.f32 0.0, %v3675
        %v3677 = vpop.f32.mrb[0].mxu0
        %3678 = vmatprep.mubr.f32.mxu0 0.0
        %3679 = vmatmul.mubr.f32.gmra.mrb[0].mxu0 %v3541
        %v3680 = vpop.f32.mrb[0].mxu0
        %v3681 = vadd.f32 0.0, %v3680
        %v3682 = vpop.f32.mrb[0].mxu0
        %3683 = vmatprep.mubr.f32.mxu0 0.0
        %3684 = vmatmul.mubr.f32.gmra.mrb[0].mxu0 %v3542
        %v3685 = vpop.f32.mrb[0].mxu0
        %v3686 = vadd.f32 0.0, %v3685
        %v3687 = vpop.f32.mrb[0].mxu0
        %3688 = vmatprep.mubr.f32.mxu0 0.0
        %3689 = vmatmul.mubr.f32.gmra.mrb[0].mxu0 %v3543
        %v3690 = vpop.f32.mrb[0].mxu0
        %v3691 = vadd.f32 0.0, %v3690
        %v3692 = vpop.f32.mrb[0].mxu0
        %3693 = vmatprep.mubr.f32.mxu0 0.0
        %3694 = vmatmul.mubr.f32.gmra.mrb[0].mxu0 %v3544
        %v3695 = vpop.f32.mrb[0].mxu0
        %v3696 = vadd.f32 0.0, %v3695
        %v3697 = vpop.f32.mrb[0].mxu0
        %3698 = vmatprep.mubr.f32.mxu0 0.0
        %3699 = vmatmul.mubr.f32.gmra.mrb[0].mxu0 %v3545
        %v3700 = vpop.f32.mrb[0].mxu0
        %v3701 = vadd.f32 0.0, %v3700
        %v3702 = vpop.f32.mrb[0].mxu0
        %3703 = vmatprep.mubr.f32.mxu0 0.0
        %3704 = vmatmul.mubr.f32.gmra.mrb[0].mxu0 %v3546
        %v3705 = vpop.f32.mrb[0].mxu0
        %v3706 = vadd.f32 0.0, %v3705
        %v3707 = vpop.f32.mrb[0].mxu0
        %3708 = vmatprep.mubr.f32.mxu0 0.0
        %3709 = vmatmul.mubr.f32.gmra.mrb[0].mxu0 %v3547
        %v3710 = vpop.f32.mrb[0].mxu0
        %v3711 = vadd.f32 0.0, %v3710
        %v3712 = vpop.f32.mrb[0].mxu0
        %3713 = vmatprep.mubr.f32.mxu0 0.0
        %3714 = vmatmul.mubr.f32.gmra.mrb[0].mxu0 %v3548
        %v3715 = vpop.f32.mrb[0].mxu0
        %v3716 = vadd.f32 0.0, %v3715
        %v3717 = vpop.f32.mrb[0].mxu0
        %3718 = vmatprep.mubr.f32.mxu0 0.0
        %3719 = vmatmul.mubr.f32.gmra.mrb[0].mxu0 %v3549
        %v3720 = vpop.f32.mrb[0].mxu0
        %v3721 = vadd.f32 0.0, %v3720
        %v3722 = vpop.f32.mrb[0].mxu0
        %3723 = vmatprep.mubr.f32.mxu0 0.0
        %3724 = vmatmul.mubr.f32.gmra.mrb[0].mxu0 %v3550
        %v3725 = vpop.f32.mrb[0].mxu0
        %v3726 = vadd.f32 0.0, %v3725
        %v3727 = vpop.f32.mrb[0].mxu0
        %3728 = vmatprep.mubr.f32.mxu0 0.0
        %3729 = vmatmul.mubr.f32.gmra.mrb[0].mxu0 %v3551
        %v3730 = vpop.f32.mrb[0].mxu0
        %v3731 = vadd.f32 0.0, %v3730
        %v3732 = vpop.f32.mrb[0].mxu0
        %3733 = vmatprep.mubr.f32.mxu0 0.0
        %3734 = vmatmul.mubr.f32.gmra.mrb[0].mxu0 %v3552
        %v3735 = vpop.f32.mrb[0].mxu0
        %v3736 = vadd.f32 0.0, %v3735
        %v3737 = vpop.f32.mrb[0].mxu0
        %3738 = vmatprep.mubr.f32.mxu0 0.0
        %3739 = vmatmul.mubr.f32.gmra.mrb[0].mxu0 %v3553
        %v3740 = vpop.f32.mrb[0].mxu0
        %v3741 = vadd.f32 0.0, %v3740
        %v3742 = vpop.f32.mrb[0].mxu0
        %3743 = vmatprep.mubr.f32.mxu0 0.0
        %3744 = vmatmul.mubr.f32.gmra.mrb[0].mxu0 %v3554
        %v3745 = vpop.f32.mrb[0].mxu0
        %v3746 = vadd.f32 0.0, %v3745
        %v3747 = vpop.f32.mrb[0].mxu0
        %3748 = vmatprep.mubr.f32.mxu0 0.0
        %3749 = vmatmul.mubr.f32.gmra.mrb[0].mxu0 %v3555
        %v3750 = vpop.f32.mrb[0].mxu0
        %v3751 = vadd.f32 0.0, %v3750
        %v3752 = vpop.f32.mrb[0].mxu0
        %3753 = vmatprep.mubr.f32.mxu0 0.0
        %3754 = vmatmul.mubr.f32.gmra.mrb[0].mxu0 %v3556
        %v3755 = vpop.f32.mrb[0].mxu0
        %v3756 = vadd.f32 0.0, %v3755
        %v3757 = vpop.f32.mrb[0].mxu0
        %3758 = vmatprep.mubr.f32.mxu0 0.0
        %3759 = vmatmul.mubr.f32.gmra.mrb[0].mxu0 %v3557
        %v3760 = vpop.f32.mrb[0].mxu0
        %v3761 = vadd.f32 0.0, %v3760
        %v3762 = vpop.f32.mrb[0].mxu0
        %3763 = vmatprep.mubr.f32.mxu0 0.0
        %3764 = vmatmul.mubr.f32.gmra.mrb[0].mxu0 %v3558
        %v3765 = vpop.f32.mrb[0].mxu0
        %v3766 = vadd.f32 0.0, %v3765
        %v3767 = vpop.f32.mrb[0].mxu0
        %3768 = vmatprep.mubr.f32.mxu0 0.0
        %3769 = vmatmul.mubr.f32.gmra.mrb[0].mxu0 %v3559
        %v3770 = vpop.f32.mrb[0].mxu0
        %v3771 = vadd.f32 0.0, %v3770
        %v3772 = vpop.f32.mrb[0].mxu0
        %3773 = vmatprep.mubr.f32.mxu0 0.0
        %3774 = vmatmul.mubr.f32.gmra.mrb[0].mxu0 %v3560
        %v3775 = vpop.f32.mrb[0].mxu0
        %v3776 = vadd.f32 0.0, %v3775
        %v3777 = vpop.f32.mrb[0].mxu0
        %3778 = vmatprep.mubr.f32.mxu0 0.0
        %3779 = vmatmul.mubr.f32.gmra.mrb[0].mxu0 %v3561
        %v3780 = vpop.f32.mrb[0].mxu0
        %v3781 = vadd.f32 0.0, %v3780
        %v3782 = vpop.f32.mrb[0].mxu0
        %3783 = vmatprep.mubr.f32.mxu0 0.0
        %3784 = vmatmul.mubr.f32.gmra.mrb[0].mxu0 %v3562
        %v3785 = vpop.f32.mrb[0].mxu0
        %v3786 = vadd.f32 0.0, %v3785
        %v3787 = vpop.f32.mrb[0].mxu0
        %3788 = vmatprep.mubr.f32.mxu0 0.0
        %3789 = vmatmul.mubr.f32.gmra.mrb[0].mxu0 %v3563
        %v3790 = vpop.f32.mrb[0].mxu0
        %v3791 = vadd.f32 0.0, %v3790
        %v3792 = vpop.f32.mrb[0].mxu0
        %3793 = vmatprep.mubr.f32.mxu0 0.0
        %3794 = vmatmul.mubr.f32.gmra.mrb[0].mxu0 %v3564
        %v3795 = vpop.f32.mrb[0].mxu0
        %v3796 = vadd.f32 0.0, %v3795
        %v3797 = vpop.f32.mrb[0].mxu0
        %3798 = vmatprep.mubr.f32.mxu0 0.0
        %3799 = vmatmul.mubr.f32.gmra.mrb[0].mxu0 %v3565
        %v3800 = vpop.f32.mrb[0].mxu0
        %v3801 = vadd.f32 0.0, %v3800
        %v3802 = vpop.f32.mrb[0].mxu0
        %3803 = vmatprep.mubr.f32.mxu0 0.0
        %3804 = vmatmul.mubr.f32.gmra.mrb[0].mxu0 %v3566
        %v3805 = vpop.f32.mrb[0].mxu0
        %v3806 = vadd.f32 0.0, %v3805
        %v3807 = vpop.f32.mrb[0].mxu0
        %3808 = vdwg.mxu0
        %v3809 = vadd.f32 %v3503, %v3651
        %v3810 = vadd.f32 %v3504, %v3656
        %v3811 = vadd.f32 %v3505, %v3661
        %v3812 = vadd.f32 %v3506, %v3666
        %v3813 = vadd.f32 %v3507, %v3671
        %v3814 = vadd.f32 %v3508, %v3676
        %v3815 = vadd.f32 %v3509, %v3681
        %v3816 = vadd.f32 %v3510, %v3686
        %v3817 = vadd.f32 %v3511, %v3691
        %v3818 = vadd.f32 %v3512, %v3696
        %v3819 = vadd.f32 %v3513, %v3701
        %v3820 = vadd.f32 %v3514, %v3706
        %v3821 = vadd.f32 %v3515, %v3711
        %v3822 = vadd.f32 %v3516, %v3716
        %v3823 = vadd.f32 %v3517, %v3721
        %v3824 = vadd.f32 %v3518, %v3726
        %v3825 = vadd.f32 %v3519, %v3731
        %v3826 = vadd.f32 %v3520, %v3736
        %v3827 = vadd.f32 %v3521, %v3741
        %v3828 = vadd.f32 %v3522, %v3746
        %v3829 = vadd.f32 %v3523, %v3751
        %v3830 = vadd.f32 %v3524, %v3756
        %v3831 = vadd.f32 %v3525, %v3761
        %v3832 = vadd.f32 %v3526, %v3766
        %v3833 = vadd.f32 %v3527, %v3771
        %v3834 = vadd.f32 %v3528, %v3776
        %v3835 = vadd.f32 %v3529, %v3781
        %v3836 = vadd.f32 %v3530, %v3786
        %v3837 = vadd.f32 %v3531, %v3791
        %v3838 = vadd.f32 %v3532, %v3796
        %v3839 = vadd.f32 %v3533, %v3801
        %v3840 = vadd.f32 %v3534, %v3806
        %v3841 = vld [vmem:[%s4] sm:$0x1]
        %v3843 = vlaneseq
        %v3844 = vshrl.u32 %v3843, 7
        %v3845 = vsub.s32 0, %v3844
        %v3846 = vrot.slane %v3841, %v3845
        %v3848 = vadd.f32 %v3809, %v3846
        %v3849 = vadd.f32 %v3810, %v3846
        %v3850 = vadd.f32 %v3811, %v3846
        %v3851 = vadd.f32 %v3812, %v3846
        %v3852 = vadd.f32 %v3813, %v3846
        %v3853 = vadd.f32 %v3814, %v3846
        %v3854 = vadd.f32 %v3815, %v3846
        %v3855 = vadd.f32 %v3816, %v3846
        %v3856 = vadd.f32 %v3817, %v3846
        %v3857 = vadd.f32 %v3818, %v3846
        %v3858 = vadd.f32 %v3819, %v3846
        %v3859 = vadd.f32 %v3820, %v3846
        %v3860 = vadd.f32 %v3821, %v3846
        %v3861 = vadd.f32 %v3822, %v3846
        %v3862 = vadd.f32 %v3823, %v3846
        %v3863 = vadd.f32 %v3824, %v3846
        %v3864 = vadd.f32 %v3825, %v3846
        %v3865 = vadd.f32 %v3826, %v3846
        %v3866 = vadd.f32 %v3827, %v3846
        %v3867 = vadd.f32 %v3828, %v3846
        %v3868 = vadd.f32 %v3829, %v3846
        %v3869 = vadd.f32 %v3830, %v3846
        %v3870 = vadd.f32 %v3831, %v3846
        %v3871 = vadd.f32 %v3832, %v3846
        %v3872 = vadd.f32 %v3833, %v3846
        %v3873 = vadd.f32 %v3834, %v3846
        %v3874 = vadd.f32 %v3835, %v3846
        %v3875 = vadd.f32 %v3836, %v3846
        %v3876 = vadd.f32 %v3837, %v3846
        %v3877 = vadd.f32 %v3838, %v3846
        %v3878 = vadd.f32 %v3839, %v3846
        %v3879 = vadd.f32 %v3840, %v3846
        %v3880 = vmax.f32 %v3848, 0.0
        %v3881 = vmax.f32 %v3849, 0.0
        %v3882 = vmax.f32 %v3850, 0.0
        %v3883 = vmax.f32 %v3851, 0.0
        %v3884 = vmax.f32 %v3852, 0.0
        %v3885 = vmax.f32 %v3853, 0.0
        %v3886 = vmax.f32 %v3854, 0.0
        %v3887 = vmax.f32 %v3855, 0.0
        %v3888 = vmax.f32 %v3856, 0.0
        %v3889 = vmax.f32 %v3857, 0.0
        %v3890 = vmax.f32 %v3858, 0.0
        %v3891 = vmax.f32 %v3859, 0.0
        %v3892 = vmax.f32 %v3860, 0.0
        %v3893 = vmax.f32 %v3861, 0.0
        %v3894 = vmax.f32 %v3862, 0.0
        %v3895 = vmax.f32 %v3863, 0.0
        %v3896 = vmax.f32 %v3864, 0.0
        %v3897 = vmax.f32 %v3865, 0.0
        %v3898 = vmax.f32 %v3866, 0.0
        %v3899 = vmax.f32 %v3867, 0.0
        %v3900 = vmax.f32 %v3868, 0.0
        %v3901 = vmax.f32 %v3869, 0.0
        %v3902 = vmax.f32 %v3870, 0.0
        %v3903 = vmax.f32 %v3871, 0.0
        %v3904 = vmax.f32 %v3872, 0.0
        %v3905 = vmax.f32 %v3873, 0.0
        %v3906 = vmax.f32 %v3874, 0.0
        %v3907 = vmax.f32 %v3875, 0.0
        %v3908 = vmax.f32 %v3876, 0.0
        %v3909 = vmax.f32 %v3877, 0.0
        %v3910 = vmax.f32 %v3878, 0.0
        %v3911 = vmax.f32 %v3879, 0.0
        %v3912 = vld [vmem:[#allocation9] sm:$0xff]
        %v3913 = vld [vmem:[#allocation9 + $0x8] sm:$0xff]
        %v3914 = vld [vmem:[#allocation9 + $0x10] sm:$0xff]
        %v3915 = vld [vmem:[#allocation9 + $0x18] sm:$0xff]
        %v3916 = vld [vmem:[#allocation9 + $0x20] sm:$0xff]
        %v3917 = vld [vmem:[#allocation9 + $0x28] sm:$0xff]
        %v3918 = vld [vmem:[#allocation9 + $0x30] sm:$0xff]
        %v3919 = vld [vmem:[#allocation9 + $0x38] sm:$0xff]
        %v3920 = vld [vmem:[#allocation9 + $0x40] sm:$0xff]
        %v3921 = vld [vmem:[#allocation9 + $0x48] sm:$0xff]
        %v3922 = vld [vmem:[#allocation9 + $0x50] sm:$0xff]
        %v3923 = vld [vmem:[#allocation9 + $0x58] sm:$0xff]
        %v3924 = vld [vmem:[#allocation9 + $0x60] sm:$0xff]
        %v3925 = vld [vmem:[#allocation9 + $0x68] sm:$0xff]
        %v3926 = vld [vmem:[#allocation9 + $0x70] sm:$0xff]
        %v3927 = vld [vmem:[#allocation9 + $0x78] sm:$0xff]
        %v3928 = vld [vmem:[#allocation9 + $0x80] sm:$0xff]
        %v3929 = vld [vmem:[#allocation9 + $0x88] sm:$0xff]
        %v3930 = vld [vmem:[#allocation9 + $0x90] sm:$0xff]
        %v3931 = vld [vmem:[#allocation9 + $0x98] sm:$0xff]
        %v3932 = vld [vmem:[#allocation9 + $0xa0] sm:$0xff]
        %v3933 = vld [vmem:[#allocation9 + $0xa8] sm:$0xff]
        %v3934 = vld [vmem:[#allocation9 + $0xb0] sm:$0xff]
        %v3935 = vld [vmem:[#allocation9 + $0xb8] sm:$0xff]
        %v3936 = vld [vmem:[#allocation9 + $0xc0] sm:$0xff]
        %v3937 = vld [vmem:[#allocation9 + $0xc8] sm:$0xff]
        %v3938 = vld [vmem:[#allocation9 + $0xd0] sm:$0xff]
        %v3939 = vld [vmem:[#allocation9 + $0xd8] sm:$0xff]
        %v3940 = vld [vmem:[#allocation9 + $0xe0] sm:$0xff]
        %v3941 = vld [vmem:[#allocation9 + $0xe8] sm:$0xff]
        %v3942 = vld [vmem:[#allocation9 + $0xf0] sm:$0xff]
        %v3943 = vld [vmem:[#allocation9 + $0xf8] sm:$0xff]
        %v3944 = vld [vmem:[#allocation9 + $0x100] sm:$0xff]
        %v3945 = vld [vmem:[#allocation9 + $0x108] sm:$0xff]
        %v3946 = vld [vmem:[#allocation9 + $0x110] sm:$0xff]
        %v3947 = vld [vmem:[#allocation9 + $0x118] sm:$0xff]
        %v3948 = vld [vmem:[#allocation9 + $0x120] sm:$0xff]
        %v3949 = vld [vmem:[#allocation9 + $0x128] sm:$0xff]
        %v3950 = vld [vmem:[#allocation9 + $0x130] sm:$0xff]
        %v3951 = vld [vmem:[#allocation9 + $0x138] sm:$0xff]
        %v3952 = vld [vmem:[#allocation9 + $0x140] sm:$0xff]
        %v3953 = vld [vmem:[#allocation9 + $0x148] sm:$0xff]
        %v3954 = vld [vmem:[#allocation9 + $0x150] sm:$0xff]
        %v3955 = vld [vmem:[#allocation9 + $0x158] sm:$0xff]
        %v3956 = vld [vmem:[#allocation9 + $0x160] sm:$0xff]
        %v3957 = vld [vmem:[#allocation9 + $0x168] sm:$0xff]
        %v3958 = vld [vmem:[#allocation9 + $0x170] sm:$0xff]
        %v3959 = vld [vmem:[#allocation9 + $0x178] sm:$0xff]
        %v3960 = vld [vmem:[#allocation9 + $0x180] sm:$0xff]
        %v3961 = vld [vmem:[#allocation9 + $0x188] sm:$0xff]
        %v3962 = vld [vmem:[#allocation9 + $0x190] sm:$0xff]
        %v3963 = vld [vmem:[#allocation9 + $0x198] sm:$0xff]
        %v3964 = vld [vmem:[#allocation9 + $0x1a0] sm:$0xff]
        %v3965 = vld [vmem:[#allocation9 + $0x1a8] sm:$0xff]
        %v3966 = vld [vmem:[#allocation9 + $0x1b0] sm:$0xff]
        %v3967 = vld [vmem:[#allocation9 + $0x1b8] sm:$0xff]
        %v3968 = vld [vmem:[#allocation9 + $0x1c0] sm:$0xff]
        %v3969 = vld [vmem:[#allocation9 + $0x1c8] sm:$0xff]
        %v3970 = vld [vmem:[#allocation9 + $0x1d0] sm:$0xff]
        %v3971 = vld [vmem:[#allocation9 + $0x1d8] sm:$0xff]
        %v3972 = vld [vmem:[#allocation9 + $0x1e0] sm:$0xff]
        %v3973 = vld [vmem:[#allocation9 + $0x1e8] sm:$0xff]
        %v3974 = vld [vmem:[#allocation9 + $0x1f0] sm:$0xff]
        %v3975 = vld [vmem:[#allocation9 + $0x1f8] sm:$0xff]
        %v3976 = vld [vmem:[%s6] sm:$0xf]
        %v3978 = vlaneseq
        %v3979 = vshrl.u32 %v3978, 7
        %v3980 = vsub.s32 0, %v3979
        %v3981 = vrot.slane %v3976, %v3980
        %v3982 = vlaneseq
        %v3983 = vshrl.u32 %v3982, 7
        %v3984 = vsub.s32 1, %v3983
        %v3985 = vrot.slane %v3976, %v3984
        %v3986 = vlaneseq
        %v3987 = vshrl.u32 %v3986, 7
        %v3988 = vsub.s32 2, %v3987
        %v3989 = vrot.slane %v3976, %v3988
        %v3990 = vlaneseq
        %v3991 = vshrl.u32 %v3990, 7
        %v3992 = vsub.s32 3, %v3991
        %v3993 = vrot.slane %v3976, %v3992
        %3998 = vmatprep.subr.mxu0 %v3913
        %3999 = vmatpush1.msra.mxu0 %v3912
        %4000 = vmatprep.subr.mxu0 %v3917
        %4001 = vmatpush1.msra.mxu0 %v3916
        %4002 = vmatprep.subr.mxu0 %v3921
        %4003 = vmatpush1.msra.mxu0 %v3920
        %4004 = vmatprep.subr.mxu0 %v3925
        %4005 = vmatpush1.msra.mxu0 %v3924
        %4006 = vmatprep.subr.mxu0 %v3929
        %4007 = vmatpush1.msra.mxu0 %v3928
        %4008 = vmatprep.subr.mxu0 %v3933
        %4009 = vmatpush1.msra.mxu0 %v3932
        %4010 = vmatprep.subr.mxu0 %v3937
        %4011 = vmatpush1.msra.mxu0 %v3936
        %4012 = vmatprep.subr.mxu0 %v3941
        %4013 = vmatpush1.msra.mxu0 %v3940
        %4014 = vmatprep.subr.mxu0 %v3945
        %4015 = vmatpush1.msra.mxu0 %v3944
        %4016 = vmatprep.subr.mxu0 %v3949
        %4017 = vmatpush1.msra.mxu0 %v3948
        %4018 = vmatprep.subr.mxu0 %v3953
        %4019 = vmatpush1.msra.mxu0 %v3952
        %4020 = vmatprep.subr.mxu0 %v3957
        %4021 = vmatpush1.msra.mxu0 %v3956
        %4022 = vmatprep.subr.mxu0 %v3961
        %4023 = vmatpush1.msra.mxu0 %v3960
        %4024 = vmatprep.subr.mxu0 %v3965
        %4025 = vmatpush1.msra.mxu0 %v3964
        %4026 = vmatprep.subr.mxu0 %v3969
        %4027 = vmatpush1.msra.mxu0 %v3968
        %4028 = vmatprep.subr.mxu0 %v3973
        %4029 = vmatpush1.msra.mxu0 %v3972
        %4030 = vmatprep.subr.mxu0 0.0
        %4031 = vmatpush1.msra.mxu0 0.0
        %4032 = vmatprep.subr.mxu0 0.0
        %4033 = vmatpush1.msra.mxu0 0.0
        %4034 = vmatprep.subr.mxu0 0.0
        %4035 = vmatpush1.msra.mxu0 0.0
        %4036 = vmatprep.subr.mxu0 0.0
        %4037 = vmatpush1.msra.mxu0 0.0
        %4038 = vmatprep.subr.mxu0 0.0
        %4039 = vmatpush1.msra.mxu0 0.0
        %4040 = vmatprep.subr.mxu0 0.0
        %4041 = vmatpush1.msra.mxu0 0.0
        %4042 = vmatprep.subr.mxu0 0.0
        %4043 = vmatpush1.msra.mxu0 0.0
        %4044 = vmatprep.subr.mxu0 0.0
        %4045 = vmatpush1.msra.mxu0 0.0
        %4046 = vmatprep.subr.mxu0 0.0
        %4047 = vmatpush1.msra.mxu0 0.0
        %4048 = vmatprep.subr.mxu0 0.0
        %4049 = vmatpush1.msra.mxu0 0.0
        %4050 = vmatprep.subr.mxu0 0.0
        %4051 = vmatpush1.msra.mxu0 0.0
        %4052 = vmatprep.subr.mxu0 0.0
        %4053 = vmatpush1.msra.mxu0 0.0
        %4054 = vmatprep.subr.mxu0 0.0
        %4055 = vmatpush1.msra.mxu0 0.0
        %4056 = vmatprep.subr.mxu0 0.0
        %4057 = vmatpush1.msra.mxu0 0.0
        %4058 = vmatprep.subr.mxu0 0.0
        %4059 = vmatpush1.msra.mxu0 0.0
        %4060 = vmatprep.subr.mxu0 0.0
        %4061 = vmatpush1.msra.mxu0 0.0
        %4062 = vmatprep.mubr.f32.mxu0 0.0
        %4063 = vmatmul.mubr.f32.gmra.mrb[0].mxu0 %v3880
        %v4064 = vpop.f32.mrb[0].mxu0
        %v4065 = vadd.f32 %v3981, %v4064
        %v4066 = vpop.f32.mrb[0].mxu0
        %v4067 = vadd.f32 %v3985, %v4066
        %4068 = vmatprep.mubr.f32.mxu0 0.0
        %4069 = vmatmul.mubr.f32.gmra.mrb[0].mxu0 %v3881
        %v4070 = vpop.f32.mrb[0].mxu0
        %v4071 = vadd.f32 %v3981, %v4070
        %v4072 = vpop.f32.mrb[0].mxu0
        %v4073 = vadd.f32 %v3985, %v4072
        %4074 = vmatprep.mubr.f32.mxu0 0.0
        %4075 = vmatmul.mubr.f32.gmra.mrb[0].mxu0 %v3882
        %v4076 = vpop.f32.mrb[0].mxu0
        %v4077 = vadd.f32 %v3981, %v4076
        %v4078 = vpop.f32.mrb[0].mxu0
        %v4079 = vadd.f32 %v3985, %v4078
        %4080 = vmatprep.mubr.f32.mxu0 0.0
        %4081 = vmatmul.mubr.f32.gmra.mrb[0].mxu0 %v3883
        %v4082 = vpop.f32.mrb[0].mxu0
        %v4083 = vadd.f32 %v3981, %v4082
        %v4084 = vpop.f32.mrb[0].mxu0
        %v4085 = vadd.f32 %v3985, %v4084
        %4086 = vmatprep.mubr.f32.mxu0 0.0
        %4087 = vmatmul.mubr.f32.gmra.mrb[0].mxu0 %v3884
        %v4088 = vpop.f32.mrb[0].mxu0
        %v4089 = vadd.f32 %v3981, %v4088
        %v4090 = vpop.f32.mrb[0].mxu0
        %v4091 = vadd.f32 %v3985, %v4090
        %4092 = vmatprep.mubr.f32.mxu0 0.0
        %4093 = vmatmul.mubr.f32.gmra.mrb[0].mxu0 %v3885
        %v4094 = vpop.f32.mrb[0].mxu0
        %v4095 = vadd.f32 %v3981, %v4094
        %v4096 = vpop.f32.mrb[0].mxu0
        %v4097 = vadd.f32 %v3985, %v4096
        %4098 = vmatprep.mubr.f32.mxu0 0.0
        %4099 = vmatmul.mubr.f32.gmra.mrb[0].mxu0 %v3886
        %v4100 = vpop.f32.mrb[0].mxu0
        %v4101 = vadd.f32 %v3981, %v4100
        %v4102 = vpop.f32.mrb[0].mxu0
        %v4103 = vadd.f32 %v3985, %v4102
        %4104 = vmatprep.mubr.f32.mxu0 0.0
        %4105 = vmatmul.mubr.f32.gmra.mrb[0].mxu0 %v3887
        %v4106 = vpop.f32.mrb[0].mxu0
        %v4107 = vadd.f32 %v3981, %v4106
        %v4108 = vpop.f32.mrb[0].mxu0
        %v4109 = vadd.f32 %v3985, %v4108
        %4110 = vmatprep.mubr.f32.mxu0 0.0
        %4111 = vmatmul.mubr.f32.gmra.mrb[0].mxu0 %v3888
        %v4112 = vpop.f32.mrb[0].mxu0
        %v4113 = vadd.f32 %v3981, %v4112
        %v4114 = vpop.f32.mrb[0].mxu0
        %v4115 = vadd.f32 %v3985, %v4114
        %4116 = vmatprep.mubr.f32.mxu0 0.0
        %4117 = vmatmul.mubr.f32.gmra.mrb[0].mxu0 %v3889
        %v4118 = vpop.f32.mrb[0].mxu0
        %v4119 = vadd.f32 %v3981, %v4118
        %v4120 = vpop.f32.mrb[0].mxu0
        %v4121 = vadd.f32 %v3985, %v4120
        %4122 = vmatprep.mubr.f32.mxu0 0.0
        %4123 = vmatmul.mubr.f32.gmra.mrb[0].mxu0 %v3890
        %v4124 = vpop.f32.mrb[0].mxu0
        %v4125 = vadd.f32 %v3981, %v4124
        %v4126 = vpop.f32.mrb[0].mxu0
        %v4127 = vadd.f32 %v3985, %v4126
        %4128 = vmatprep.mubr.f32.mxu0 0.0
        %4129 = vmatmul.mubr.f32.gmra.mrb[0].mxu0 %v3891
        %v4130 = vpop.f32.mrb[0].mxu0
        %v4131 = vadd.f32 %v3981, %v4130
        %v4132 = vpop.f32.mrb[0].mxu0
        %v4133 = vadd.f32 %v3985, %v4132
        %4134 = vmatprep.mubr.f32.mxu0 0.0
        %4135 = vmatmul.mubr.f32.gmra.mrb[0].mxu0 %v3892
        %v4136 = vpop.f32.mrb[0].mxu0
        %v4137 = vadd.f32 %v3981, %v4136
        %v4138 = vpop.f32.mrb[0].mxu0
        %v4139 = vadd.f32 %v3985, %v4138
        %4140 = vmatprep.mubr.f32.mxu0 0.0
        %4141 = vmatmul.mubr.f32.gmra.mrb[0].mxu0 %v3893
        %v4142 = vpop.f32.mrb[0].mxu0
        %v4143 = vadd.f32 %v3981, %v4142
        %v4144 = vpop.f32.mrb[0].mxu0
        %v4145 = vadd.f32 %v3985, %v4144
        %4146 = vmatprep.mubr.f32.mxu0 0.0
        %4147 = vmatmul.mubr.f32.gmra.mrb[0].mxu0 %v3894
        %v4148 = vpop.f32.mrb[0].mxu0
        %v4149 = vadd.f32 %v3981, %v4148
        %v4150 = vpop.f32.mrb[0].mxu0
        %v4151 = vadd.f32 %v3985, %v4150
        %4152 = vmatprep.mubr.f32.mxu0 0.0
        %4153 = vmatmul.mubr.f32.gmra.mrb[0].mxu0 %v3895
        %v4154 = vpop.f32.mrb[0].mxu0
        %v4155 = vadd.f32 %v3981, %v4154
        %v4156 = vpop.f32.mrb[0].mxu0
        %v4157 = vadd.f32 %v3985, %v4156
        %4158 = vmatprep.mubr.f32.mxu0 0.0
        %4159 = vmatmul.mubr.f32.gmra.mrb[0].mxu0 %v3896
        %v4160 = vpop.f32.mrb[0].mxu0
        %v4161 = vadd.f32 %v3981, %v4160
        %v4162 = vpop.f32.mrb[0].mxu0
        %v4163 = vadd.f32 %v3985, %v4162
        %4164 = vmatprep.mubr.f32.mxu0 0.0
        %4165 = vmatmul.mubr.f32.gmra.mrb[0].mxu0 %v3897
        %v4166 = vpop.f32.mrb[0].mxu0
        %v4167 = vadd.f32 %v3981, %v4166
        %v4168 = vpop.f32.mrb[0].mxu0
        %v4169 = vadd.f32 %v3985, %v4168
        %4170 = vmatprep.mubr.f32.mxu0 0.0
        %4171 = vmatmul.mubr.f32.gmra.mrb[0].mxu0 %v3898
        %v4172 = vpop.f32.mrb[0].mxu0
        %v4173 = vadd.f32 %v3981, %v4172
        %v4174 = vpop.f32.mrb[0].mxu0
        %v4175 = vadd.f32 %v3985, %v4174
        %4176 = vmatprep.mubr.f32.mxu0 0.0
        %4177 = vmatmul.mubr.f32.gmra.mrb[0].mxu0 %v3899
        %v4178 = vpop.f32.mrb[0].mxu0
        %v4179 = vadd.f32 %v3981, %v4178
        %v4180 = vpop.f32.mrb[0].mxu0
        %v4181 = vadd.f32 %v3985, %v4180
        %4182 = vmatprep.mubr.f32.mxu0 0.0
        %4183 = vmatmul.mubr.f32.gmra.mrb[0].mxu0 %v3900
        %v4184 = vpop.f32.mrb[0].mxu0
        %v4185 = vadd.f32 %v3981, %v4184
        %v4186 = vpop.f32.mrb[0].mxu0
        %v4187 = vadd.f32 %v3985, %v4186
        %4188 = vmatprep.mubr.f32.mxu0 0.0
        %4189 = vmatmul.mubr.f32.gmra.mrb[0].mxu0 %v3901
        %v4190 = vpop.f32.mrb[0].mxu0
        %v4191 = vadd.f32 %v3981, %v4190
        %v4192 = vpop.f32.mrb[0].mxu0
        %v4193 = vadd.f32 %v3985, %v4192
        %4194 = vmatprep.mubr.f32.mxu0 0.0
        %4195 = vmatmul.mubr.f32.gmra.mrb[0].mxu0 %v3902
        %v4196 = vpop.f32.mrb[0].mxu0
        %v4197 = vadd.f32 %v3981, %v4196
        %v4198 = vpop.f32.mrb[0].mxu0
        %v4199 = vadd.f32 %v3985, %v4198
        %4200 = vmatprep.mubr.f32.mxu0 0.0
        %4201 = vmatmul.mubr.f32.gmra.mrb[0].mxu0 %v3903
        %v4202 = vpop.f32.mrb[0].mxu0
        %v4203 = vadd.f32 %v3981, %v4202
        %v4204 = vpop.f32.mrb[0].mxu0
        %v4205 = vadd.f32 %v3985, %v4204
        %4206 = vmatprep.mubr.f32.mxu0 0.0
        %4207 = vmatmul.mubr.f32.gmra.mrb[0].mxu0 %v3904
        %v4208 = vpop.f32.mrb[0].mxu0
        %v4209 = vadd.f32 %v3981, %v4208
        %v4210 = vpop.f32.mrb[0].mxu0
        %v4211 = vadd.f32 %v3985, %v4210
        %4212 = vmatprep.mubr.f32.mxu0 0.0
        %4213 = vmatmul.mubr.f32.gmra.mrb[0].mxu0 %v3905
        %v4214 = vpop.f32.mrb[0].mxu0
        %v4215 = vadd.f32 %v3981, %v4214
        %v4216 = vpop.f32.mrb[0].mxu0
        %v4217 = vadd.f32 %v3985, %v4216
        %4218 = vmatprep.mubr.f32.mxu0 0.0
        %4219 = vmatmul.mubr.f32.gmra.mrb[0].mxu0 %v3906
        %v4220 = vpop.f32.mrb[0].mxu0
        %v4221 = vadd.f32 %v3981, %v4220
        %v4222 = vpop.f32.mrb[0].mxu0
        %v4223 = vadd.f32 %v3985, %v4222
        %4224 = vmatprep.mubr.f32.mxu0 0.0
        %4225 = vmatmul.mubr.f32.gmra.mrb[0].mxu0 %v3907
        %v4226 = vpop.f32.mrb[0].mxu0
        %v4227 = vadd.f32 %v3981, %v4226
        %v4228 = vpop.f32.mrb[0].mxu0
        %v4229 = vadd.f32 %v3985, %v4228
        %4230 = vmatprep.mubr.f32.mxu0 0.0
        %4231 = vmatmul.mubr.f32.gmra.mrb[0].mxu0 %v3908
        %v4232 = vpop.f32.mrb[0].mxu0
        %v4233 = vadd.f32 %v3981, %v4232
        %v4234 = vpop.f32.mrb[0].mxu0
        %v4235 = vadd.f32 %v3985, %v4234
        %4236 = vmatprep.mubr.f32.mxu0 0.0
        %4237 = vmatmul.mubr.f32.gmra.mrb[0].mxu0 %v3909
        %v4238 = vpop.f32.mrb[0].mxu0
        %v4239 = vadd.f32 %v3981, %v4238
        %v4240 = vpop.f32.mrb[0].mxu0
        %v4241 = vadd.f32 %v3985, %v4240
        %4242 = vmatprep.mubr.f32.mxu0 0.0
        %4243 = vmatmul.mubr.f32.gmra.mrb[0].mxu0 %v3910
        %v4244 = vpop.f32.mrb[0].mxu0
        %v4245 = vadd.f32 %v3981, %v4244
        %v4246 = vpop.f32.mrb[0].mxu0
        %v4247 = vadd.f32 %v3985, %v4246
        %4248 = vmatprep.mubr.f32.mxu0 0.0
        %4249 = vmatmul.mubr.f32.gmra.mrb[0].mxu0 %v3911
        %v4250 = vpop.f32.mrb[0].mxu0
        %v4251 = vadd.f32 %v3981, %v4250
        %v4252 = vpop.f32.mrb[0].mxu0
        %v4253 = vadd.f32 %v3985, %v4252
        %4254 = vdwg.mxu0
        %4255 = vmatprep.subr.mxu0 %v3915
        %4256 = vmatpush1.msra.mxu0 %v3914
        %4257 = vmatprep.subr.mxu0 %v3919
        %4258 = vmatpush1.msra.mxu0 %v3918
        %4259 = vmatprep.subr.mxu0 %v3923
        %4260 = vmatpush1.msra.mxu0 %v3922
        %4261 = vmatprep.subr.mxu0 %v3927
        %4262 = vmatpush1.msra.mxu0 %v3926
        %4263 = vmatprep.subr.mxu0 %v3931
        %4264 = vmatpush1.msra.mxu0 %v3930
        %4265 = vmatprep.subr.mxu0 %v3935
        %4266 = vmatpush1.msra.mxu0 %v3934
        %4267 = vmatprep.subr.mxu0 %v3939
        %4268 = vmatpush1.msra.mxu0 %v3938
        %4269 = vmatprep.subr.mxu0 %v3943
        %4270 = vmatpush1.msra.mxu0 %v3942
        %4271 = vmatprep.subr.mxu0 %v3947
        %4272 = vmatpush1.msra.mxu0 %v3946
        %4273 = vmatprep.subr.mxu0 %v3951
        %4274 = vmatpush1.msra.mxu0 %v3950
        %4275 = vmatprep.subr.mxu0 %v3955
        %4276 = vmatpush1.msra.mxu0 %v3954
        %4277 = vmatprep.subr.mxu0 %v3959
        %4278 = vmatpush1.msra.mxu0 %v3958
        %4279 = vmatprep.subr.mxu0 %v3963
        %4280 = vmatpush1.msra.mxu0 %v3962
        %4281 = vmatprep.subr.mxu0 %v3967
        %4282 = vmatpush1.msra.mxu0 %v3966
        %4283 = vmatprep.subr.mxu0 %v3971
        %4284 = vmatpush1.msra.mxu0 %v3970
        %4285 = vmatprep.subr.mxu0 %v3975
        %4286 = vmatpush1.msra.mxu0 %v3974
        %4287 = vmatprep.subr.mxu0 0.0
        %4288 = vmatpush1.msra.mxu0 0.0
        %4289 = vmatprep.subr.mxu0 0.0
        %4290 = vmatpush1.msra.mxu0 0.0
        %4291 = vmatprep.subr.mxu0 0.0
        %4292 = vmatpush1.msra.mxu0 0.0
        %4293 = vmatprep.subr.mxu0 0.0
        %4294 = vmatpush1.msra.mxu0 0.0
        %4295 = vmatprep.subr.mxu0 0.0
        %4296 = vmatpush1.msra.mxu0 0.0
        %4297 = vmatprep.subr.mxu0 0.0
        %4298 = vmatpush1.msra.mxu0 0.0
        %4299 = vmatprep.subr.mxu0 0.0
        %4300 = vmatpush1.msra.mxu0 0.0
        %4301 = vmatprep.subr.mxu0 0.0
        %4302 = vmatpush1.msra.mxu0 0.0
        %4303 = vmatprep.subr.mxu0 0.0
        %4304 = vmatpush1.msra.mxu0 0.0
        %4305 = vmatprep.subr.mxu0 0.0
        %4306 = vmatpush1.msra.mxu0 0.0
        %4307 = vmatprep.subr.mxu0 0.0
        %4308 = vmatpush1.msra.mxu0 0.0
        %4309 = vmatprep.subr.mxu0 0.0
        %4310 = vmatpush1.msra.mxu0 0.0
        %4311 = vmatprep.subr.mxu0 0.0
        %4312 = vmatpush1.msra.mxu0 0.0
        %4313 = vmatprep.subr.mxu0 0.0
        %4314 = vmatpush1.msra.mxu0 0.0
        %4315 = vmatprep.subr.mxu0 0.0
        %4316 = vmatpush1.msra.mxu0 0.0
        %4317 = vmatprep.subr.mxu0 0.0
        %4318 = vmatpush1.msra.mxu0 0.0
        %4319 = vmatprep.mubr.f32.mxu0 0.0
        %4320 = vmatmul.mubr.f32.gmra.mrb[0].mxu0 %v3880
        %v4321 = vpop.f32.mrb[0].mxu0
        %v4322 = vadd.f32 %v3989, %v4321
        %v4323 = vpop.f32.mrb[0].mxu0
        %v4324 = vadd.f32 %v3993, %v4323
        %4325 = vmatprep.mubr.f32.mxu0 0.0
        %4326 = vmatmul.mubr.f32.gmra.mrb[0].mxu0 %v3881
        %v4327 = vpop.f32.mrb[0].mxu0
        %v4328 = vadd.f32 %v3989, %v4327
        %v4329 = vpop.f32.mrb[0].mxu0
        %v4330 = vadd.f32 %v3993, %v4329
        %4331 = vmatprep.mubr.f32.mxu0 0.0
        %4332 = vmatmul.mubr.f32.gmra.mrb[0].mxu0 %v3882
        %v4333 = vpop.f32.mrb[0].mxu0
        %v4334 = vadd.f32 %v3989, %v4333
        %v4335 = vpop.f32.mrb[0].mxu0
        %v4336 = vadd.f32 %v3993, %v4335
        %4337 = vmatprep.mubr.f32.mxu0 0.0
        %4338 = vmatmul.mubr.f32.gmra.mrb[0].mxu0 %v3883
        %v4339 = vpop.f32.mrb[0].mxu0
        %v4340 = vadd.f32 %v3989, %v4339
        %v4341 = vpop.f32.mrb[0].mxu0
        %v4342 = vadd.f32 %v3993, %v4341
        %4343 = vmatprep.mubr.f32.mxu0 0.0
        %4344 = vmatmul.mubr.f32.gmra.mrb[0].mxu0 %v3884
        %v4345 = vpop.f32.mrb[0].mxu0
        %v4346 = vadd.f32 %v3989, %v4345
        %v4347 = vpop.f32.mrb[0].mxu0
        %v4348 = vadd.f32 %v3993, %v4347
        %4349 = vmatprep.mubr.f32.mxu0 0.0
        %4350 = vmatmul.mubr.f32.gmra.mrb[0].mxu0 %v3885
        %v4351 = vpop.f32.mrb[0].mxu0
        %v4352 = vadd.f32 %v3989, %v4351
        %v4353 = vpop.f32.mrb[0].mxu0
        %v4354 = vadd.f32 %v3993, %v4353
        %4355 = vmatprep.mubr.f32.mxu0 0.0
        %4356 = vmatmul.mubr.f32.gmra.mrb[0].mxu0 %v3886
        %v4357 = vpop.f32.mrb[0].mxu0
        %v4358 = vadd.f32 %v3989, %v4357
        %v4359 = vpop.f32.mrb[0].mxu0
        %v4360 = vadd.f32 %v3993, %v4359
        %4361 = vmatprep.mubr.f32.mxu0 0.0
        %4362 = vmatmul.mubr.f32.gmra.mrb[0].mxu0 %v3887
        %v4363 = vpop.f32.mrb[0].mxu0
        %v4364 = vadd.f32 %v3989, %v4363
        %v4365 = vpop.f32.mrb[0].mxu0
        %v4366 = vadd.f32 %v3993, %v4365
        %4367 = vmatprep.mubr.f32.mxu0 0.0
        %4368 = vmatmul.mubr.f32.gmra.mrb[0].mxu0 %v3888
        %v4369 = vpop.f32.mrb[0].mxu0
        %v4370 = vadd.f32 %v3989, %v4369
        %v4371 = vpop.f32.mrb[0].mxu0
        %v4372 = vadd.f32 %v3993, %v4371
        %4373 = vmatprep.mubr.f32.mxu0 0.0
        %4374 = vmatmul.mubr.f32.gmra.mrb[0].mxu0 %v3889
        %v4375 = vpop.f32.mrb[0].mxu0
        %v4376 = vadd.f32 %v3989, %v4375
        %v4377 = vpop.f32.mrb[0].mxu0
        %v4378 = vadd.f32 %v3993, %v4377
        %4379 = vmatprep.mubr.f32.mxu0 0.0
        %4380 = vmatmul.mubr.f32.gmra.mrb[0].mxu0 %v3890
        %v4381 = vpop.f32.mrb[0].mxu0
        %v4382 = vadd.f32 %v3989, %v4381
        %v4383 = vpop.f32.mrb[0].mxu0
        %v4384 = vadd.f32 %v3993, %v4383
        %4385 = vmatprep.mubr.f32.mxu0 0.0
        %4386 = vmatmul.mubr.f32.gmra.mrb[0].mxu0 %v3891
        %v4387 = vpop.f32.mrb[0].mxu0
        %v4388 = vadd.f32 %v3989, %v4387
        %v4389 = vpop.f32.mrb[0].mxu0
        %v4390 = vadd.f32 %v3993, %v4389
        %4391 = vmatprep.mubr.f32.mxu0 0.0
        %4392 = vmatmul.mubr.f32.gmra.mrb[0].mxu0 %v3892
        %v4393 = vpop.f32.mrb[0].mxu0
        %v4394 = vadd.f32 %v3989, %v4393
        %v4395 = vpop.f32.mrb[0].mxu0
        %v4396 = vadd.f32 %v3993, %v4395
        %4397 = vmatprep.mubr.f32.mxu0 0.0
        %4398 = vmatmul.mubr.f32.gmra.mrb[0].mxu0 %v3893
        %v4399 = vpop.f32.mrb[0].mxu0
        %v4400 = vadd.f32 %v3989, %v4399
        %v4401 = vpop.f32.mrb[0].mxu0
        %v4402 = vadd.f32 %v3993, %v4401
        %4403 = vmatprep.mubr.f32.mxu0 0.0
        %4404 = vmatmul.mubr.f32.gmra.mrb[0].mxu0 %v3894
        %v4405 = vpop.f32.mrb[0].mxu0
        %v4406 = vadd.f32 %v3989, %v4405
        %v4407 = vpop.f32.mrb[0].mxu0
        %v4408 = vadd.f32 %v3993, %v4407
        %4409 = vmatprep.mubr.f32.mxu0 0.0
        %4410 = vmatmul.mubr.f32.gmra.mrb[0].mxu0 %v3895
        %v4411 = vpop.f32.mrb[0].mxu0
        %v4412 = vadd.f32 %v3989, %v4411
        %v4413 = vpop.f32.mrb[0].mxu0
        %v4414 = vadd.f32 %v3993, %v4413
        %4415 = vmatprep.mubr.f32.mxu0 0.0
        %4416 = vmatmul.mubr.f32.gmra.mrb[0].mxu0 %v3896
        %v4417 = vpop.f32.mrb[0].mxu0
        %v4418 = vadd.f32 %v3989, %v4417
        %v4419 = vpop.f32.mrb[0].mxu0
        %v4420 = vadd.f32 %v3993, %v4419
        %4421 = vmatprep.mubr.f32.mxu0 0.0
        %4422 = vmatmul.mubr.f32.gmra.mrb[0].mxu0 %v3897
        %v4423 = vpop.f32.mrb[0].mxu0
        %v4424 = vadd.f32 %v3989, %v4423
        %v4425 = vpop.f32.mrb[0].mxu0
        %v4426 = vadd.f32 %v3993, %v4425
        %4427 = vmatprep.mubr.f32.mxu0 0.0
        %4428 = vmatmul.mubr.f32.gmra.mrb[0].mxu0 %v3898
        %v4429 = vpop.f32.mrb[0].mxu0
        %v4430 = vadd.f32 %v3989, %v4429
        %v4431 = vpop.f32.mrb[0].mxu0
        %v4432 = vadd.f32 %v3993, %v4431
        %4433 = vmatprep.mubr.f32.mxu0 0.0
        %4434 = vmatmul.mubr.f32.gmra.mrb[0].mxu0 %v3899
        %v4435 = vpop.f32.mrb[0].mxu0
        %v4436 = vadd.f32 %v3989, %v4435
        %v4437 = vpop.f32.mrb[0].mxu0
        %v4438 = vadd.f32 %v3993, %v4437
        %4439 = vmatprep.mubr.f32.mxu0 0.0
        %4440 = vmatmul.mubr.f32.gmra.mrb[0].mxu0 %v3900
        %v4441 = vpop.f32.mrb[0].mxu0
        %v4442 = vadd.f32 %v3989, %v4441
        %v4443 = vpop.f32.mrb[0].mxu0
        %v4444 = vadd.f32 %v3993, %v4443
        %4445 = vmatprep.mubr.f32.mxu0 0.0
        %4446 = vmatmul.mubr.f32.gmra.mrb[0].mxu0 %v3901
        %v4447 = vpop.f32.mrb[0].mxu0
        %v4448 = vadd.f32 %v3989, %v4447
        %v4449 = vpop.f32.mrb[0].mxu0
        %v4450 = vadd.f32 %v3993, %v4449
        %4451 = vmatprep.mubr.f32.mxu0 0.0
        %4452 = vmatmul.mubr.f32.gmra.mrb[0].mxu0 %v3902
        %v4453 = vpop.f32.mrb[0].mxu0
        %v4454 = vadd.f32 %v3989, %v4453
        %v4455 = vpop.f32.mrb[0].mxu0
        %v4456 = vadd.f32 %v3993, %v4455
        %4457 = vmatprep.mubr.f32.mxu0 0.0
        %4458 = vmatmul.mubr.f32.gmra.mrb[0].mxu0 %v3903
        %v4459 = vpop.f32.mrb[0].mxu0
        %v4460 = vadd.f32 %v3989, %v4459
        %v4461 = vpop.f32.mrb[0].mxu0
        %v4462 = vadd.f32 %v3993, %v4461
        %4463 = vmatprep.mubr.f32.mxu0 0.0
        %4464 = vmatmul.mubr.f32.gmra.mrb[0].mxu0 %v3904
        %v4465 = vpop.f32.mrb[0].mxu0
        %v4466 = vadd.f32 %v3989, %v4465
        %v4467 = vpop.f32.mrb[0].mxu0
        %v4468 = vadd.f32 %v3993, %v4467
        %4469 = vmatprep.mubr.f32.mxu0 0.0
        %4470 = vmatmul.mubr.f32.gmra.mrb[0].mxu0 %v3905
        %v4471 = vpop.f32.mrb[0].mxu0
        %v4472 = vadd.f32 %v3989, %v4471
        %v4473 = vpop.f32.mrb[0].mxu0
        %v4474 = vadd.f32 %v3993, %v4473
        %4475 = vmatprep.mubr.f32.mxu0 0.0
        %4476 = vmatmul.mubr.f32.gmra.mrb[0].mxu0 %v3906
        %v4477 = vpop.f32.mrb[0].mxu0
        %v4478 = vadd.f32 %v3989, %v4477
        %v4479 = vpop.f32.mrb[0].mxu0
        %v4480 = vadd.f32 %v3993, %v4479
        %4481 = vmatprep.mubr.f32.mxu0 0.0
        %4482 = vmatmul.mubr.f32.gmra.mrb[0].mxu0 %v3907
        %v4483 = vpop.f32.mrb[0].mxu0
        %v4484 = vadd.f32 %v3989, %v4483
        %v4485 = vpop.f32.mrb[0].mxu0
        %v4486 = vadd.f32 %v3993, %v4485
        %4487 = vmatprep.mubr.f32.mxu0 0.0
        %4488 = vmatmul.mubr.f32.gmra.mrb[0].mxu0 %v3908
        %v4489 = vpop.f32.mrb[0].mxu0
        %v4490 = vadd.f32 %v3989, %v4489
        %v4491 = vpop.f32.mrb[0].mxu0
        %v4492 = vadd.f32 %v3993, %v4491
        %4493 = vmatprep.mubr.f32.mxu0 0.0
        %4494 = vmatmul.mubr.f32.gmra.mrb[0].mxu0 %v3909
        %v4495 = vpop.f32.mrb[0].mxu0
        %v4496 = vadd.f32 %v3989, %v4495
        %v4497 = vpop.f32.mrb[0].mxu0
        %v4498 = vadd.f32 %v3993, %v4497
        %4499 = vmatprep.mubr.f32.mxu0 0.0
        %4500 = vmatmul.mubr.f32.gmra.mrb[0].mxu0 %v3910
        %v4501 = vpop.f32.mrb[0].mxu0
        %v4502 = vadd.f32 %v3989, %v4501
        %v4503 = vpop.f32.mrb[0].mxu0
        %v4504 = vadd.f32 %v3993, %v4503
        %4505 = vmatprep.mubr.f32.mxu0 0.0
        %4506 = vmatmul.mubr.f32.gmra.mrb[0].mxu0 %v3911
        %v4507 = vpop.f32.mrb[0].mxu0
        %v4508 = vadd.f32 %v3989, %v4507
        %v4509 = vpop.f32.mrb[0].mxu0
        %v4510 = vadd.f32 %v3993, %v4509
        %4511 = vdwg.mxu0
        %v4512 = vadd.f32 %v4065, %v341
        %v4513 = vadd.f32 %v4067, %v342
        %v4514 = vadd.f32 %v4322, %v343
        %v4515 = vadd.f32 %v4324, %v344
        %v4516 = vadd.f32 %v4071, %v345
        %v4517 = vadd.f32 %v4073, %v346
        %v4518 = vadd.f32 %v4328, %v347
        %v4519 = vadd.f32 %v4330, %v348
        %v4520 = vadd.f32 %v4077, %v349
        %v4521 = vadd.f32 %v4079, %v350
        %v4522 = vadd.f32 %v4334, %v351
        %v4523 = vadd.f32 %v4336, %v352
        %v4524 = vadd.f32 %v4083, %v353
        %v4525 = vadd.f32 %v4085, %v354
        %v4526 = vadd.f32 %v4340, %v355
        %v4527 = vadd.f32 %v4342, %v356
        %v4528 = vadd.f32 %v4089, %v357
        %v4529 = vadd.f32 %v4091, %v358
        %v4530 = vadd.f32 %v4346, %v359
        %v4531 = vadd.f32 %v4348, %v360
        %v4532 = vadd.f32 %v4095, %v361
        %v4533 = vadd.f32 %v4097, %v362
        %v4534 = vadd.f32 %v4352, %v363
        %v4535 = vadd.f32 %v4354, %v364
        %v4536 = vadd.f32 %v4101, %v365
        %v4537 = vadd.f32 %v4103, %v366
        %v4538 = vadd.f32 %v4358, %v367
        %v4539 = vadd.f32 %v4360, %v368
        %v4540 = vadd.f32 %v4107, %v369
        %v4541 = vadd.f32 %v4109, %v370
        %v4542 = vadd.f32 %v4364, %v371
        %v4543 = vadd.f32 %v4366, %v372
        %v4544 = vadd.f32 %v4113, %v373
        %v4545 = vadd.f32 %v4115, %v374
        %v4546 = vadd.f32 %v4370, %v375
        %v4547 = vadd.f32 %v4372, %v376
        %v4548 = vadd.f32 %v4119, %v377
        %v4549 = vadd.f32 %v4121, %v378
        %v4550 = vadd.f32 %v4376, %v379
        %v4551 = vadd.f32 %v4378, %v380
        %v4552 = vadd.f32 %v4125, %v381
        %v4553 = vadd.f32 %v4127, %v382
        %v4554 = vadd.f32 %v4382, %v383
        %v4555 = vadd.f32 %v4384, %v384
        %v4556 = vadd.f32 %v4131, %v385
        %v4557 = vadd.f32 %v4133, %v386
        %v4558 = vadd.f32 %v4388, %v387
        %v4559 = vadd.f32 %v4390, %v388
        %v4560 = vadd.f32 %v4137, %v389
        %v4561 = vadd.f32 %v4139, %v390
        %v4562 = vadd.f32 %v4394, %v391
        %v4563 = vadd.f32 %v4396, %v392
        %v4564 = vadd.f32 %v4143, %v393
        %v4565 = vadd.f32 %v4145, %v394
        %v4566 = vadd.f32 %v4400, %v395
        %v4567 = vadd.f32 %v4402, %v396
        %v4568 = vadd.f32 %v4149, %v397
        %v4569 = vadd.f32 %v4151, %v398
        %v4570 = vadd.f32 %v4406, %v399
        %v4571 = vadd.f32 %v4408, %v400
        %v4572 = vadd.f32 %v4155, %v401
        %v4573 = vadd.f32 %v4157, %v402
        %v4574 = vadd.f32 %v4412, %v403
        %v4575 = vadd.f32 %v4414, %v404
        %v4576 = vadd.f32 %v4161, %v405
        %v4577 = vadd.f32 %v4163, %v406
        %v4578 = vadd.f32 %v4418, %v407
        %v4579 = vadd.f32 %v4420, %v408
        %v4580 = vadd.f32 %v4167, %v409
        %v4581 = vadd.f32 %v4169, %v410
        %v4582 = vadd.f32 %v4424, %v411
        %v4583 = vadd.f32 %v4426, %v412
        %v4584 = vadd.f32 %v4173, %v413
        %v4585 = vadd.f32 %v4175, %v414
        %v4586 = vadd.f32 %v4430, %v415
        %v4587 = vadd.f32 %v4432, %v416
        %v4588 = vadd.f32 %v4179, %v417
        %v4589 = vadd.f32 %v4181, %v418
        %v4590 = vadd.f32 %v4436, %v419
        %v4591 = vadd.f32 %v4438, %v420
        %v4592 = vadd.f32 %v4185, %v421
        %v4593 = vadd.f32 %v4187, %v422
        %v4594 = vadd.f32 %v4442, %v423
        %v4595 = vadd.f32 %v4444, %v424
        %v4596 = vadd.f32 %v4191, %v425
        %v4597 = vadd.f32 %v4193, %v426
        %v4598 = vadd.f32 %v4448, %v427
        %v4599 = vadd.f32 %v4450, %v428
        %v4600 = vadd.f32 %v4197, %v429
        %v4601 = vadd.f32 %v4199, %v430
        %v4602 = vadd.f32 %v4454, %v431
        %v4603 = vadd.f32 %v4456, %v432
        %v4604 = vadd.f32 %v4203, %v433
        %v4605 = vadd.f32 %v4205, %v434
        %v4606 = vadd.f32 %v4460, %v435
        %v4607 = vadd.f32 %v4462, %v436
        %v4608 = vadd.f32 %v4209, %v437
        %v4609 = vadd.f32 %v4211, %v438
        %v4610 = vadd.f32 %v4466, %v439
        %v4611 = vadd.f32 %v4468, %v440
        %v4612 = vadd.f32 %v4215, %v441
        %v4613 = vadd.f32 %v4217, %v442
        %v4614 = vadd.f32 %v4472, %v443
        %v4615 = vadd.f32 %v4474, %v444
        %v4616 = vadd.f32 %v4221, %v445
        %v4617 = vadd.f32 %v4223, %v446
        %v4618 = vadd.f32 %v4478, %v447
        %v4619 = vadd.f32 %v4480, %v448
        %v4620 = vadd.f32 %v4227, %v449
        %v4621 = vadd.f32 %v4229, %v450
        %v4622 = vadd.f32 %v4484, %v451
        %v4623 = vadd.f32 %v4486, %v452
        %v4624 = vadd.f32 %v4233, %v453
        %v4625 = vadd.f32 %v4235, %v454
        %v4626 = vadd.f32 %v4490, %v455
        %v4627 = vadd.f32 %v4492, %v456
        %v4628 = vadd.f32 %v4239, %v457
        %v4629 = vadd.f32 %v4241, %v458
        %v4630 = vadd.f32 %v4496, %v459
        %v4631 = vadd.f32 %v4498, %v460
        %v4632 = vadd.f32 %v4245, %v461
        %v4633 = vadd.f32 %v4247, %v462
        %v4634 = vadd.f32 %v4502, %v463
        %v4635 = vadd.f32 %v4504, %v464
        %v4636 = vadd.f32 %v4251, %v465
        %v4637 = vadd.f32 %v4253, %v466
        %v4638 = vadd.f32 %v4508, %v467
        %v4639 = vadd.f32 %v4510, %v468
        %v4640 = vmax.f32 %v4512, 0.0
        %v4641 = vmax.f32 %v4513, 0.0
        %v4642 = vmax.f32 %v4514, 0.0
        %v4643 = vmax.f32 %v4515, 0.0
        %v4644 = vmax.f32 %v4516, 0.0
        %v4645 = vmax.f32 %v4517, 0.0
        %v4646 = vmax.f32 %v4518, 0.0
        %v4647 = vmax.f32 %v4519, 0.0
        %v4648 = vmax.f32 %v4520, 0.0
        %v4649 = vmax.f32 %v4521, 0.0
        %v4650 = vmax.f32 %v4522, 0.0
        %v4651 = vmax.f32 %v4523, 0.0
        %v4652 = vmax.f32 %v4524, 0.0
        %v4653 = vmax.f32 %v4525, 0.0
        %v4654 = vmax.f32 %v4526, 0.0
        %v4655 = vmax.f32 %v4527, 0.0
        %v4656 = vmax.f32 %v4528, 0.0
        %v4657 = vmax.f32 %v4529, 0.0
        %v4658 = vmax.f32 %v4530, 0.0
        %v4659 = vmax.f32 %v4531, 0.0
        %v4660 = vmax.f32 %v4532, 0.0
        %v4661 = vmax.f32 %v4533, 0.0
        %v4662 = vmax.f32 %v4534, 0.0
        %v4663 = vmax.f32 %v4535, 0.0
        %v4664 = vmax.f32 %v4536, 0.0
        %v4665 = vmax.f32 %v4537, 0.0
        %v4666 = vmax.f32 %v4538, 0.0
        %v4667 = vmax.f32 %v4539, 0.0
        %v4668 = vmax.f32 %v4540, 0.0
        %v4669 = vmax.f32 %v4541, 0.0
        %v4670 = vmax.f32 %v4542, 0.0
        %v4671 = vmax.f32 %v4543, 0.0
        %v4672 = vmax.f32 %v4544, 0.0
        %v4673 = vmax.f32 %v4545, 0.0
        %v4674 = vmax.f32 %v4546, 0.0
        %v4675 = vmax.f32 %v4547, 0.0
        %v4676 = vmax.f32 %v4548, 0.0
        %v4677 = vmax.f32 %v4549, 0.0
        %v4678 = vmax.f32 %v4550, 0.0
        %v4679 = vmax.f32 %v4551, 0.0
        %v4680 = vmax.f32 %v4552, 0.0
        %v4681 = vmax.f32 %v4553, 0.0
        %v4682 = vmax.f32 %v4554, 0.0
        %v4683 = vmax.f32 %v4555, 0.0
        %v4684 = vmax.f32 %v4556, 0.0
        %v4685 = vmax.f32 %v4557, 0.0
        %v4686 = vmax.f32 %v4558, 0.0
        %v4687 = vmax.f32 %v4559, 0.0
        %v4688 = vmax.f32 %v4560, 0.0
        %v4689 = vmax.f32 %v4561, 0.0
        %v4690 = vmax.f32 %v4562, 0.0
        %v4691 = vmax.f32 %v4563, 0.0
        %v4692 = vmax.f32 %v4564, 0.0
        %v4693 = vmax.f32 %v4565, 0.0
        %v4694 = vmax.f32 %v4566, 0.0
        %v4695 = vmax.f32 %v4567, 0.0
        %v4696 = vmax.f32 %v4568, 0.0
        %v4697 = vmax.f32 %v4569, 0.0
        %v4698 = vmax.f32 %v4570, 0.0
        %v4699 = vmax.f32 %v4571, 0.0
        %v4700 = vmax.f32 %v4572, 0.0
        %v4701 = vmax.f32 %v4573, 0.0
        %v4702 = vmax.f32 %v4574, 0.0
        %v4703 = vmax.f32 %v4575, 0.0
        %v4704 = vmax.f32 %v4576, 0.0
        %v4705 = vmax.f32 %v4577, 0.0
        %v4706 = vmax.f32 %v4578, 0.0
        %v4707 = vmax.f32 %v4579, 0.0
        %v4708 = vmax.f32 %v4580, 0.0
        %v4709 = vmax.f32 %v4581, 0.0
        %v4710 = vmax.f32 %v4582, 0.0
        %v4711 = vmax.f32 %v4583, 0.0
        %v4712 = vmax.f32 %v4584, 0.0
        %v4713 = vmax.f32 %v4585, 0.0
        %v4714 = vmax.f32 %v4586, 0.0
        %v4715 = vmax.f32 %v4587, 0.0
        %v4716 = vmax.f32 %v4588, 0.0
        %v4717 = vmax.f32 %v4589, 0.0
        %v4718 = vmax.f32 %v4590, 0.0
        %v4719 = vmax.f32 %v4591, 0.0
        %v4720 = vmax.f32 %v4592, 0.0
        %v4721 = vmax.f32 %v4593, 0.0
        %v4722 = vmax.f32 %v4594, 0.0
        %v4723 = vmax.f32 %v4595, 0.0
        %v4724 = vmax.f32 %v4596, 0.0
        %v4725 = vmax.f32 %v4597, 0.0
        %v4726 = vmax.f32 %v4598, 0.0
        %v4727 = vmax.f32 %v4599, 0.0
        %v4728 = vmax.f32 %v4600, 0.0
        %v4729 = vmax.f32 %v4601, 0.0
        %v4730 = vmax.f32 %v4602, 0.0
        %v4731 = vmax.f32 %v4603, 0.0
        %v4732 = vmax.f32 %v4604, 0.0
        %v4733 = vmax.f32 %v4605, 0.0
        %v4734 = vmax.f32 %v4606, 0.0
        %v4735 = vmax.f32 %v4607, 0.0
        %v4736 = vmax.f32 %v4608, 0.0
        %v4737 = vmax.f32 %v4609, 0.0
        %v4738 = vmax.f32 %v4610, 0.0
        %v4739 = vmax.f32 %v4611, 0.0
        %v4740 = vmax.f32 %v4612, 0.0
        %v4741 = vmax.f32 %v4613, 0.0
        %v4742 = vmax.f32 %v4614, 0.0
        %v4743 = vmax.f32 %v4615, 0.0
        %v4744 = vmax.f32 %v4616, 0.0
        %v4745 = vmax.f32 %v4617, 0.0
        %v4746 = vmax.f32 %v4618, 0.0
        %v4747 = vmax.f32 %v4619, 0.0
        %v4748 = vmax.f32 %v4620, 0.0
        %v4749 = vmax.f32 %v4621, 0.0
        %v4750 = vmax.f32 %v4622, 0.0
        %v4751 = vmax.f32 %v4623, 0.0
        %v4752 = vmax.f32 %v4624, 0.0
        %v4753 = vmax.f32 %v4625, 0.0
        %v4754 = vmax.f32 %v4626, 0.0
        %v4755 = vmax.f32 %v4627, 0.0
        %v4756 = vmax.f32 %v4628, 0.0
        %v4757 = vmax.f32 %v4629, 0.0
        %v4758 = vmax.f32 %v4630, 0.0
        %v4759 = vmax.f32 %v4631, 0.0
        %v4760 = vmax.f32 %v4632, 0.0
        %v4761 = vmax.f32 %v4633, 0.0
        %v4762 = vmax.f32 %v4634, 0.0
        %v4763 = vmax.f32 %v4635, 0.0
        %v4764 = vmax.f32 %v4636, 0.0
        %v4765 = vmax.f32 %v4637, 0.0
        %v4766 = vmax.f32 %v4638, 0.0
        %v4767 = vmax.f32 %v4639, 0.0
        %4768 = vst [vmem:[%s340] sm:$0xff] %v4640
        %4769 = vst [vmem:[%s340 + $0x8] sm:$0xff] %v4641
        %4770 = vst [vmem:[%s340 + $0x10] sm:$0xff] %v4642
        %4771 = vst [vmem:[%s340 + $0x18] sm:$0xff] %v4643
        %4772 = vst [vmem:[%s340 + $0x20] sm:$0xff] %v4644
        %4773 = vst [vmem:[%s340 + $0x28] sm:$0xff] %v4645
        %4774 = vst [vmem:[%s340 + $0x30] sm:$0xff] %v4646
        %4775 = vst [vmem:[%s340 + $0x38] sm:$0xff] %v4647
        %4776 = vst [vmem:[%s340 + $0x40] sm:$0xff] %v4648
        %4777 = vst [vmem:[%s340 + $0x48] sm:$0xff] %v4649
        %4778 = vst [vmem:[%s340 + $0x50] sm:$0xff] %v4650
        %4779 = vst [vmem:[%s340 + $0x58] sm:$0xff] %v4651
        %4780 = vst [vmem:[%s340 + $0x60] sm:$0xff] %v4652
        %4781 = vst [vmem:[%s340 + $0x68] sm:$0xff] %v4653
        %4782 = vst [vmem:[%s340 + $0x70] sm:$0xff] %v4654
        %4783 = vst [vmem:[%s340 + $0x78] sm:$0xff] %v4655
        %4784 = vst [vmem:[%s340 + $0x80] sm:$0xff] %v4656
        %4785 = vst [vmem:[%s340 + $0x88] sm:$0xff] %v4657
        %4786 = vst [vmem:[%s340 + $0x90] sm:$0xff] %v4658
        %4787 = vst [vmem:[%s340 + $0x98] sm:$0xff] %v4659
        %4788 = vst [vmem:[%s340 + $0xa0] sm:$0xff] %v4660
        %4789 = vst [vmem:[%s340 + $0xa8] sm:$0xff] %v4661
        %4790 = vst [vmem:[%s340 + $0xb0] sm:$0xff] %v4662
        %4791 = vst [vmem:[%s340 + $0xb8] sm:$0xff] %v4663
        %4792 = vst [vmem:[%s340 + $0xc0] sm:$0xff] %v4664
        %4793 = vst [vmem:[%s340 + $0xc8] sm:$0xff] %v4665
        %4794 = vst [vmem:[%s340 + $0xd0] sm:$0xff] %v4666
        %4795 = vst [vmem:[%s340 + $0xd8] sm:$0xff] %v4667
        %4796 = vst [vmem:[%s340 + $0xe0] sm:$0xff] %v4668
        %4797 = vst [vmem:[%s340 + $0xe8] sm:$0xff] %v4669
        %4798 = vst [vmem:[%s340 + $0xf0] sm:$0xff] %v4670
        %4799 = vst [vmem:[%s340 + $0xf8] sm:$0xff] %v4671
        %4800 = vst [vmem:[%s340 + $0x100] sm:$0xff] %v4672
        %4801 = vst [vmem:[%s340 + $0x108] sm:$0xff] %v4673
        %4802 = vst [vmem:[%s340 + $0x110] sm:$0xff] %v4674
        %4803 = vst [vmem:[%s340 + $0x118] sm:$0xff] %v4675
        %4804 = vst [vmem:[%s340 + $0x120] sm:$0xff] %v4676
        %4805 = vst [vmem:[%s340 + $0x128] sm:$0xff] %v4677
        %4806 = vst [vmem:[%s340 + $0x130] sm:$0xff] %v4678
        %4807 = vst [vmem:[%s340 + $0x138] sm:$0xff] %v4679
        %4808 = vst [vmem:[%s340 + $0x140] sm:$0xff] %v4680
        %4809 = vst [vmem:[%s340 + $0x148] sm:$0xff] %v4681
        %4810 = vst [vmem:[%s340 + $0x150] sm:$0xff] %v4682
        %4811 = vst [vmem:[%s340 + $0x158] sm:$0xff] %v4683
        %4812 = vst [vmem:[%s340 + $0x160] sm:$0xff] %v4684
        %4813 = vst [vmem:[%s340 + $0x168] sm:$0xff] %v4685
        %4814 = vst [vmem:[%s340 + $0x170] sm:$0xff] %v4686
        %4815 = vst [vmem:[%s340 + $0x178] sm:$0xff] %v4687
        %4816 = vst [vmem:[%s340 + $0x180] sm:$0xff] %v4688
        %4817 = vst [vmem:[%s340 + $0x188] sm:$0xff] %v4689
        %4818 = vst [vmem:[%s340 + $0x190] sm:$0xff] %v4690
        %4819 = vst [vmem:[%s340 + $0x198] sm:$0xff] %v4691
        %4820 = vst [vmem:[%s340 + $0x1a0] sm:$0xff] %v4692
        %4821 = vst [vmem:[%s340 + $0x1a8] sm:$0xff] %v4693
        %4822 = vst [vmem:[%s340 + $0x1b0] sm:$0xff] %v4694
        %4823 = vst [vmem:[%s340 + $0x1b8] sm:$0xff] %v4695
        %4824 = vst [vmem:[%s340 + $0x1c0] sm:$0xff] %v4696
        %4825 = vst [vmem:[%s340 + $0x1c8] sm:$0xff] %v4697
        %4826 = vst [vmem:[%s340 + $0x1d0] sm:$0xff] %v4698
        %4827 = vst [vmem:[%s340 + $0x1d8] sm:$0xff] %v4699
        %4828 = vst [vmem:[%s340 + $0x1e0] sm:$0xff] %v4700
        %4829 = vst [vmem:[%s340 + $0x1e8] sm:$0xff] %v4701
        %4830 = vst [vmem:[%s340 + $0x1f0] sm:$0xff] %v4702
        %4831 = vst [vmem:[%s340 + $0x1f8] sm:$0xff] %v4703
        %4832 = vst [vmem:[%s340 + $0x200] sm:$0xff] %v4704
        %4833 = vst [vmem:[%s340 + $0x208] sm:$0xff] %v4705
        %4834 = vst [vmem:[%s340 + $0x210] sm:$0xff] %v4706
        %4835 = vst [vmem:[%s340 + $0x218] sm:$0xff] %v4707
        %4836 = vst [vmem:[%s340 + $0x220] sm:$0xff] %v4708
        %4837 = vst [vmem:[%s340 + $0x228] sm:$0xff] %v4709
        %4838 = vst [vmem:[%s340 + $0x230] sm:$0xff] %v4710
        %4839 = vst [vmem:[%s340 + $0x238] sm:$0xff] %v4711
        %4840 = vst [vmem:[%s340 + $0x240] sm:$0xff] %v4712
        %4841 = vst [vmem:[%s340 + $0x248] sm:$0xff] %v4713
        %4842 = vst [vmem:[%s340 + $0x250] sm:$0xff] %v4714
        %4843 = vst [vmem:[%s340 + $0x258] sm:$0xff] %v4715
        %4844 = vst [vmem:[%s340 + $0x260] sm:$0xff] %v4716
        %4845 = vst [vmem:[%s340 + $0x268] sm:$0xff] %v4717
        %4846 = vst [vmem:[%s340 + $0x270] sm:$0xff] %v4718
        %4847 = vst [vmem:[%s340 + $0x278] sm:$0xff] %v4719
        %4848 = vst [vmem:[%s340 + $0x280] sm:$0xff] %v4720
        %4849 = vst [vmem:[%s340 + $0x288] sm:$0xff] %v4721
        %4850 = vst [vmem:[%s340 + $0x290] sm:$0xff] %v4722
        %4851 = vst [vmem:[%s340 + $0x298] sm:$0xff] %v4723
        %4852 = vst [vmem:[%s340 + $0x2a0] sm:$0xff] %v4724
        %4853 = vst [vmem:[%s340 + $0x2a8] sm:$0xff] %v4725
        %4854 = vst [vmem:[%s340 + $0x2b0] sm:$0xff] %v4726
        %4855 = vst [vmem:[%s340 + $0x2b8] sm:$0xff] %v4727
        %4856 = vst [vmem:[%s340 + $0x2c0] sm:$0xff] %v4728
        %4857 = vst [vmem:[%s340 + $0x2c8] sm:$0xff] %v4729
        %4858 = vst [vmem:[%s340 + $0x2d0] sm:$0xff] %v4730
        %4859 = vst [vmem:[%s340 + $0x2d8] sm:$0xff] %v4731
        %4860 = vst [vmem:[%s340 + $0x2e0] sm:$0xff] %v4732
        %4861 = vst [vmem:[%s340 + $0x2e8] sm:$0xff] %v4733
        %4862 = vst [vmem:[%s340 + $0x2f0] sm:$0xff] %v4734
        %4863 = vst [vmem:[%s340 + $0x2f8] sm:$0xff] %v4735
        %4864 = vst [vmem:[%s340 + $0x300] sm:$0xff] %v4736
        %4865 = vst [vmem:[%s340 + $0x308] sm:$0xff] %v4737
        %4866 = vst [vmem:[%s340 + $0x310] sm:$0xff] %v4738
        %4867 = vst [vmem:[%s340 + $0x318] sm:$0xff] %v4739
        %4868 = vst [vmem:[%s340 + $0x320] sm:$0xff] %v4740
        %4869 = vst [vmem:[%s340 + $0x328] sm:$0xff] %v4741
        %4870 = vst [vmem:[%s340 + $0x330] sm:$0xff] %v4742
        %4871 = vst [vmem:[%s340 + $0x338] sm:$0xff] %v4743
        %4872 = vst [vmem:[%s340 + $0x340] sm:$0xff] %v4744
        %4873 = vst [vmem:[%s340 + $0x348] sm:$0xff] %v4745
        %4874 = vst [vmem:[%s340 + $0x350] sm:$0xff] %v4746
        %4875 = vst [vmem:[%s340 + $0x358] sm:$0xff] %v4747
        %4876 = vst [vmem:[%s340 + $0x360] sm:$0xff] %v4748
        %4877 = vst [vmem:[%s340 + $0x368] sm:$0xff] %v4749
        %4878 = vst [vmem:[%s340 + $0x370] sm:$0xff] %v4750
        %4879 = vst [vmem:[%s340 + $0x378] sm:$0xff] %v4751
        %4880 = vst [vmem:[%s340 + $0x380] sm:$0xff] %v4752
        %4881 = vst [vmem:[%s340 + $0x388] sm:$0xff] %v4753
        %4882 = vst [vmem:[%s340 + $0x390] sm:$0xff] %v4754
        %4883 = vst [vmem:[%s340 + $0x398] sm:$0xff] %v4755
        %4884 = vst [vmem:[%s340 + $0x3a0] sm:$0xff] %v4756
        %4885 = vst [vmem:[%s340 + $0x3a8] sm:$0xff] %v4757
        %4886 = vst [vmem:[%s340 + $0x3b0] sm:$0xff] %v4758
        %4887 = vst [vmem:[%s340 + $0x3b8] sm:$0xff] %v4759
        %4888 = vst [vmem:[%s340 + $0x3c0] sm:$0xff] %v4760
        %4889 = vst [vmem:[%s340 + $0x3c8] sm:$0xff] %v4761
        %4890 = vst [vmem:[%s340 + $0x3d0] sm:$0xff] %v4762
        %4891 = vst [vmem:[%s340 + $0x3d8] sm:$0xff] %v4763
        %4892 = vst [vmem:[%s340 + $0x3e0] sm:$0xff] %v4764
        %4893 = vst [vmem:[%s340 + $0x3e8] sm:$0xff] %v4765
        %4894 = vst [vmem:[%s340 + $0x3f0] sm:$0xff] %v4766
        %4895 = vst [vmem:[%s340 + $0x3f8] sm:$0xff] %v4767
        %s4896 = sand.u32 %s186, 1
        %s4897 = scalar_lea.sflag [#allocation5], %s4896
        %s4898 = sand.u32 %s186, 1
        %s4899 = smul.addr %s4898, 1024
        %s4900 = scalar_lea.vmem [#allocation11], %s4899
        // Predicated region
        $region65: #{tpu_custom_call.1} parent=47 // pred_check
          %p4901 = pneg %p196
        $region66: #{tpu_custom_call.1} parent=47 // pred_check_branch
          %4903 = sbr.rel (%p4901) target = $region68
        $region67: #{tpu_custom_call.1} parent=47 // pred_region
          %s4905 = ssub.s32 16384, 16384
          %4906 = vsyncadd %s4897, %s4905
          %s4907 = smul.addr %s26, 128
          %s4908 = smul.addr %s4907, 128
          %s4909 = scalar_lea.hbm %s7, %s4908
          %s4910 = sshll.u32 %s4900, 4
          %s4911 = int_to_ptr.vmem [resolvable:$true] %s4910
          %4916 = dma.vmem_to_hbm [thread:$0]  %s4911, 16384, %s4909, %s4897, 512, 512, 32
        $region68: #{tpu_custom_call.1} parent=47 // pred_fallthru
          _
      $region48: #{tpu_custom_call.1} parent=5 // pred_fallthru
        _
      %p4917 = scmp.le.s32.totalorder 2, %s21
      // Predicated region
      $region69: #{tpu_custom_call.1} parent=5 // pred_check
        %p4918 = pneg %p4917
      $region70: #{tpu_custom_call.1} parent=5 // pred_check_branch
        %4920 = sbr.rel (%p4918) target = $region72
      $region71: #{tpu_custom_call.1} parent=5 // pred_region
        %s4921 = ssub.s32 %s21, 2
        // Predicated region
        $region73: #{tpu_custom_call.1} parent=71 // pred_check
          %p4922 = pneg %p202
        $region74: #{tpu_custom_call.1} parent=71 // pred_check_branch
          %4924 = sbr.rel (%p4922) target = $region76
        $region75: #{tpu_custom_call.1} parent=71 // pred_region
          %s4925 = sand.u32 %s187, 1
          %s4926 = scalar_lea.sflag [#allocation5], %s4925
          %s4927 = sand.u32 %s187, 1
          %s4928 = smul.addr %s4927, 1024
          %s4929 = scalar_lea.vmem [#allocation11], %s4928
          %4930 = dma.done %s4926, 16384
        $region76: #{tpu_custom_call.1} parent=71 // pred_fallthru
          _
      $region72: #{tpu_custom_call.1} parent=5 // pred_fallthru
        _
    $region6: #{tpu_custom_call.1} parent=1 // loop_footer
      %s25 = sadd.s32 1, %s21
    $region7: #{tpu_custom_call.1} parent=1 // loop_footer_branch
      %20 = sbr.rel target = $region3
    $region8: #{tpu_custom_call.1} parent=1 // loop_exit
      _
    %4931 = vsyncpa [#allocation4], 1
    %s4932 = scalar_lea.sflag [#allocation4], 1
    %4933 = vsyncpa %s4932, 1
    %4934 = vsyncpa [#allocation7], 1
    %4935 = vsyncpa [#allocation10], 1
    %4936 = vsyncpa [#allocation5], 1
    %s4937 = scalar_lea.sflag [#allocation5], 1
    %4938 = vsyncpa %s4937, 1

</llo_original>
